<compile_context>
chip_gen: v6e
topology: v6e:2x2x1
jax: 0.10.0
libtpu: 0.0.40
codegen_flags: <defaults>
</compile_context>

<pallas_src>
import jax
import jax.numpy as jnp
from jax.experimental import pallas as pl
from jax.experimental.pallas import tpu as pltpu


def lstm_classifier_kernel(tok_ref, emb_ref, whh_ref, b_ref,
                           wout_ref, bout_ref, out_ref, xg_ref):
    """Fused (batched) embedding-gate gather + LSTM recurrence + linear + log-softmax.

    tok_ref  : (B_total, S) int32 in SMEM (scalar prefetch) -- token ids
    emb_ref  : (V, 4H) f32  -- pre-projected, gate-prescaled embedding table
    whh_ref  : (H, 4H) f32  -- hidden->gates weight (transposed, i/f/o cols * 0.5)
    b_ref    : (1, 4H) f32  -- combined gate bias (b_ih + b_hh, i/f/o cols * 0.5)
    wout_ref : (H, T)  f32  -- hidden2tag weight (transposed)
    bout_ref : (1, T)  f32  -- hidden2tag bias
    out_ref  : (B_TILE, T) f32 -- log-softmax tag scores for this batch tile
    xg_ref   : (S*B_TILE, 4H) f32 VMEM scratch -- gathered gate pre-activations
    """
    bt = out_ref.shape[0]                 # batch tile (sublane/M dimension)
    S = tok_ref.shape[1]                  # sequence length
    H = whh_ref.shape[0]
    blk = pl.program_id(0)

    # ---- Gather pre-projected gate rows, folding in the (prescaled) bias ----
    # Off the recurrent critical path; row layout is t-major so each step reads
    # one contiguous (bt, 4H) slab.
    bias = b_ref[...]
    for t in range(S):
        for b in range(bt):
            tok = tok_ref[blk * bt + b, t]
            xg_ref[pl.ds(t * bt + b, 1), :] = emb_ref[pl.ds(tok, 1), :] + bias

    # ---- Recurrence: state in registers, one tanh + one tanh(c) per step ----
    whh = whh_ref[...]                    # load once; held across all steps
    h = jnp.zeros((bt, H), jnp.float32)
    c = jnp.zeros((bt, H), jnp.float32)
    for t in range(S):
        gates = xg_ref[pl.ds(t * bt, bt), :] + jnp.dot(
            h, whh, preferred_element_type=jnp.float32)          # (bt, 4H)
        tt = jnp.tanh(gates)              # single EUP push over the full row
        i_g = 0.5 * tt[:, 0 * H:1 * H] + 0.5   # sigmoid via prescaled tanh
        f_g = 0.5 * tt[:, 1 * H:2 * H] + 0.5
        g_g = tt[:, 2 * H:3 * H]
        o_g = 0.5 * tt[:, 3 * H:4 * H] + 0.5
        c = f_g * c + i_g * g_g
        h = o_g * jnp.tanh(c)

    # ---- hidden2tag + LogSoftmax(dim=1) --------------------------------------
    tag = (jnp.dot(h, wout_ref[...], preferred_element_type=jnp.float32)
           + bout_ref[...])                                       # (bt, T)
    m = jnp.max(tag, axis=-1, keepdims=True)
    lse = jnp.log(jnp.sum(jnp.exp(tag - m), axis=-1, keepdims=True)) + m
    out_ref[...] = tag - lse


def lstm_classifier_forward_batched(tokens, params, *, b_tile=8):
    """tokens: (B, S) int32 -> (B, T) log-softmax tag scores."""
    B, S = tokens.shape
    V, G4 = params["emb_proj"].shape      # (vocab, 4H)
    H = params["w_hh_scaled"].shape[0]
    T = params["w_out_t"].shape[1]

    # Pad batch up to a multiple of the sublane tile; clamp token ids (no
    # runtime OOB check on VMEM row gathers).
    Bp = b_tile * pl.cdiv(B, b_tile)
    if Bp != B:
        tokens = jnp.pad(tokens, ((0, Bp - B), (0, 0)))
    tokens = jnp.clip(tokens.astype(jnp.int32), 0, V - 1)

    grid_spec = pltpu.PrefetchScalarGridSpec(
        num_scalar_prefetch=1,
        grid=(Bp // b_tile,),
        in_specs=[
            pl.BlockSpec((V, G4), lambda i, tok: (0, 0)),   # emb_proj (resident)
            pl.BlockSpec((H, G4), lambda i, tok: (0, 0)),   # W_hh^T   (resident)
            pl.BlockSpec((1, G4), lambda i, tok: (0, 0)),   # gate bias
            pl.BlockSpec((H, T), lambda i, tok: (0, 0)),    # W_out^T
            pl.BlockSpec((1, T), lambda i, tok: (0, 0)),    # b_out
        ],
        out_specs=pl.BlockSpec((b_tile, T), lambda i, tok: (i, 0)),
        scratch_shapes=[pltpu.VMEM((S * b_tile, G4), jnp.float32)],
    )

    out = pl.pallas_call(
        lstm_classifier_kernel,
        out_shape=jax.ShapeDtypeStruct((Bp, T), jnp.float32),
        grid_spec=grid_spec,
        compiler_params=pltpu.CompilerParams(
            dimension_semantics=("parallel",)),   # megacore shards batch tiles
    )(tokens, params["emb_proj"], params["w_hh_scaled"],
      params["b_gates_scaled"], params["w_out_t"], params["b_out"])
    return out[:B]


def lstm_classifier_forward(sentence, params):
    """Original-module semantics: one sentence (S,) -> (1, T) tag scores."""
    return lstm_classifier_forward_batched(sentence[None, :], params)


def reference_forward(tokens, params):
    """Pure-JAX reference mirroring torch semantics exactly (unscaled params)."""
    x = jnp.take(params["embedding"], tokens, axis=0)
    H = params["w_hh_t"].shape[0]
    h = jnp.zeros((1, H), jnp.float32)
    c = jnp.zeros((1, H), jnp.float32)
    for t in range(x.shape[0]):
        gates = x[t:t + 1] @ params["w_ih_t"] + h @ params["w_hh_t"] + params["b_gates"]
        i = jax.nn.sigmoid(gates[:, 0 * H:1 * H])
        f = jax.nn.sigmoid(gates[:, 1 * H:2 * H])
        g = jnp.tanh(gates[:, 2 * H:3 * H])
        o = jax.nn.sigmoid(gates[:, 3 * H:4 * H])
        c = f * c + i * g
        h = o * jnp.tanh(c)
    tag = h @ params["w_out_t"] + params["b_out"]
    return jax.nn.log_softmax(tag, axis=1)


def make_params(key, vocab_size, embedding_dim, hidden_dim, tagset_size):
    ks = jax.random.split(key, 8)
    klstm = 1.0 / jnp.sqrt(hidden_dim)
    klin = 1.0 / jnp.sqrt(hidden_dim)
    emb = jax.random.normal(ks[0], (vocab_size, embedding_dim), jnp.float32)
    # PyTorch stores (4H, in); we store transposes for right-multiplication.
    w_ih_t = jax.random.uniform(ks[1], (embedding_dim, 4 * hidden_dim),
                                jnp.float32, -klstm, klstm)
    w_hh_t = jax.random.uniform(ks[2], (hidden_dim, 4 * hidden_dim),
                                jnp.float32, -klstm, klstm)
    b_ih = jax.random.uniform(ks[3], (1, 4 * hidden_dim), jnp.float32, -klstm, klstm)
    b_hh = jax.random.uniform(ks[4], (1, 4 * hidden_dim), jnp.float32, -klstm, klstm)
    w_out_t = jax.random.uniform(ks[5], (hidden_dim, tagset_size),
                                 jnp.float32, -klin, klin)
    b_out = jax.random.uniform(ks[6], (1, tagset_size), jnp.float32, -klin, klin)
    b_gates = b_ih + b_hh                       # PyTorch adds both biases

    # Kernel-side prescaling: sigmoid(x) = 0.5*tanh(x/2)+0.5, so halve the
    # i/f/o gate columns (gate order [i, f, g, o]) of all gate-producing terms.
    H = hidden_dim
    gate_scale = jnp.concatenate([
        jnp.full((H,), 0.5), jnp.full((H,), 0.5),
        jnp.ones((H,)), jnp.full((H,), 0.5)]).astype(jnp.float32)[None, :]
    w_ih_scaled = w_ih_t * gate_scale
    emb_proj = emb @ w_ih_scaled                # (V, 4H) pre-projected table

    return {
        # reference (unscaled) parameters
        "embedding": emb, "w_ih_t": w_ih_t, "w_hh_t": w_hh_t, "b_gates": b_gates,
        # kernel parameters
        "emb_proj": emb_proj,
        "w_hh_scaled": w_hh_t * gate_scale,
        "b_gates_scaled": b_gates * gate_scale,
        "w_out_t": w_out_t, "b_out": b_out,
    }


if __name__ == "__main__":
    VOCAB_SIZE = 20
    EMBEDDING_DIM = 10
    HIDDEN_DIM = 32
    TAGSET_SIZE = 5
    SEQ_LEN = 8
    BATCH = 16            # 2 batch tiles of 8 -> exercises the parallel grid axis

    key = jax.random.PRNGKey(0)
    kp, kt = jax.random.split(key)
    params = make_params(kp, VOCAB_SIZE, EMBEDDING_DIM, HIDDEN_DIM, TAGSET_SIZE)
    sentences = jax.random.randint(kt, (BATCH, SEQ_LEN), 0, VOCAB_SIZE, jnp.int32)

    # Batched kernel vs. per-sentence reference.
    out_b = lstm_classifier_forward_batched(sentences, params)
    out_b = jax.block_until_ready(out_b)
    ref_b = jnp.concatenate(
        [reference_forward(sentences[b], params) for b in range(BATCH)], axis=0)
    assert out_b.shape == (BATCH, TAGSET_SIZE)
    assert jnp.allclose(out_b, ref_b, atol=1e-4, rtol=1e-4), (out_b, ref_b)

    # Original-module single-sentence path.
    out1 = lstm_classifier_forward(sentences[0], params)
    out1 = jax.block_until_ready(out1)
    assert out1.shape == (1, TAGSET_SIZE)
    assert jnp.allclose(out1, ref_b[0:1], atol=1e-4, rtol=1e-4), (out1, ref_b[0:1])

    print("KERNEL_OK")
</pallas_src>

<mosaic_0001>
module attributes {stable_mosaic.version = 11 : i64} {
  func.func @lstm_classifier_kernel(%arg0: i32, %arg1: memref<16x8xi32, #tpu.memory_space<smem>>, %arg2: memref<20x128xf32, #tpu.memory_space<vmem>>, %arg3: memref<32x128xf32, #tpu.memory_space<vmem>>, %arg4: memref<1x128xf32, #tpu.memory_space<vmem>>, %arg5: memref<32x5xf32, #tpu.memory_space<vmem>>, %arg6: memref<1x5xf32, #tpu.memory_space<vmem>>, %arg7: memref<8x5xf32, #tpu.memory_space<vmem>>, %arg8: memref<64x128xf32, #tpu.memory_space<vmem>>) attributes {dimension_semantics = [#tpu.dimension_semantics<parallel>], iteration_bounds = array<i64: 2>, scalar_prefetch = 1 : i64, scratch_operands = 1 : i64, tpu.core_type = #tpu.core_type<tc>, window_params = [{pipeline_mode = #tpu.pipeline_mode<synchronous>, transform_indices = @transform_0, window_bounds = array<i64: 20, 128>}, {pipeline_mode = #tpu.pipeline_mode<synchronous>, transform_indices = @transform_1, window_bounds = array<i64: 32, 128>}, {pipeline_mode = #tpu.pipeline_mode<synchronous>, transform_indices = @transform_2, window_bounds = array<i64: 1, 128>}, {pipeline_mode = #tpu.pipeline_mode<synchronous>, transform_indices = @transform_3, window_bounds = array<i64: 32, 5>}, {pipeline_mode = #tpu.pipeline_mode<synchronous>, transform_indices = @transform_4, window_bounds = array<i64: 1, 5>}, {transform_indices = @transform_5, window_bounds = array<i64: 8, 5>}]} {
    %c0 = arith.constant 0 : index
    %c0_0 = arith.constant 0 : index
    %0 = vector.load %arg4[%c0, %c0_0] : memref<1x128xf32, #tpu.memory_space<vmem>>, vector<1x128xf32>
    %c8_i32 = arith.constant 8 : i32
    %1 = arith.muli %arg0, %c8_i32 : i32
    %c0_i32 = arith.constant 0 : i32
    %2 = arith.addi %1, %c0_i32 : i32
    %3 = arith.index_cast %2 : i32 to index
    %c0_1 = arith.constant 0 : index
    %4 = memref.load %arg1[%3, %c0_1] : memref<16x8xi32, #tpu.memory_space<smem>>
    %5 = arith.index_cast %4 : i32 to index
    %c0_2 = arith.constant 0 : index
    %6 = vector.load %arg2[%5, %c0_2] : memref<20x128xf32, #tpu.memory_space<vmem>>, vector<1x128xf32>
    %7 = arith.addf %6, %0 : vector<1x128xf32>
    %c0_3 = arith.constant 0 : index
    %c0_4 = arith.constant 0 : index
    %8 = vector.load %arg8[%c0_3, %c0_4] : memref<64x128xf32, #tpu.memory_space<vmem>>, vector<1x128xf32>
    tpu.vector_store %arg8[%c0_3, %c0_4], %7 {strides = array<i32>} : memref<64x128xf32, #tpu.memory_space<vmem>>, vector<1x128xf32>,
    %c8_i32_5 = arith.constant 8 : i32
    %9 = arith.muli %arg0, %c8_i32_5 : i32
    %c1_i32 = arith.constant 1 : i32
    %10 = arith.addi %9, %c1_i32 : i32
    %11 = arith.index_cast %10 : i32 to index
    %c0_6 = arith.constant 0 : index
    %12 = memref.load %arg1[%11, %c0_6] : memref<16x8xi32, #tpu.memory_space<smem>>
    %13 = arith.index_cast %12 : i32 to index
    %c0_7 = arith.constant 0 : index
    %14 = vector.load %arg2[%13, %c0_7] : memref<20x128xf32, #tpu.memory_space<vmem>>, vector<1x128xf32>
    %15 = arith.addf %14, %0 : vector<1x128xf32>
    %c1 = arith.constant 1 : index
    %c0_8 = arith.constant 0 : index
    %16 = vector.load %arg8[%c1, %c0_8] : memref<64x128xf32, #tpu.memory_space<vmem>>, vector<1x128xf32>
    tpu.vector_store %arg8[%c1, %c0_8], %15 {strides = array<i32>} : memref<64x128xf32, #tpu.memory_space<vmem>>, vector<1x128xf32>,
    %c8_i32_9 = arith.constant 8 : i32
    %17 = arith.muli %arg0, %c8_i32_9 : i32
    %c2_i32 = arith.constant 2 : i32
    %18 = arith.addi %17, %c2_i32 : i32
    %19 = arith.index_cast %18 : i32 to index
    %c0_10 = arith.constant 0 : index
    %20 = memref.load %arg1[%19, %c0_10] : memref<16x8xi32, #tpu.memory_space<smem>>
    %21 = arith.index_cast %20 : i32 to index
    %c0_11 = arith.constant 0 : index
    %22 = vector.load %arg2[%21, %c0_11] : memref<20x128xf32, #tpu.memory_space<vmem>>, vector<1x128xf32>
    %23 = arith.addf %22, %0 : vector<1x128xf32>
    %c2 = arith.constant 2 : index
    %c0_12 = arith.constant 0 : index
    %24 = vector.load %arg8[%c2, %c0_12] : memref<64x128xf32, #tpu.memory_space<vmem>>, vector<1x128xf32>
    tpu.vector_store %arg8[%c2, %c0_12], %23 {strides = array<i32>} : memref<64x128xf32, #tpu.memory_space<vmem>>, vector<1x128xf32>,
    %c8_i32_13 = arith.constant 8 : i32
    %25 = arith.muli %arg0, %c8_i32_13 : i32
    %c3_i32 = arith.constant 3 : i32
    %26 = arith.addi %25, %c3_i32 : i32
    %27 = arith.index_cast %26 : i32 to index
    %c0_14 = arith.constant 0 : index
    %28 = memref.load %arg1[%27, %c0_14] : memref<16x8xi32, #tpu.memory_space<smem>>
    %29 = arith.index_cast %28 : i32 to index
    %c0_15 = arith.constant 0 : index
    %30 = vector.load %arg2[%29, %c0_15] : memref<20x128xf32, #tpu.memory_space<vmem>>, vector<1x128xf32>
    %31 = arith.addf %30, %0 : vector<1x128xf32>
    %c3 = arith.constant 3 : index
    %c0_16 = arith.constant 0 : index
    %32 = vector.load %arg8[%c3, %c0_16] : memref<64x128xf32, #tpu.memory_space<vmem>>, vector<1x128xf32>
    tpu.vector_store %arg8[%c3, %c0_16], %31 {strides = array<i32>} : memref<64x128xf32, #tpu.memory_space<vmem>>, vector<1x128xf32>,
    %c8_i32_17 = arith.constant 8 : i32
    %33 = arith.muli %arg0, %c8_i32_17 : i32
    %c4_i32 = arith.constant 4 : i32
    %34 = arith.addi %33, %c4_i32 : i32
    %35 = arith.index_cast %34 : i32 to index
    %c0_18 = arith.constant 0 : index
    %36 = memref.load %arg1[%35, %c0_18] : memref<16x8xi32, #tpu.memory_space<smem>>
    %37 = arith.index_cast %36 : i32 to index
    %c0_19 = arith.constant 0 : index
    %38 = vector.load %arg2[%37, %c0_19] : memref<20x128xf32, #tpu.memory_space<vmem>>, vector<1x128xf32>
    %39 = arith.addf %38, %0 : vector<1x128xf32>
    %c4 = arith.constant 4 : index
    %c0_20 = arith.constant 0 : index
    %40 = vector.load %arg8[%c4, %c0_20] : memref<64x128xf32, #tpu.memory_space<vmem>>, vector<1x128xf32>
    tpu.vector_store %arg8[%c4, %c0_20], %39 {strides = array<i32>} : memref<64x128xf32, #tpu.memory_space<vmem>>, vector<1x128xf32>,
    %c8_i32_21 = arith.constant 8 : i32
    %41 = arith.muli %arg0, %c8_i32_21 : i32
    %c5_i32 = arith.constant 5 : i32
    %42 = arith.addi %41, %c5_i32 : i32
    %43 = arith.index_cast %42 : i32 to index
    %c0_22 = arith.constant 0 : index
    %44 = memref.load %arg1[%43, %c0_22] : memref<16x8xi32, #tpu.memory_space<smem>>
    %45 = arith.index_cast %44 : i32 to index
    %c0_23 = arith.constant 0 : index
    %46 = vector.load %arg2[%45, %c0_23] : memref<20x128xf32, #tpu.memory_space<vmem>>, vector<1x128xf32>
    %47 = arith.addf %46, %0 : vector<1x128xf32>
    %c5 = arith.constant 5 : index
    %c0_24 = arith.constant 0 : index
    %48 = vector.load %arg8[%c5, %c0_24] : memref<64x128xf32, #tpu.memory_space<vmem>>, vector<1x128xf32>
    tpu.vector_store %arg8[%c5, %c0_24], %47 {strides = array<i32>} : memref<64x128xf32, #tpu.memory_space<vmem>>, vector<1x128xf32>,
    %c8_i32_25 = arith.constant 8 : i32
    %49 = arith.muli %arg0, %c8_i32_25 : i32
    %c6_i32 = arith.constant 6 : i32
    %50 = arith.addi %49, %c6_i32 : i32
    %51 = arith.index_cast %50 : i32 to index
    %c0_26 = arith.constant 0 : index
    %52 = memref.load %arg1[%51, %c0_26] : memref<16x8xi32, #tpu.memory_space<smem>>
    %53 = arith.index_cast %52 : i32 to index
    %c0_27 = arith.constant 0 : index
    %54 = vector.load %arg2[%53, %c0_27] : memref<20x128xf32, #tpu.memory_space<vmem>>, vector<1x128xf32>
    %55 = arith.addf %54, %0 : vector<1x128xf32>
    %c6 = arith.constant 6 : index
    %c0_28 = arith.constant 0 : index
    %56 = vector.load %arg8[%c6, %c0_28] : memref<64x128xf32, #tpu.memory_space<vmem>>, vector<1x128xf32>
    tpu.vector_store %arg8[%c6, %c0_28], %55 {strides = array<i32>} : memref<64x128xf32, #tpu.memory_space<vmem>>, vector<1x128xf32>,
    %c8_i32_29 = arith.constant 8 : i32
    %57 = arith.muli %arg0, %c8_i32_29 : i32
    %c7_i32 = arith.constant 7 : i32
    %58 = arith.addi %57, %c7_i32 : i32
    %59 = arith.index_cast %58 : i32 to index
    %c0_30 = arith.constant 0 : index
    %60 = memref.load %arg1[%59, %c0_30] : memref<16x8xi32, #tpu.memory_space<smem>>
    %61 = arith.index_cast %60 : i32 to index
    %c0_31 = arith.constant 0 : index
    %62 = vector.load %arg2[%61, %c0_31] : memref<20x128xf32, #tpu.memory_space<vmem>>, vector<1x128xf32>
    %63 = arith.addf %62, %0 : vector<1x128xf32>
    %c7 = arith.constant 7 : index
    %c0_32 = arith.constant 0 : index
    %64 = vector.load %arg8[%c7, %c0_32] : memref<64x128xf32, #tpu.memory_space<vmem>>, vector<1x128xf32>
    tpu.vector_store %arg8[%c7, %c0_32], %63 {strides = array<i32>} : memref<64x128xf32, #tpu.memory_space<vmem>>, vector<1x128xf32>,
    %c8_i32_33 = arith.constant 8 : i32
    %65 = arith.muli %arg0, %c8_i32_33 : i32
    %c0_i32_34 = arith.constant 0 : i32
    %66 = arith.addi %65, %c0_i32_34 : i32
    %67 = arith.index_cast %66 : i32 to index
    %c1_35 = arith.constant 1 : index
    %68 = memref.load %arg1[%67, %c1_35] : memref<16x8xi32, #tpu.memory_space<smem>>
    %69 = arith.index_cast %68 : i32 to index
    %c0_36 = arith.constant 0 : index
    %70 = vector.load %arg2[%69, %c0_36] : memref<20x128xf32, #tpu.memory_space<vmem>>, vector<1x128xf32>
    %71 = arith.addf %70, %0 : vector<1x128xf32>
    %c8 = arith.constant 8 : index
    %c0_37 = arith.constant 0 : index
    %72 = vector.load %arg8[%c8, %c0_37] : memref<64x128xf32, #tpu.memory_space<vmem>>, vector<1x128xf32>
    tpu.vector_store %arg8[%c8, %c0_37], %71 {strides = array<i32>} : memref<64x128xf32, #tpu.memory_space<vmem>>, vector<1x128xf32>,
    %c8_i32_38 = arith.constant 8 : i32
    %73 = arith.muli %arg0, %c8_i32_38 : i32
    %c1_i32_39 = arith.constant 1 : i32
    %74 = arith.addi %73, %c1_i32_39 : i32
    %75 = arith.index_cast %74 : i32 to index
    %c1_40 = arith.constant 1 : index
    %76 = memref.load %arg1[%75, %c1_40] : memref<16x8xi32, #tpu.memory_space<smem>>
    %77 = arith.index_cast %76 : i32 to index
    %c0_41 = arith.constant 0 : index
    %78 = vector.load %arg2[%77, %c0_41] : memref<20x128xf32, #tpu.memory_space<vmem>>, vector<1x128xf32>
    %79 = arith.addf %78, %0 : vector<1x128xf32>
    %c9 = arith.constant 9 : index
    %c0_42 = arith.constant 0 : index
    %80 = vector.load %arg8[%c9, %c0_42] : memref<64x128xf32, #tpu.memory_space<vmem>>, vector<1x128xf32>
    tpu.vector_store %arg8[%c9, %c0_42], %79 {strides = array<i32>} : memref<64x128xf32, #tpu.memory_space<vmem>>, vector<1x128xf32>,
    %c8_i32_43 = arith.constant 8 : i32
    %81 = arith.muli %arg0, %c8_i32_43 : i32
    %c2_i32_44 = arith.constant 2 : i32
    %82 = arith.addi %81, %c2_i32_44 : i32
    %83 = arith.index_cast %82 : i32 to index
    %c1_45 = arith.constant 1 : index
    %84 = memref.load %arg1[%83, %c1_45] : memref<16x8xi32, #tpu.memory_space<smem>>
    %85 = arith.index_cast %84 : i32 to index
    %c0_46 = arith.constant 0 : index
    %86 = vector.load %arg2[%85, %c0_46] : memref<20x128xf32, #tpu.memory_space<vmem>>, vector<1x128xf32>
    %87 = arith.addf %86, %0 : vector<1x128xf32>
    %c10 = arith.constant 10 : index
    %c0_47 = arith.constant 0 : index
    %88 = vector.load %arg8[%c10, %c0_47] : memref<64x128xf32, #tpu.memory_space<vmem>>, vector<1x128xf32>
    tpu.vector_store %arg8[%c10, %c0_47], %87 {strides = array<i32>} : memref<64x128xf32, #tpu.memory_space<vmem>>, vector<1x128xf32>,
    %c8_i32_48 = arith.constant 8 : i32
    %89 = arith.muli %arg0, %c8_i32_48 : i32
    %c3_i32_49 = arith.constant 3 : i32
    %90 = arith.addi %89, %c3_i32_49 : i32
    %91 = arith.index_cast %90 : i32 to index
    %c1_50 = arith.constant 1 : index
    %92 = memref.load %arg1[%91, %c1_50] : memref<16x8xi32, #tpu.memory_space<smem>>
    %93 = arith.index_cast %92 : i32 to index
    %c0_51 = arith.constant 0 : index
    %94 = vector.load %arg2[%93, %c0_51] : memref<20x128xf32, #tpu.memory_space<vmem>>, vector<1x128xf32>
    %95 = arith.addf %94, %0 : vector<1x128xf32>
    %c11 = arith.constant 11 : index
    %c0_52 = arith.constant 0 : index
    %96 = vector.load %arg8[%c11, %c0_52] : memref<64x128xf32, #tpu.memory_space<vmem>>, vector<1x128xf32>
    tpu.vector_store %arg8[%c11, %c0_52], %95 {strides = array<i32>} : memref<64x128xf32, #tpu.memory_space<vmem>>, vector<1x128xf32>,
    %c8_i32_53 = arith.constant 8 : i32
    %97 = arith.muli %arg0, %c8_i32_53 : i32
    %c4_i32_54 = arith.constant 4 : i32
    %98 = arith.addi %97, %c4_i32_54 : i32
    %99 = arith.index_cast %98 : i32 to index
    %c1_55 = arith.constant 1 : index
    %100 = memref.load %arg1[%99, %c1_55] : memref<16x8xi32, #tpu.memory_space<smem>>
    %101 = arith.index_cast %100 : i32 to index
    %c0_56 = arith.constant 0 : index
    %102 = vector.load %arg2[%101, %c0_56] : memref<20x128xf32, #tpu.memory_space<vmem>>, vector<1x128xf32>
    %103 = arith.addf %102, %0 : vector<1x128xf32>
    %c12 = arith.constant 12 : index
    %c0_57 = arith.constant 0 : index
    %104 = vector.load %arg8[%c12, %c0_57] : memref<64x128xf32, #tpu.memory_space<vmem>>, vector<1x128xf32>
    tpu.vector_store %arg8[%c12, %c0_57], %103 {strides = array<i32>} : memref<64x128xf32, #tpu.memory_space<vmem>>, vector<1x128xf32>,
    %c8_i32_58 = arith.constant 8 : i32
    %105 = arith.muli %arg0, %c8_i32_58 : i32
    %c5_i32_59 = arith.constant 5 : i32
    %106 = arith.addi %105, %c5_i32_59 : i32
    %107 = arith.index_cast %106 : i32 to index
    %c1_60 = arith.constant 1 : index
    %108 = memref.load %arg1[%107, %c1_60] : memref<16x8xi32, #tpu.memory_space<smem>>
    %109 = arith.index_cast %108 : i32 to index
    %c0_61 = arith.constant 0 : index
    %110 = vector.load %arg2[%109, %c0_61] : memref<20x128xf32, #tpu.memory_space<vmem>>, vector<1x128xf32>
    %111 = arith.addf %110, %0 : vector<1x128xf32>
    %c13 = arith.constant 13 : index
    %c0_62 = arith.constant 0 : index
    %112 = vector.load %arg8[%c13, %c0_62] : memref<64x128xf32, #tpu.memory_space<vmem>>, vector<1x128xf32>
    tpu.vector_store %arg8[%c13, %c0_62], %111 {strides = array<i32>} : memref<64x128xf32, #tpu.memory_space<vmem>>, vector<1x128xf32>,
    %c8_i32_63 = arith.constant 8 : i32
    %113 = arith.muli %arg0, %c8_i32_63 : i32
    %c6_i32_64 = arith.constant 6 : i32
    %114 = arith.addi %113, %c6_i32_64 : i32
    %115 = arith.index_cast %114 : i32 to index
    %c1_65 = arith.constant 1 : index
    %116 = memref.load %arg1[%115, %c1_65] : memref<16x8xi32, #tpu.memory_space<smem>>
    %117 = arith.index_cast %116 : i32 to index
    %c0_66 = arith.constant 0 : index
    %118 = vector.load %arg2[%117, %c0_66] : memref<20x128xf32, #tpu.memory_space<vmem>>, vector<1x128xf32>
    %119 = arith.addf %118, %0 : vector<1x128xf32>
    %c14 = arith.constant 14 : index
    %c0_67 = arith.constant 0 : index
    %120 = vector.load %arg8[%c14, %c0_67] : memref<64x128xf32, #tpu.memory_space<vmem>>, vector<1x128xf32>
    tpu.vector_store %arg8[%c14, %c0_67], %119 {strides = array<i32>} : memref<64x128xf32, #tpu.memory_space<vmem>>, vector<1x128xf32>,
    %c8_i32_68 = arith.constant 8 : i32
    %121 = arith.muli %arg0, %c8_i32_68 : i32
    %c7_i32_69 = arith.constant 7 : i32
    %122 = arith.addi %121, %c7_i32_69 : i32
    %123 = arith.index_cast %122 : i32 to index
    %c1_70 = arith.constant 1 : index
    %124 = memref.load %arg1[%123, %c1_70] : memref<16x8xi32, #tpu.memory_space<smem>>
    %125 = arith.index_cast %124 : i32 to index
    %c0_71 = arith.constant 0 : index
    %126 = vector.load %arg2[%125, %c0_71] : memref<20x128xf32, #tpu.memory_space<vmem>>, vector<1x128xf32>
    %127 = arith.addf %126, %0 : vector<1x128xf32>
    %c15 = arith.constant 15 : index
    %c0_72 = arith.constant 0 : index
    %128 = vector.load %arg8[%c15, %c0_72] : memref<64x128xf32, #tpu.memory_space<vmem>>, vector<1x128xf32>
    tpu.vector_store %arg8[%c15, %c0_72], %127 {strides = array<i32>} : memref<64x128xf32, #tpu.memory_space<vmem>>, vector<1x128xf32>,
    %c8_i32_73 = arith.constant 8 : i32
    %129 = arith.muli %arg0, %c8_i32_73 : i32
    %c0_i32_74 = arith.constant 0 : i32
    %130 = arith.addi %129, %c0_i32_74 : i32
    %131 = arith.index_cast %130 : i32 to index
    %c2_75 = arith.constant 2 : index
    %132 = memref.load %arg1[%131, %c2_75] : memref<16x8xi32, #tpu.memory_space<smem>>
    %133 = arith.index_cast %132 : i32 to index
    %c0_76 = arith.constant 0 : index
    %134 = vector.load %arg2[%133, %c0_76] : memref<20x128xf32, #tpu.memory_space<vmem>>, vector<1x128xf32>
    %135 = arith.addf %134, %0 : vector<1x128xf32>
    %c16 = arith.constant 16 : index
    %c0_77 = arith.constant 0 : index
    %136 = vector.load %arg8[%c16, %c0_77] : memref<64x128xf32, #tpu.memory_space<vmem>>, vector<1x128xf32>
    tpu.vector_store %arg8[%c16, %c0_77], %135 {strides = array<i32>} : memref<64x128xf32, #tpu.memory_space<vmem>>, vector<1x128xf32>,
    %c8_i32_78 = arith.constant 8 : i32
    %137 = arith.muli %arg0, %c8_i32_78 : i32
    %c1_i32_79 = arith.constant 1 : i32
    %138 = arith.addi %137, %c1_i32_79 : i32
    %139 = arith.index_cast %138 : i32 to index
    %c2_80 = arith.constant 2 : index
    %140 = memref.load %arg1[%139, %c2_80] : memref<16x8xi32, #tpu.memory_space<smem>>
    %141 = arith.index_cast %140 : i32 to index
    %c0_81 = arith.constant 0 : index
    %142 = vector.load %arg2[%141, %c0_81] : memref<20x128xf32, #tpu.memory_space<vmem>>, vector<1x128xf32>
    %143 = arith.addf %142, %0 : vector<1x128xf32>
    %c17 = arith.constant 17 : index
    %c0_82 = arith.constant 0 : index
    %144 = vector.load %arg8[%c17, %c0_82] : memref<64x128xf32, #tpu.memory_space<vmem>>, vector<1x128xf32>
    tpu.vector_store %arg8[%c17, %c0_82], %143 {strides = array<i32>} : memref<64x128xf32, #tpu.memory_space<vmem>>, vector<1x128xf32>,
    %c8_i32_83 = arith.constant 8 : i32
    %145 = arith.muli %arg0, %c8_i32_83 : i32
    %c2_i32_84 = arith.constant 2 : i32
    %146 = arith.addi %145, %c2_i32_84 : i32
    %147 = arith.index_cast %146 : i32 to index
    %c2_85 = arith.constant 2 : index
    %148 = memref.load %arg1[%147, %c2_85] : memref<16x8xi32, #tpu.memory_space<smem>>
    %149 = arith.index_cast %148 : i32 to index
    %c0_86 = arith.constant 0 : index
    %150 = vector.load %arg2[%149, %c0_86] : memref<20x128xf32, #tpu.memory_space<vmem>>, vector<1x128xf32>
    %151 = arith.addf %150, %0 : vector<1x128xf32>
    %c18 = arith.constant 18 : index
    %c0_87 = arith.constant 0 : index
    %152 = vector.load %arg8[%c18, %c0_87] : memref<64x128xf32, #tpu.memory_space<vmem>>, vector<1x128xf32>
    tpu.vector_store %arg8[%c18, %c0_87], %151 {strides = array<i32>} : memref<64x128xf32, #tpu.memory_space<vmem>>, vector<1x128xf32>,
    %c8_i32_88 = arith.constant 8 : i32
    %153 = arith.muli %arg0, %c8_i32_88 : i32
    %c3_i32_89 = arith.constant 3 : i32
    %154 = arith.addi %153, %c3_i32_89 : i32
    %155 = arith.index_cast %154 : i32 to index
    %c2_90 = arith.constant 2 : index
    %156 = memref.load %arg1[%155, %c2_90] : memref<16x8xi32, #tpu.memory_space<smem>>
    %157 = arith.index_cast %156 : i32 to index
    %c0_91 = arith.constant 0 : index
    %158 = vector.load %arg2[%157, %c0_91] : memref<20x128xf32, #tpu.memory_space<vmem>>, vector<1x128xf32>
    %159 = arith.addf %158, %0 : vector<1x128xf32>
    %c19 = arith.constant 19 : index
    %c0_92 = arith.constant 0 : index
    %160 = vector.load %arg8[%c19, %c0_92] : memref<64x128xf32, #tpu.memory_space<vmem>>, vector<1x128xf32>
    tpu.vector_store %arg8[%c19, %c0_92], %159 {strides = array<i32>} : memref<64x128xf32, #tpu.memory_space<vmem>>, vector<1x128xf32>,
    %c8_i32_93 = arith.constant 8 : i32
    %161 = arith.muli %arg0, %c8_i32_93 : i32
    %c4_i32_94 = arith.constant 4 : i32
    %162 = arith.addi %161, %c4_i32_94 : i32
    %163 = arith.index_cast %162 : i32 to index
    %c2_95 = arith.constant 2 : index
    %164 = memref.load %arg1[%163, %c2_95] : memref<16x8xi32, #tpu.memory_space<smem>>
    %165 = arith.index_cast %164 : i32 to index
    %c0_96 = arith.constant 0 : index
    %166 = vector.load %arg2[%165, %c0_96] : memref<20x128xf32, #tpu.memory_space<vmem>>, vector<1x128xf32>
    %167 = arith.addf %166, %0 : vector<1x128xf32>
    %c20 = arith.constant 20 : index
    %c0_97 = arith.constant 0 : index
    %168 = vector.load %arg8[%c20, %c0_97] : memref<64x128xf32, #tpu.memory_space<vmem>>, vector<1x128xf32>
    tpu.vector_store %arg8[%c20, %c0_97], %167 {strides = array<i32>} : memref<64x128xf32, #tpu.memory_space<vmem>>, vector<1x128xf32>,
    %c8_i32_98 = arith.constant 8 : i32
    %169 = arith.muli %arg0, %c8_i32_98 : i32
    %c5_i32_99 = arith.constant 5 : i32
    %170 = arith.addi %169, %c5_i32_99 : i32
    %171 = arith.index_cast %170 : i32 to index
    %c2_100 = arith.constant 2 : index
    %172 = memref.load %arg1[%171, %c2_100] : memref<16x8xi32, #tpu.memory_space<smem>>
    %173 = arith.index_cast %172 : i32 to index
    %c0_101 = arith.constant 0 : index
    %174 = vector.load %arg2[%173, %c0_101] : memref<20x128xf32, #tpu.memory_space<vmem>>, vector<1x128xf32>
    %175 = arith.addf %174, %0 : vector<1x128xf32>
    %c21 = arith.constant 21 : index
    %c0_102 = arith.constant 0 : index
    %176 = vector.load %arg8[%c21, %c0_102] : memref<64x128xf32, #tpu.memory_space<vmem>>, vector<1x128xf32>
    tpu.vector_store %arg8[%c21, %c0_102], %175 {strides = array<i32>} : memref<64x128xf32, #tpu.memory_space<vmem>>, vector<1x128xf32>,
    %c8_i32_103 = arith.constant 8 : i32
    %177 = arith.muli %arg0, %c8_i32_103 : i32
    %c6_i32_104 = arith.constant 6 : i32
    %178 = arith.addi %177, %c6_i32_104 : i32
    %179 = arith.index_cast %178 : i32 to index
    %c2_105 = arith.constant 2 : index
    %180 = memref.load %arg1[%179, %c2_105] : memref<16x8xi32, #tpu.memory_space<smem>>
    %181 = arith.index_cast %180 : i32 to index
    %c0_106 = arith.constant 0 : index
    %182 = vector.load %arg2[%181, %c0_106] : memref<20x128xf32, #tpu.memory_space<vmem>>, vector<1x128xf32>
    %183 = arith.addf %182, %0 : vector<1x128xf32>
    %c22 = arith.constant 22 : index
    %c0_107 = arith.constant 0 : index
    %184 = vector.load %arg8[%c22, %c0_107] : memref<64x128xf32, #tpu.memory_space<vmem>>, vector<1x128xf32>
    tpu.vector_store %arg8[%c22, %c0_107], %183 {strides = array<i32>} : memref<64x128xf32, #tpu.memory_space<vmem>>, vector<1x128xf32>,
    %c8_i32_108 = arith.constant 8 : i32
    %185 = arith.muli %arg0, %c8_i32_108 : i32
    %c7_i32_109 = arith.constant 7 : i32
    %186 = arith.addi %185, %c7_i32_109 : i32
    %187 = arith.index_cast %186 : i32 to index
    %c2_110 = arith.constant 2 : index
    %188 = memref.load %arg1[%187, %c2_110] : memref<16x8xi32, #tpu.memory_space<smem>>
    %189 = arith.index_cast %188 : i32 to index
    %c0_111 = arith.constant 0 : index
    %190 = vector.load %arg2[%189, %c0_111] : memref<20x128xf32, #tpu.memory_space<vmem>>, vector<1x128xf32>
    %191 = arith.addf %190, %0 : vector<1x128xf32>
    %c23 = arith.constant 23 : index
    %c0_112 = arith.constant 0 : index
    %192 = vector.load %arg8[%c23, %c0_112] : memref<64x128xf32, #tpu.memory_space<vmem>>, vector<1x128xf32>
    tpu.vector_store %arg8[%c23, %c0_112], %191 {strides = array<i32>} : memref<64x128xf32, #tpu.memory_space<vmem>>, vector<1x128xf32>,
    %c8_i32_113 = arith.constant 8 : i32
    %193 = arith.muli %arg0, %c8_i32_113 : i32
    %c0_i32_114 = arith.constant 0 : i32
    %194 = arith.addi %193, %c0_i32_114 : i32
    %195 = arith.index_cast %194 : i32 to index
    %c3_115 = arith.constant 3 : index
    %196 = memref.load %arg1[%195, %c3_115] : memref<16x8xi32, #tpu.memory_space<smem>>
    %197 = arith.index_cast %196 : i32 to index
    %c0_116 = arith.constant 0 : index
    %198 = vector.load %arg2[%197, %c0_116] : memref<20x128xf32, #tpu.memory_space<vmem>>, vector<1x128xf32>
    %199 = arith.addf %198, %0 : vector<1x128xf32>
    %c24 = arith.constant 24 : index
    %c0_117 = arith.constant 0 : index
    %200 = vector.load %arg8[%c24, %c0_117] : memref<64x128xf32, #tpu.memory_space<vmem>>, vector<1x128xf32>
    tpu.vector_store %arg8[%c24, %c0_117], %199 {strides = array<i32>} : memref<64x128xf32, #tpu.memory_space<vmem>>, vector<1x128xf32>,
    %c8_i32_118 = arith.constant 8 : i32
    %201 = arith.muli %arg0, %c8_i32_118 : i32
    %c1_i32_119 = arith.constant 1 : i32
    %202 = arith.addi %201, %c1_i32_119 : i32
    %203 = arith.index_cast %202 : i32 to index
    %c3_120 = arith.constant 3 : index
    %204 = memref.load %arg1[%203, %c3_120] : memref<16x8xi32, #tpu.memory_space<smem>>
    %205 = arith.index_cast %204 : i32 to index
    %c0_121 = arith.constant 0 : index
    %206 = vector.load %arg2[%205, %c0_121] : memref<20x128xf32, #tpu.memory_space<vmem>>, vector<1x128xf32>
    %207 = arith.addf %206, %0 : vector<1x128xf32>
    %c25 = arith.constant 25 : index
    %c0_122 = arith.constant 0 : index
    %208 = vector.load %arg8[%c25, %c0_122] : memref<64x128xf32, #tpu.memory_space<vmem>>, vector<1x128xf32>
    tpu.vector_store %arg8[%c25, %c0_122], %207 {strides = array<i32>} : memref<64x128xf32, #tpu.memory_space<vmem>>, vector<1x128xf32>,
    %c8_i32_123 = arith.constant 8 : i32
    %209 = arith.muli %arg0, %c8_i32_123 : i32
    %c2_i32_124 = arith.constant 2 : i32
    %210 = arith.addi %209, %c2_i32_124 : i32
    %211 = arith.index_cast %210 : i32 to index
    %c3_125 = arith.constant 3 : index
    %212 = memref.load %arg1[%211, %c3_125] : memref<16x8xi32, #tpu.memory_space<smem>>
    %213 = arith.index_cast %212 : i32 to index
    %c0_126 = arith.constant 0 : index
    %214 = vector.load %arg2[%213, %c0_126] : memref<20x128xf32, #tpu.memory_space<vmem>>, vector<1x128xf32>
    %215 = arith.addf %214, %0 : vector<1x128xf32>
    %c26 = arith.constant 26 : index
    %c0_127 = arith.constant 0 : index
    %216 = vector.load %arg8[%c26, %c0_127] : memref<64x128xf32, #tpu.memory_space<vmem>>, vector<1x128xf32>
    tpu.vector_store %arg8[%c26, %c0_127], %215 {strides = array<i32>} : memref<64x128xf32, #tpu.memory_space<vmem>>, vector<1x128xf32>,
    %c8_i32_128 = arith.constant 8 : i32
    %217 = arith.muli %arg0, %c8_i32_128 : i32
    %c3_i32_129 = arith.constant 3 : i32
    %218 = arith.addi %217, %c3_i32_129 : i32
    %219 = arith.index_cast %218 : i32 to index
    %c3_130 = arith.constant 3 : index
    %220 = memref.load %arg1[%219, %c3_130] : memref<16x8xi32, #tpu.memory_space<smem>>
    %221 = arith.index_cast %220 : i32 to index
    %c0_131 = arith.constant 0 : index
    %222 = vector.load %arg2[%221, %c0_131] : memref<20x128xf32, #tpu.memory_space<vmem>>, vector<1x128xf32>
    %223 = arith.addf %222, %0 : vector<1x128xf32>
    %c27 = arith.constant 27 : index
    %c0_132 = arith.constant 0 : index
    %224 = vector.load %arg8[%c27, %c0_132] : memref<64x128xf32, #tpu.memory_space<vmem>>, vector<1x128xf32>
    tpu.vector_store %arg8[%c27, %c0_132], %223 {strides = array<i32>} : memref<64x128xf32, #tpu.memory_space<vmem>>, vector<1x128xf32>,
    %c8_i32_133 = arith.constant 8 : i32
    %225 = arith.muli %arg0, %c8_i32_133 : i32
    %c4_i32_134 = arith.constant 4 : i32
    %226 = arith.addi %225, %c4_i32_134 : i32
    %227 = arith.index_cast %226 : i32 to index
    %c3_135 = arith.constant 3 : index
    %228 = memref.load %arg1[%227, %c3_135] : memref<16x8xi32, #tpu.memory_space<smem>>
    %229 = arith.index_cast %228 : i32 to index
    %c0_136 = arith.constant 0 : index
    %230 = vector.load %arg2[%229, %c0_136] : memref<20x128xf32, #tpu.memory_space<vmem>>, vector<1x128xf32>
    %231 = arith.addf %230, %0 : vector<1x128xf32>
    %c28 = arith.constant 28 : index
    %c0_137 = arith.constant 0 : index
    %232 = vector.load %arg8[%c28, %c0_137] : memref<64x128xf32, #tpu.memory_space<vmem>>, vector<1x128xf32>
    tpu.vector_store %arg8[%c28, %c0_137], %231 {strides = array<i32>} : memref<64x128xf32, #tpu.memory_space<vmem>>, vector<1x128xf32>,
    %c8_i32_138 = arith.constant 8 : i32
    %233 = arith.muli %arg0, %c8_i32_138 : i32
    %c5_i32_139 = arith.constant 5 : i32
    %234 = arith.addi %233, %c5_i32_139 : i32
    %235 = arith.index_cast %234 : i32 to index
    %c3_140 = arith.constant 3 : index
    %236 = memref.load %arg1[%235, %c3_140] : memref<16x8xi32, #tpu.memory_space<smem>>
    %237 = arith.index_cast %236 : i32 to index
    %c0_141 = arith.constant 0 : index
    %238 = vector.load %arg2[%237, %c0_141] : memref<20x128xf32, #tpu.memory_space<vmem>>, vector<1x128xf32>
    %239 = arith.addf %238, %0 : vector<1x128xf32>
    %c29 = arith.constant 29 : index
    %c0_142 = arith.constant 0 : index
    %240 = vector.load %arg8[%c29, %c0_142] : memref<64x128xf32, #tpu.memory_space<vmem>>, vector<1x128xf32>
    tpu.vector_store %arg8[%c29, %c0_142], %239 {strides = array<i32>} : memref<64x128xf32, #tpu.memory_space<vmem>>, vector<1x128xf32>,
    %c8_i32_143 = arith.constant 8 : i32
    %241 = arith.muli %arg0, %c8_i32_143 : i32
    %c6_i32_144 = arith.constant 6 : i32
    %242 = arith.addi %241, %c6_i32_144 : i32
    %243 = arith.index_cast %242 : i32 to index
    %c3_145 = arith.constant 3 : index
    %244 = memref.load %arg1[%243, %c3_145] : memref<16x8xi32, #tpu.memory_space<smem>>
    %245 = arith.index_cast %244 : i32 to index
    %c0_146 = arith.constant 0 : index
    %246 = vector.load %arg2[%245, %c0_146] : memref<20x128xf32, #tpu.memory_space<vmem>>, vector<1x128xf32>
    %247 = arith.addf %246, %0 : vector<1x128xf32>
    %c30 = arith.constant 30 : index
    %c0_147 = arith.constant 0 : index
    %248 = vector.load %arg8[%c30, %c0_147] : memref<64x128xf32, #tpu.memory_space<vmem>>, vector<1x128xf32>
    tpu.vector_store %arg8[%c30, %c0_147], %247 {strides = array<i32>} : memref<64x128xf32, #tpu.memory_space<vmem>>, vector<1x128xf32>,
    %c8_i32_148 = arith.constant 8 : i32
    %249 = arith.muli %arg0, %c8_i32_148 : i32
    %c7_i32_149 = arith.constant 7 : i32
    %250 = arith.addi %249, %c7_i32_149 : i32
    %251 = arith.index_cast %250 : i32 to index
    %c3_150 = arith.constant 3 : index
    %252 = memref.load %arg1[%251, %c3_150] : memref<16x8xi32, #tpu.memory_space<smem>>
    %253 = arith.index_cast %252 : i32 to index
    %c0_151 = arith.constant 0 : index
    %254 = vector.load %arg2[%253, %c0_151] : memref<20x128xf32, #tpu.memory_space<vmem>>, vector<1x128xf32>
    %255 = arith.addf %254, %0 : vector<1x128xf32>
    %c31 = arith.constant 31 : index
    %c0_152 = arith.constant 0 : index
    %256 = vector.load %arg8[%c31, %c0_152] : memref<64x128xf32, #tpu.memory_space<vmem>>, vector<1x128xf32>
    tpu.vector_store %arg8[%c31, %c0_152], %255 {strides = array<i32>} : memref<64x128xf32, #tpu.memory_space<vmem>>, vector<1x128xf32>,
    %c8_i32_153 = arith.constant 8 : i32
    %257 = arith.muli %arg0, %c8_i32_153 : i32
    %c0_i32_154 = arith.constant 0 : i32
    %258 = arith.addi %257, %c0_i32_154 : i32
    %259 = arith.index_cast %258 : i32 to index
    %c4_155 = arith.constant 4 : index
    %260 = memref.load %arg1[%259, %c4_155] : memref<16x8xi32, #tpu.memory_space<smem>>
    %261 = arith.index_cast %260 : i32 to index
    %c0_156 = arith.constant 0 : index
    %262 = vector.load %arg2[%261, %c0_156] : memref<20x128xf32, #tpu.memory_space<vmem>>, vector<1x128xf32>
    %263 = arith.addf %262, %0 : vector<1x128xf32>
    %c32 = arith.constant 32 : index
    %c0_157 = arith.constant 0 : index
    %264 = vector.load %arg8[%c32, %c0_157] : memref<64x128xf32, #tpu.memory_space<vmem>>, vector<1x128xf32>
    tpu.vector_store %arg8[%c32, %c0_157], %263 {strides = array<i32>} : memref<64x128xf32, #tpu.memory_space<vmem>>, vector<1x128xf32>,
    %c8_i32_158 = arith.constant 8 : i32
    %265 = arith.muli %arg0, %c8_i32_158 : i32
    %c1_i32_159 = arith.constant 1 : i32
    %266 = arith.addi %265, %c1_i32_159 : i32
    %267 = arith.index_cast %266 : i32 to index
    %c4_160 = arith.constant 4 : index
    %268 = memref.load %arg1[%267, %c4_160] : memref<16x8xi32, #tpu.memory_space<smem>>
    %269 = arith.index_cast %268 : i32 to index
    %c0_161 = arith.constant 0 : index
    %270 = vector.load %arg2[%269, %c0_161] : memref<20x128xf32, #tpu.memory_space<vmem>>, vector<1x128xf32>
    %271 = arith.addf %270, %0 : vector<1x128xf32>
    %c33 = arith.constant 33 : index
    %c0_162 = arith.constant 0 : index
    %272 = vector.load %arg8[%c33, %c0_162] : memref<64x128xf32, #tpu.memory_space<vmem>>, vector<1x128xf32>
    tpu.vector_store %arg8[%c33, %c0_162], %271 {strides = array<i32>} : memref<64x128xf32, #tpu.memory_space<vmem>>, vector<1x128xf32>,
    %c8_i32_163 = arith.constant 8 : i32
    %273 = arith.muli %arg0, %c8_i32_163 : i32
    %c2_i32_164 = arith.constant 2 : i32
    %274 = arith.addi %273, %c2_i32_164 : i32
    %275 = arith.index_cast %274 : i32 to index
    %c4_165 = arith.constant 4 : index
    %276 = memref.load %arg1[%275, %c4_165] : memref<16x8xi32, #tpu.memory_space<smem>>
    %277 = arith.index_cast %276 : i32 to index
    %c0_166 = arith.constant 0 : index
    %278 = vector.load %arg2[%277, %c0_166] : memref<20x128xf32, #tpu.memory_space<vmem>>, vector<1x128xf32>
    %279 = arith.addf %278, %0 : vector<1x128xf32>
    %c34 = arith.constant 34 : index
    %c0_167 = arith.constant 0 : index
    %280 = vector.load %arg8[%c34, %c0_167] : memref<64x128xf32, #tpu.memory_space<vmem>>, vector<1x128xf32>
    tpu.vector_store %arg8[%c34, %c0_167], %279 {strides = array<i32>} : memref<64x128xf32, #tpu.memory_space<vmem>>, vector<1x128xf32>,
    %c8_i32_168 = arith.constant 8 : i32
    %281 = arith.muli %arg0, %c8_i32_168 : i32
    %c3_i32_169 = arith.constant 3 : i32
    %282 = arith.addi %281, %c3_i32_169 : i32
    %283 = arith.index_cast %282 : i32 to index
    %c4_170 = arith.constant 4 : index
    %284 = memref.load %arg1[%283, %c4_170] : memref<16x8xi32, #tpu.memory_space<smem>>
    %285 = arith.index_cast %284 : i32 to index
    %c0_171 = arith.constant 0 : index
    %286 = vector.load %arg2[%285, %c0_171] : memref<20x128xf32, #tpu.memory_space<vmem>>, vector<1x128xf32>
    %287 = arith.addf %286, %0 : vector<1x128xf32>
    %c35 = arith.constant 35 : index
    %c0_172 = arith.constant 0 : index
    %288 = vector.load %arg8[%c35, %c0_172] : memref<64x128xf32, #tpu.memory_space<vmem>>, vector<1x128xf32>
    tpu.vector_store %arg8[%c35, %c0_172], %287 {strides = array<i32>} : memref<64x128xf32, #tpu.memory_space<vmem>>, vector<1x128xf32>,
    %c8_i32_173 = arith.constant 8 : i32
    %289 = arith.muli %arg0, %c8_i32_173 : i32
    %c4_i32_174 = arith.constant 4 : i32
    %290 = arith.addi %289, %c4_i32_174 : i32
    %291 = arith.index_cast %290 : i32 to index
    %c4_175 = arith.constant 4 : index
    %292 = memref.load %arg1[%291, %c4_175] : memref<16x8xi32, #tpu.memory_space<smem>>
    %293 = arith.index_cast %292 : i32 to index
    %c0_176 = arith.constant 0 : index
    %294 = vector.load %arg2[%293, %c0_176] : memref<20x128xf32, #tpu.memory_space<vmem>>, vector<1x128xf32>
    %295 = arith.addf %294, %0 : vector<1x128xf32>
    %c36 = arith.constant 36 : index
    %c0_177 = arith.constant 0 : index
    %296 = vector.load %arg8[%c36, %c0_177] : memref<64x128xf32, #tpu.memory_space<vmem>>, vector<1x128xf32>
    tpu.vector_store %arg8[%c36, %c0_177], %295 {strides = array<i32>} : memref<64x128xf32, #tpu.memory_space<vmem>>, vector<1x128xf32>,
    %c8_i32_178 = arith.constant 8 : i32
    %297 = arith.muli %arg0, %c8_i32_178 : i32
    %c5_i32_179 = arith.constant 5 : i32
    %298 = arith.addi %297, %c5_i32_179 : i32
    %299 = arith.index_cast %298 : i32 to index
    %c4_180 = arith.constant 4 : index
    %300 = memref.load %arg1[%299, %c4_180] : memref<16x8xi32, #tpu.memory_space<smem>>
    %301 = arith.index_cast %300 : i32 to index
    %c0_181 = arith.constant 0 : index
    %302 = vector.load %arg2[%301, %c0_181] : memref<20x128xf32, #tpu.memory_space<vmem>>, vector<1x128xf32>
    %303 = arith.addf %302, %0 : vector<1x128xf32>
    %c37 = arith.constant 37 : index
    %c0_182 = arith.constant 0 : index
    %304 = vector.load %arg8[%c37, %c0_182] : memref<64x128xf32, #tpu.memory_space<vmem>>, vector<1x128xf32>
    tpu.vector_store %arg8[%c37, %c0_182], %303 {strides = array<i32>} : memref<64x128xf32, #tpu.memory_space<vmem>>, vector<1x128xf32>,
    %c8_i32_183 = arith.constant 8 : i32
    %305 = arith.muli %arg0, %c8_i32_183 : i32
    %c6_i32_184 = arith.constant 6 : i32
    %306 = arith.addi %305, %c6_i32_184 : i32
    %307 = arith.index_cast %306 : i32 to index
    %c4_185 = arith.constant 4 : index
    %308 = memref.load %arg1[%307, %c4_185] : memref<16x8xi32, #tpu.memory_space<smem>>
    %309 = arith.index_cast %308 : i32 to index
    %c0_186 = arith.constant 0 : index
    %310 = vector.load %arg2[%309, %c0_186] : memref<20x128xf32, #tpu.memory_space<vmem>>, vector<1x128xf32>
    %311 = arith.addf %310, %0 : vector<1x128xf32>
    %c38 = arith.constant 38 : index
    %c0_187 = arith.constant 0 : index
    %312 = vector.load %arg8[%c38, %c0_187] : memref<64x128xf32, #tpu.memory_space<vmem>>, vector<1x128xf32>
    tpu.vector_store %arg8[%c38, %c0_187], %311 {strides = array<i32>} : memref<64x128xf32, #tpu.memory_space<vmem>>, vector<1x128xf32>,
    %c8_i32_188 = arith.constant 8 : i32
    %313 = arith.muli %arg0, %c8_i32_188 : i32
    %c7_i32_189 = arith.constant 7 : i32
    %314 = arith.addi %313, %c7_i32_189 : i32
    %315 = arith.index_cast %314 : i32 to index
    %c4_190 = arith.constant 4 : index
    %316 = memref.load %arg1[%315, %c4_190] : memref<16x8xi32, #tpu.memory_space<smem>>
    %317 = arith.index_cast %316 : i32 to index
    %c0_191 = arith.constant 0 : index
    %318 = vector.load %arg2[%317, %c0_191] : memref<20x128xf32, #tpu.memory_space<vmem>>, vector<1x128xf32>
    %319 = arith.addf %318, %0 : vector<1x128xf32>
    %c39 = arith.constant 39 : index
    %c0_192 = arith.constant 0 : index
    %320 = vector.load %arg8[%c39, %c0_192] : memref<64x128xf32, #tpu.memory_space<vmem>>, vector<1x128xf32>
    tpu.vector_store %arg8[%c39, %c0_192], %319 {strides = array<i32>} : memref<64x128xf32, #tpu.memory_space<vmem>>, vector<1x128xf32>,
    %c8_i32_193 = arith.constant 8 : i32
    %321 = arith.muli %arg0, %c8_i32_193 : i32
    %c0_i32_194 = arith.constant 0 : i32
    %322 = arith.addi %321, %c0_i32_194 : i32
    %323 = arith.index_cast %322 : i32 to index
    %c5_195 = arith.constant 5 : index
    %324 = memref.load %arg1[%323, %c5_195] : memref<16x8xi32, #tpu.memory_space<smem>>
    %325 = arith.index_cast %324 : i32 to index
    %c0_196 = arith.constant 0 : index
    %326 = vector.load %arg2[%325, %c0_196] : memref<20x128xf32, #tpu.memory_space<vmem>>, vector<1x128xf32>
    %327 = arith.addf %326, %0 : vector<1x128xf32>
    %c40 = arith.constant 40 : index
    %c0_197 = arith.constant 0 : index
    %328 = vector.load %arg8[%c40, %c0_197] : memref<64x128xf32, #tpu.memory_space<vmem>>, vector<1x128xf32>
    tpu.vector_store %arg8[%c40, %c0_197], %327 {strides = array<i32>} : memref<64x128xf32, #tpu.memory_space<vmem>>, vector<1x128xf32>,
    %c8_i32_198 = arith.constant 8 : i32
    %329 = arith.muli %arg0, %c8_i32_198 : i32
    %c1_i32_199 = arith.constant 1 : i32
    %330 = arith.addi %329, %c1_i32_199 : i32
    %331 = arith.index_cast %330 : i32 to index
    %c5_200 = arith.constant 5 : index
    %332 = memref.load %arg1[%331, %c5_200] : memref<16x8xi32, #tpu.memory_space<smem>>
    %333 = arith.index_cast %332 : i32 to index
    %c0_201 = arith.constant 0 : index
    %334 = vector.load %arg2[%333, %c0_201] : memref<20x128xf32, #tpu.memory_space<vmem>>, vector<1x128xf32>
    %335 = arith.addf %334, %0 : vector<1x128xf32>
    %c41 = arith.constant 41 : index
    %c0_202 = arith.constant 0 : index
    %336 = vector.load %arg8[%c41, %c0_202] : memref<64x128xf32, #tpu.memory_space<vmem>>, vector<1x128xf32>
    tpu.vector_store %arg8[%c41, %c0_202], %335 {strides = array<i32>} : memref<64x128xf32, #tpu.memory_space<vmem>>, vector<1x128xf32>,
    %c8_i32_203 = arith.constant 8 : i32
    %337 = arith.muli %arg0, %c8_i32_203 : i32
    %c2_i32_204 = arith.constant 2 : i32
    %338 = arith.addi %337, %c2_i32_204 : i32
    %339 = arith.index_cast %338 : i32 to index
    %c5_205 = arith.constant 5 : index
    %340 = memref.load %arg1[%339, %c5_205] : memref<16x8xi32, #tpu.memory_space<smem>>
    %341 = arith.index_cast %340 : i32 to index
    %c0_206 = arith.constant 0 : index
    %342 = vector.load %arg2[%341, %c0_206] : memref<20x128xf32, #tpu.memory_space<vmem>>, vector<1x128xf32>
    %343 = arith.addf %342, %0 : vector<1x128xf32>
    %c42 = arith.constant 42 : index
    %c0_207 = arith.constant 0 : index
    %344 = vector.load %arg8[%c42, %c0_207] : memref<64x128xf32, #tpu.memory_space<vmem>>, vector<1x128xf32>
    tpu.vector_store %arg8[%c42, %c0_207], %343 {strides = array<i32>} : memref<64x128xf32, #tpu.memory_space<vmem>>, vector<1x128xf32>,
    %c8_i32_208 = arith.constant 8 : i32
    %345 = arith.muli %arg0, %c8_i32_208 : i32
    %c3_i32_209 = arith.constant 3 : i32
    %346 = arith.addi %345, %c3_i32_209 : i32
    %347 = arith.index_cast %346 : i32 to index
    %c5_210 = arith.constant 5 : index
    %348 = memref.load %arg1[%347, %c5_210] : memref<16x8xi32, #tpu.memory_space<smem>>
    %349 = arith.index_cast %348 : i32 to index
    %c0_211 = arith.constant 0 : index
    %350 = vector.load %arg2[%349, %c0_211] : memref<20x128xf32, #tpu.memory_space<vmem>>, vector<1x128xf32>
    %351 = arith.addf %350, %0 : vector<1x128xf32>
    %c43 = arith.constant 43 : index
    %c0_212 = arith.constant 0 : index
    %352 = vector.load %arg8[%c43, %c0_212] : memref<64x128xf32, #tpu.memory_space<vmem>>, vector<1x128xf32>
    tpu.vector_store %arg8[%c43, %c0_212], %351 {strides = array<i32>} : memref<64x128xf32, #tpu.memory_space<vmem>>, vector<1x128xf32>,
    %c8_i32_213 = arith.constant 8 : i32
    %353 = arith.muli %arg0, %c8_i32_213 : i32
    %c4_i32_214 = arith.constant 4 : i32
    %354 = arith.addi %353, %c4_i32_214 : i32
    %355 = arith.index_cast %354 : i32 to index
    %c5_215 = arith.constant 5 : index
    %356 = memref.load %arg1[%355, %c5_215] : memref<16x8xi32, #tpu.memory_space<smem>>
    %357 = arith.index_cast %356 : i32 to index
    %c0_216 = arith.constant 0 : index
    %358 = vector.load %arg2[%357, %c0_216] : memref<20x128xf32, #tpu.memory_space<vmem>>, vector<1x128xf32>
    %359 = arith.addf %358, %0 : vector<1x128xf32>
    %c44 = arith.constant 44 : index
    %c0_217 = arith.constant 0 : index
    %360 = vector.load %arg8[%c44, %c0_217] : memref<64x128xf32, #tpu.memory_space<vmem>>, vector<1x128xf32>
    tpu.vector_store %arg8[%c44, %c0_217], %359 {strides = array<i32>} : memref<64x128xf32, #tpu.memory_space<vmem>>, vector<1x128xf32>,
    %c8_i32_218 = arith.constant 8 : i32
    %361 = arith.muli %arg0, %c8_i32_218 : i32
    %c5_i32_219 = arith.constant 5 : i32
    %362 = arith.addi %361, %c5_i32_219 : i32
    %363 = arith.index_cast %362 : i32 to index
    %c5_220 = arith.constant 5 : index
    %364 = memref.load %arg1[%363, %c5_220] : memref<16x8xi32, #tpu.memory_space<smem>>
    %365 = arith.index_cast %364 : i32 to index
    %c0_221 = arith.constant 0 : index
    %366 = vector.load %arg2[%365, %c0_221] : memref<20x128xf32, #tpu.memory_space<vmem>>, vector<1x128xf32>
    %367 = arith.addf %366, %0 : vector<1x128xf32>
    %c45 = arith.constant 45 : index
    %c0_222 = arith.constant 0 : index
    %368 = vector.load %arg8[%c45, %c0_222] : memref<64x128xf32, #tpu.memory_space<vmem>>, vector<1x128xf32>
    tpu.vector_store %arg8[%c45, %c0_222], %367 {strides = array<i32>} : memref<64x128xf32, #tpu.memory_space<vmem>>, vector<1x128xf32>,
    %c8_i32_223 = arith.constant 8 : i32
    %369 = arith.muli %arg0, %c8_i32_223 : i32
    %c6_i32_224 = arith.constant 6 : i32
    %370 = arith.addi %369, %c6_i32_224 : i32
    %371 = arith.index_cast %370 : i32 to index
    %c5_225 = arith.constant 5 : index
    %372 = memref.load %arg1[%371, %c5_225] : memref<16x8xi32, #tpu.memory_space<smem>>
    %373 = arith.index_cast %372 : i32 to index
    %c0_226 = arith.constant 0 : index
    %374 = vector.load %arg2[%373, %c0_226] : memref<20x128xf32, #tpu.memory_space<vmem>>, vector<1x128xf32>
    %375 = arith.addf %374, %0 : vector<1x128xf32>
    %c46 = arith.constant 46 : index
    %c0_227 = arith.constant 0 : index
    %376 = vector.load %arg8[%c46, %c0_227] : memref<64x128xf32, #tpu.memory_space<vmem>>, vector<1x128xf32>
    tpu.vector_store %arg8[%c46, %c0_227], %375 {strides = array<i32>} : memref<64x128xf32, #tpu.memory_space<vmem>>, vector<1x128xf32>,
    %c8_i32_228 = arith.constant 8 : i32
    %377 = arith.muli %arg0, %c8_i32_228 : i32
    %c7_i32_229 = arith.constant 7 : i32
    %378 = arith.addi %377, %c7_i32_229 : i32
    %379 = arith.index_cast %378 : i32 to index
    %c5_230 = arith.constant 5 : index
    %380 = memref.load %arg1[%379, %c5_230] : memref<16x8xi32, #tpu.memory_space<smem>>
    %381 = arith.index_cast %380 : i32 to index
    %c0_231 = arith.constant 0 : index
    %382 = vector.load %arg2[%381, %c0_231] : memref<20x128xf32, #tpu.memory_space<vmem>>, vector<1x128xf32>
    %383 = arith.addf %382, %0 : vector<1x128xf32>
    %c47 = arith.constant 47 : index
    %c0_232 = arith.constant 0 : index
    %384 = vector.load %arg8[%c47, %c0_232] : memref<64x128xf32, #tpu.memory_space<vmem>>, vector<1x128xf32>
    tpu.vector_store %arg8[%c47, %c0_232], %383 {strides = array<i32>} : memref<64x128xf32, #tpu.memory_space<vmem>>, vector<1x128xf32>,
    %c8_i32_233 = arith.constant 8 : i32
    %385 = arith.muli %arg0, %c8_i32_233 : i32
    %c0_i32_234 = arith.constant 0 : i32
    %386 = arith.addi %385, %c0_i32_234 : i32
    %387 = arith.index_cast %386 : i32 to index
    %c6_235 = arith.constant 6 : index
    %388 = memref.load %arg1[%387, %c6_235] : memref<16x8xi32, #tpu.memory_space<smem>>
    %389 = arith.index_cast %388 : i32 to index
    %c0_236 = arith.constant 0 : index
    %390 = vector.load %arg2[%389, %c0_236] : memref<20x128xf32, #tpu.memory_space<vmem>>, vector<1x128xf32>
    %391 = arith.addf %390, %0 : vector<1x128xf32>
    %c48 = arith.constant 48 : index
    %c0_237 = arith.constant 0 : index
    %392 = vector.load %arg8[%c48, %c0_237] : memref<64x128xf32, #tpu.memory_space<vmem>>, vector<1x128xf32>
    tpu.vector_store %arg8[%c48, %c0_237], %391 {strides = array<i32>} : memref<64x128xf32, #tpu.memory_space<vmem>>, vector<1x128xf32>,
    %c8_i32_238 = arith.constant 8 : i32
    %393 = arith.muli %arg0, %c8_i32_238 : i32
    %c1_i32_239 = arith.constant 1 : i32
    %394 = arith.addi %393, %c1_i32_239 : i32
    %395 = arith.index_cast %394 : i32 to index
    %c6_240 = arith.constant 6 : index
    %396 = memref.load %arg1[%395, %c6_240] : memref<16x8xi32, #tpu.memory_space<smem>>
    %397 = arith.index_cast %396 : i32 to index
    %c0_241 = arith.constant 0 : index
    %398 = vector.load %arg2[%397, %c0_241] : memref<20x128xf32, #tpu.memory_space<vmem>>, vector<1x128xf32>
    %399 = arith.addf %398, %0 : vector<1x128xf32>
    %c49 = arith.constant 49 : index
    %c0_242 = arith.constant 0 : index
    %400 = vector.load %arg8[%c49, %c0_242] : memref<64x128xf32, #tpu.memory_space<vmem>>, vector<1x128xf32>
    tpu.vector_store %arg8[%c49, %c0_242], %399 {strides = array<i32>} : memref<64x128xf32, #tpu.memory_space<vmem>>, vector<1x128xf32>,
    %c8_i32_243 = arith.constant 8 : i32
    %401 = arith.muli %arg0, %c8_i32_243 : i32
    %c2_i32_244 = arith.constant 2 : i32
    %402 = arith.addi %401, %c2_i32_244 : i32
    %403 = arith.index_cast %402 : i32 to index
    %c6_245 = arith.constant 6 : index
    %404 = memref.load %arg1[%403, %c6_245] : memref<16x8xi32, #tpu.memory_space<smem>>
    %405 = arith.index_cast %404 : i32 to index
    %c0_246 = arith.constant 0 : index
    %406 = vector.load %arg2[%405, %c0_246] : memref<20x128xf32, #tpu.memory_space<vmem>>, vector<1x128xf32>
    %407 = arith.addf %406, %0 : vector<1x128xf32>
    %c50 = arith.constant 50 : index
    %c0_247 = arith.constant 0 : index
    %408 = vector.load %arg8[%c50, %c0_247] : memref<64x128xf32, #tpu.memory_space<vmem>>, vector<1x128xf32>
    tpu.vector_store %arg8[%c50, %c0_247], %407 {strides = array<i32>} : memref<64x128xf32, #tpu.memory_space<vmem>>, vector<1x128xf32>,
    %c8_i32_248 = arith.constant 8 : i32
    %409 = arith.muli %arg0, %c8_i32_248 : i32
    %c3_i32_249 = arith.constant 3 : i32
    %410 = arith.addi %409, %c3_i32_249 : i32
    %411 = arith.index_cast %410 : i32 to index
    %c6_250 = arith.constant 6 : index
    %412 = memref.load %arg1[%411, %c6_250] : memref<16x8xi32, #tpu.memory_space<smem>>
    %413 = arith.index_cast %412 : i32 to index
    %c0_251 = arith.constant 0 : index
    %414 = vector.load %arg2[%413, %c0_251] : memref<20x128xf32, #tpu.memory_space<vmem>>, vector<1x128xf32>
    %415 = arith.addf %414, %0 : vector<1x128xf32>
    %c51 = arith.constant 51 : index
    %c0_252 = arith.constant 0 : index
    %416 = vector.load %arg8[%c51, %c0_252] : memref<64x128xf32, #tpu.memory_space<vmem>>, vector<1x128xf32>
    tpu.vector_store %arg8[%c51, %c0_252], %415 {strides = array<i32>} : memref<64x128xf32, #tpu.memory_space<vmem>>, vector<1x128xf32>,
    %c8_i32_253 = arith.constant 8 : i32
    %417 = arith.muli %arg0, %c8_i32_253 : i32
    %c4_i32_254 = arith.constant 4 : i32
    %418 = arith.addi %417, %c4_i32_254 : i32
    %419 = arith.index_cast %418 : i32 to index
    %c6_255 = arith.constant 6 : index
    %420 = memref.load %arg1[%419, %c6_255] : memref<16x8xi32, #tpu.memory_space<smem>>
    %421 = arith.index_cast %420 : i32 to index
    %c0_256 = arith.constant 0 : index
    %422 = vector.load %arg2[%421, %c0_256] : memref<20x128xf32, #tpu.memory_space<vmem>>, vector<1x128xf32>
    %423 = arith.addf %422, %0 : vector<1x128xf32>
    %c52 = arith.constant 52 : index
    %c0_257 = arith.constant 0 : index
    %424 = vector.load %arg8[%c52, %c0_257] : memref<64x128xf32, #tpu.memory_space<vmem>>, vector<1x128xf32>
    tpu.vector_store %arg8[%c52, %c0_257], %423 {strides = array<i32>} : memref<64x128xf32, #tpu.memory_space<vmem>>, vector<1x128xf32>,
    %c8_i32_258 = arith.constant 8 : i32
    %425 = arith.muli %arg0, %c8_i32_258 : i32
    %c5_i32_259 = arith.constant 5 : i32
    %426 = arith.addi %425, %c5_i32_259 : i32
    %427 = arith.index_cast %426 : i32 to index
    %c6_260 = arith.constant 6 : index
    %428 = memref.load %arg1[%427, %c6_260] : memref<16x8xi32, #tpu.memory_space<smem>>
    %429 = arith.index_cast %428 : i32 to index
    %c0_261 = arith.constant 0 : index
    %430 = vector.load %arg2[%429, %c0_261] : memref<20x128xf32, #tpu.memory_space<vmem>>, vector<1x128xf32>
    %431 = arith.addf %430, %0 : vector<1x128xf32>
    %c53 = arith.constant 53 : index
    %c0_262 = arith.constant 0 : index
    %432 = vector.load %arg8[%c53, %c0_262] : memref<64x128xf32, #tpu.memory_space<vmem>>, vector<1x128xf32>
    tpu.vector_store %arg8[%c53, %c0_262], %431 {strides = array<i32>} : memref<64x128xf32, #tpu.memory_space<vmem>>, vector<1x128xf32>,
    %c8_i32_263 = arith.constant 8 : i32
    %433 = arith.muli %arg0, %c8_i32_263 : i32
    %c6_i32_264 = arith.constant 6 : i32
    %434 = arith.addi %433, %c6_i32_264 : i32
    %435 = arith.index_cast %434 : i32 to index
    %c6_265 = arith.constant 6 : index
    %436 = memref.load %arg1[%435, %c6_265] : memref<16x8xi32, #tpu.memory_space<smem>>
    %437 = arith.index_cast %436 : i32 to index
    %c0_266 = arith.constant 0 : index
    %438 = vector.load %arg2[%437, %c0_266] : memref<20x128xf32, #tpu.memory_space<vmem>>, vector<1x128xf32>
    %439 = arith.addf %438, %0 : vector<1x128xf32>
    %c54 = arith.constant 54 : index
    %c0_267 = arith.constant 0 : index
    %440 = vector.load %arg8[%c54, %c0_267] : memref<64x128xf32, #tpu.memory_space<vmem>>, vector<1x128xf32>
    tpu.vector_store %arg8[%c54, %c0_267], %439 {strides = array<i32>} : memref<64x128xf32, #tpu.memory_space<vmem>>, vector<1x128xf32>,
    %c8_i32_268 = arith.constant 8 : i32
    %441 = arith.muli %arg0, %c8_i32_268 : i32
    %c7_i32_269 = arith.constant 7 : i32
    %442 = arith.addi %441, %c7_i32_269 : i32
    %443 = arith.index_cast %442 : i32 to index
    %c6_270 = arith.constant 6 : index
    %444 = memref.load %arg1[%443, %c6_270] : memref<16x8xi32, #tpu.memory_space<smem>>
    %445 = arith.index_cast %444 : i32 to index
    %c0_271 = arith.constant 0 : index
    %446 = vector.load %arg2[%445, %c0_271] : memref<20x128xf32, #tpu.memory_space<vmem>>, vector<1x128xf32>
    %447 = arith.addf %446, %0 : vector<1x128xf32>
    %c55 = arith.constant 55 : index
    %c0_272 = arith.constant 0 : index
    %448 = vector.load %arg8[%c55, %c0_272] : memref<64x128xf32, #tpu.memory_space<vmem>>, vector<1x128xf32>
    tpu.vector_store %arg8[%c55, %c0_272], %447 {strides = array<i32>} : memref<64x128xf32, #tpu.memory_space<vmem>>, vector<1x128xf32>,
    %c8_i32_273 = arith.constant 8 : i32
    %449 = arith.muli %arg0, %c8_i32_273 : i32
    %c0_i32_274 = arith.constant 0 : i32
    %450 = arith.addi %449, %c0_i32_274 : i32
    %451 = arith.index_cast %450 : i32 to index
    %c7_275 = arith.constant 7 : index
    %452 = memref.load %arg1[%451, %c7_275] : memref<16x8xi32, #tpu.memory_space<smem>>
    %453 = arith.index_cast %452 : i32 to index
    %c0_276 = arith.constant 0 : index
    %454 = vector.load %arg2[%453, %c0_276] : memref<20x128xf32, #tpu.memory_space<vmem>>, vector<1x128xf32>
    %455 = arith.addf %454, %0 : vector<1x128xf32>
    %c56 = arith.constant 56 : index
    %c0_277 = arith.constant 0 : index
    %456 = vector.load %arg8[%c56, %c0_277] : memref<64x128xf32, #tpu.memory_space<vmem>>, vector<1x128xf32>
    tpu.vector_store %arg8[%c56, %c0_277], %455 {strides = array<i32>} : memref<64x128xf32, #tpu.memory_space<vmem>>, vector<1x128xf32>,
    %c8_i32_278 = arith.constant 8 : i32
    %457 = arith.muli %arg0, %c8_i32_278 : i32
    %c1_i32_279 = arith.constant 1 : i32
    %458 = arith.addi %457, %c1_i32_279 : i32
    %459 = arith.index_cast %458 : i32 to index
    %c7_280 = arith.constant 7 : index
    %460 = memref.load %arg1[%459, %c7_280] : memref<16x8xi32, #tpu.memory_space<smem>>
    %461 = arith.index_cast %460 : i32 to index
    %c0_281 = arith.constant 0 : index
    %462 = vector.load %arg2[%461, %c0_281] : memref<20x128xf32, #tpu.memory_space<vmem>>, vector<1x128xf32>
    %463 = arith.addf %462, %0 : vector<1x128xf32>
    %c57 = arith.constant 57 : index
    %c0_282 = arith.constant 0 : index
    %464 = vector.load %arg8[%c57, %c0_282] : memref<64x128xf32, #tpu.memory_space<vmem>>, vector<1x128xf32>
    tpu.vector_store %arg8[%c57, %c0_282], %463 {strides = array<i32>} : memref<64x128xf32, #tpu.memory_space<vmem>>, vector<1x128xf32>,
    %c8_i32_283 = arith.constant 8 : i32
    %465 = arith.muli %arg0, %c8_i32_283 : i32
    %c2_i32_284 = arith.constant 2 : i32
    %466 = arith.addi %465, %c2_i32_284 : i32
    %467 = arith.index_cast %466 : i32 to index
    %c7_285 = arith.constant 7 : index
    %468 = memref.load %arg1[%467, %c7_285] : memref<16x8xi32, #tpu.memory_space<smem>>
    %469 = arith.index_cast %468 : i32 to index
    %c0_286 = arith.constant 0 : index
    %470 = vector.load %arg2[%469, %c0_286] : memref<20x128xf32, #tpu.memory_space<vmem>>, vector<1x128xf32>
    %471 = arith.addf %470, %0 : vector<1x128xf32>
    %c58 = arith.constant 58 : index
    %c0_287 = arith.constant 0 : index
    %472 = vector.load %arg8[%c58, %c0_287] : memref<64x128xf32, #tpu.memory_space<vmem>>, vector<1x128xf32>
    tpu.vector_store %arg8[%c58, %c0_287], %471 {strides = array<i32>} : memref<64x128xf32, #tpu.memory_space<vmem>>, vector<1x128xf32>,
    %c8_i32_288 = arith.constant 8 : i32
    %473 = arith.muli %arg0, %c8_i32_288 : i32
    %c3_i32_289 = arith.constant 3 : i32
    %474 = arith.addi %473, %c3_i32_289 : i32
    %475 = arith.index_cast %474 : i32 to index
    %c7_290 = arith.constant 7 : index
    %476 = memref.load %arg1[%475, %c7_290] : memref<16x8xi32, #tpu.memory_space<smem>>
    %477 = arith.index_cast %476 : i32 to index
    %c0_291 = arith.constant 0 : index
    %478 = vector.load %arg2[%477, %c0_291] : memref<20x128xf32, #tpu.memory_space<vmem>>, vector<1x128xf32>
    %479 = arith.addf %478, %0 : vector<1x128xf32>
    %c59 = arith.constant 59 : index
    %c0_292 = arith.constant 0 : index
    %480 = vector.load %arg8[%c59, %c0_292] : memref<64x128xf32, #tpu.memory_space<vmem>>, vector<1x128xf32>
    tpu.vector_store %arg8[%c59, %c0_292], %479 {strides = array<i32>} : memref<64x128xf32, #tpu.memory_space<vmem>>, vector<1x128xf32>,
    %c8_i32_293 = arith.constant 8 : i32
    %481 = arith.muli %arg0, %c8_i32_293 : i32
    %c4_i32_294 = arith.constant 4 : i32
    %482 = arith.addi %481, %c4_i32_294 : i32
    %483 = arith.index_cast %482 : i32 to index
    %c7_295 = arith.constant 7 : index
    %484 = memref.load %arg1[%483, %c7_295] : memref<16x8xi32, #tpu.memory_space<smem>>
    %485 = arith.index_cast %484 : i32 to index
    %c0_296 = arith.constant 0 : index
    %486 = vector.load %arg2[%485, %c0_296] : memref<20x128xf32, #tpu.memory_space<vmem>>, vector<1x128xf32>
    %487 = arith.addf %486, %0 : vector<1x128xf32>
    %c60 = arith.constant 60 : index
    %c0_297 = arith.constant 0 : index
    %488 = vector.load %arg8[%c60, %c0_297] : memref<64x128xf32, #tpu.memory_space<vmem>>, vector<1x128xf32>
    tpu.vector_store %arg8[%c60, %c0_297], %487 {strides = array<i32>} : memref<64x128xf32, #tpu.memory_space<vmem>>, vector<1x128xf32>,
    %c8_i32_298 = arith.constant 8 : i32
    %489 = arith.muli %arg0, %c8_i32_298 : i32
    %c5_i32_299 = arith.constant 5 : i32
    %490 = arith.addi %489, %c5_i32_299 : i32
    %491 = arith.index_cast %490 : i32 to index
    %c7_300 = arith.constant 7 : index
    %492 = memref.load %arg1[%491, %c7_300] : memref<16x8xi32, #tpu.memory_space<smem>>
    %493 = arith.index_cast %492 : i32 to index
    %c0_301 = arith.constant 0 : index
    %494 = vector.load %arg2[%493, %c0_301] : memref<20x128xf32, #tpu.memory_space<vmem>>, vector<1x128xf32>
    %495 = arith.addf %494, %0 : vector<1x128xf32>
    %c61 = arith.constant 61 : index
    %c0_302 = arith.constant 0 : index
    %496 = vector.load %arg8[%c61, %c0_302] : memref<64x128xf32, #tpu.memory_space<vmem>>, vector<1x128xf32>
    tpu.vector_store %arg8[%c61, %c0_302], %495 {strides = array<i32>} : memref<64x128xf32, #tpu.memory_space<vmem>>, vector<1x128xf32>,
    %c8_i32_303 = arith.constant 8 : i32
    %497 = arith.muli %arg0, %c8_i32_303 : i32
    %c6_i32_304 = arith.constant 6 : i32
    %498 = arith.addi %497, %c6_i32_304 : i32
    %499 = arith.index_cast %498 : i32 to index
    %c7_305 = arith.constant 7 : index
    %500 = memref.load %arg1[%499, %c7_305] : memref<16x8xi32, #tpu.memory_space<smem>>
    %501 = arith.index_cast %500 : i32 to index
    %c0_306 = arith.constant 0 : index
    %502 = vector.load %arg2[%501, %c0_306] : memref<20x128xf32, #tpu.memory_space<vmem>>, vector<1x128xf32>
    %503 = arith.addf %502, %0 : vector<1x128xf32>
    %c62 = arith.constant 62 : index
    %c0_307 = arith.constant 0 : index
    %504 = vector.load %arg8[%c62, %c0_307] : memref<64x128xf32, #tpu.memory_space<vmem>>, vector<1x128xf32>
    tpu.vector_store %arg8[%c62, %c0_307], %503 {strides = array<i32>} : memref<64x128xf32, #tpu.memory_space<vmem>>, vector<1x128xf32>,
    %c8_i32_308 = arith.constant 8 : i32
    %505 = arith.muli %arg0, %c8_i32_308 : i32
    %c7_i32_309 = arith.constant 7 : i32
    %506 = arith.addi %505, %c7_i32_309 : i32
    %507 = arith.index_cast %506 : i32 to index
    %c7_310 = arith.constant 7 : index
    %508 = memref.load %arg1[%507, %c7_310] : memref<16x8xi32, #tpu.memory_space<smem>>
    %509 = arith.index_cast %508 : i32 to index
    %c0_311 = arith.constant 0 : index
    %510 = vector.load %arg2[%509, %c0_311] : memref<20x128xf32, #tpu.memory_space<vmem>>, vector<1x128xf32>
    %511 = arith.addf %510, %0 : vector<1x128xf32>
    %c63 = arith.constant 63 : index
    %c0_312 = arith.constant 0 : index
    %512 = vector.load %arg8[%c63, %c0_312] : memref<64x128xf32, #tpu.memory_space<vmem>>, vector<1x128xf32>
    tpu.vector_store %arg8[%c63, %c0_312], %511 {strides = array<i32>} : memref<64x128xf32, #tpu.memory_space<vmem>>, vector<1x128xf32>,
    %c0_313 = arith.constant 0 : index
    %c0_314 = arith.constant 0 : index
    %513 = vector.load %arg3[%c0_313, %c0_314] : memref<32x128xf32, #tpu.memory_space<vmem>>, vector<32x128xf32>
    %cst = arith.constant 0.000000e+00 : f32
    %514 = vector.broadcast %cst : f32 to vector<8x32xf32>
    %cst_315 = arith.constant 0.000000e+00 : f32
    %515 = vector.broadcast %cst_315 : f32 to vector<8x32xf32>
    %c0_316 = arith.constant 0 : index
    %c0_317 = arith.constant 0 : index
    %516 = vector.load %arg8[%c0_316, %c0_317] : memref<64x128xf32, #tpu.memory_space<vmem>>, vector<8x128xf32>
    %cst_318 = arith.constant dense<0.000000e+00> : vector<8x128xf32>
    %517 = tpu.matmul %514, %513, %cst_318 {dimension_numbers = #tpu.dot_dimension_numbers<[1], [0], [0], [1], [0, 0, 1, 1], [], []>} : vector<8x32xf32>, vector<32x128xf32>, vector<8x128xf32> -> vector<8x128xf32>
    %518 = arith.addf %516, %517 : vector<8x128xf32>
    %519 = math.tanh %518 : vector<8x128xf32>
    %520 = vector.extract_strided_slice %519 {offsets = [0, 0], sizes = [8, 32], strides = [1, 1]} : vector<8x128xf32> to vector<8x32xf32>
    %cst_319 = arith.constant 5.000000e-01 : f32
    %521 = vector.broadcast %cst_319 : f32 to vector<8x32xf32>
    %522 = arith.mulf %521, %520 : vector<8x32xf32>
    %cst_320 = arith.constant 5.000000e-01 : f32
    %523 = vector.broadcast %cst_320 : f32 to vector<8x32xf32>
    %524 = arith.addf %522, %523 : vector<8x32xf32>
    %525 = vector.extract_strided_slice %519 {offsets = [0, 32], sizes = [8, 32], strides = [1, 1]} : vector<8x128xf32> to vector<8x32xf32>
    %cst_321 = arith.constant 5.000000e-01 : f32
    %526 = vector.broadcast %cst_321 : f32 to vector<8x32xf32>
    %527 = arith.mulf %526, %525 : vector<8x32xf32>
    %cst_322 = arith.constant 5.000000e-01 : f32
    %528 = vector.broadcast %cst_322 : f32 to vector<8x32xf32>
    %529 = arith.addf %527, %528 : vector<8x32xf32>
    %530 = vector.extract_strided_slice %519 {offsets = [0, 64], sizes = [8, 32], strides = [1, 1]} : vector<8x128xf32> to vector<8x32xf32>
    %531 = vector.extract_strided_slice %519 {offsets = [0, 96], sizes = [8, 32], strides = [1, 1]} : vector<8x128xf32> to vector<8x32xf32>
    %cst_323 = arith.constant 5.000000e-01 : f32
    %532 = vector.broadcast %cst_323 : f32 to vector<8x32xf32>
    %533 = arith.mulf %532, %531 : vector<8x32xf32>
    %cst_324 = arith.constant 5.000000e-01 : f32
    %534 = vector.broadcast %cst_324 : f32 to vector<8x32xf32>
    %535 = arith.addf %533, %534 : vector<8x32xf32>
    %536 = arith.mulf %529, %515 : vector<8x32xf32>
    %537 = arith.mulf %524, %530 : vector<8x32xf32>
    %538 = arith.addf %536, %537 : vector<8x32xf32>
    %539 = math.tanh %538 : vector<8x32xf32>
    %540 = arith.mulf %535, %539 : vector<8x32xf32>
    %c8_325 = arith.constant 8 : index
    %c0_326 = arith.constant 0 : index
    %541 = vector.load %arg8[%c8_325, %c0_326] : memref<64x128xf32, #tpu.memory_space<vmem>>, vector<8x128xf32>
    %cst_327 = arith.constant dense<0.000000e+00> : vector<8x128xf32>
    %542 = tpu.matmul %540, %513, %cst_327 {dimension_numbers = #tpu.dot_dimension_numbers<[1], [0], [0], [1], [0, 0, 1, 1], [], []>} : vector<8x32xf32>, vector<32x128xf32>, vector<8x128xf32> -> vector<8x128xf32>
    %543 = arith.addf %541, %542 : vector<8x128xf32>
    %544 = math.tanh %543 : vector<8x128xf32>
    %545 = vector.extract_strided_slice %544 {offsets = [0, 0], sizes = [8, 32], strides = [1, 1]} : vector<8x128xf32> to vector<8x32xf32>
    %cst_328 = arith.constant 5.000000e-01 : f32
    %546 = vector.broadcast %cst_328 : f32 to vector<8x32xf32>
    %547 = arith.mulf %546, %545 : vector<8x32xf32>
    %cst_329 = arith.constant 5.000000e-01 : f32
    %548 = vector.broadcast %cst_329 : f32 to vector<8x32xf32>
    %549 = arith.addf %547, %548 : vector<8x32xf32>
    %550 = vector.extract_strided_slice %544 {offsets = [0, 32], sizes = [8, 32], strides = [1, 1]} : vector<8x128xf32> to vector<8x32xf32>
    %cst_330 = arith.constant 5.000000e-01 : f32
    %551 = vector.broadcast %cst_330 : f32 to vector<8x32xf32>
    %552 = arith.mulf %551, %550 : vector<8x32xf32>
    %cst_331 = arith.constant 5.000000e-01 : f32
    %553 = vector.broadcast %cst_331 : f32 to vector<8x32xf32>
    %554 = arith.addf %552, %553 : vector<8x32xf32>
    %555 = vector.extract_strided_slice %544 {offsets = [0, 64], sizes = [8, 32], strides = [1, 1]} : vector<8x128xf32> to vector<8x32xf32>
    %556 = vector.extract_strided_slice %544 {offsets = [0, 96], sizes = [8, 32], strides = [1, 1]} : vector<8x128xf32> to vector<8x32xf32>
    %cst_332 = arith.constant 5.000000e-01 : f32
    %557 = vector.broadcast %cst_332 : f32 to vector<8x32xf32>
    %558 = arith.mulf %557, %556 : vector<8x32xf32>
    %cst_333 = arith.constant 5.000000e-01 : f32
    %559 = vector.broadcast %cst_333 : f32 to vector<8x32xf32>
    %560 = arith.addf %558, %559 : vector<8x32xf32>
    %561 = arith.mulf %554, %538 : vector<8x32xf32>
    %562 = arith.mulf %549, %555 : vector<8x32xf32>
    %563 = arith.addf %561, %562 : vector<8x32xf32>
    %564 = math.tanh %563 : vector<8x32xf32>
    %565 = arith.mulf %560, %564 : vector<8x32xf32>
    %c16_334 = arith.constant 16 : index
    %c0_335 = arith.constant 0 : index
    %566 = vector.load %arg8[%c16_334, %c0_335] : memref<64x128xf32, #tpu.memory_space<vmem>>, vector<8x128xf32>
    %cst_336 = arith.constant dense<0.000000e+00> : vector<8x128xf32>
    %567 = tpu.matmul %565, %513, %cst_336 {dimension_numbers = #tpu.dot_dimension_numbers<[1], [0], [0], [1], [0, 0, 1, 1], [], []>} : vector<8x32xf32>, vector<32x128xf32>, vector<8x128xf32> -> vector<8x128xf32>
    %568 = arith.addf %566, %567 : vector<8x128xf32>
    %569 = math.tanh %568 : vector<8x128xf32>
    %570 = vector.extract_strided_slice %569 {offsets = [0, 0], sizes = [8, 32], strides = [1, 1]} : vector<8x128xf32> to vector<8x32xf32>
    %cst_337 = arith.constant 5.000000e-01 : f32
    %571 = vector.broadcast %cst_337 : f32 to vector<8x32xf32>
    %572 = arith.mulf %571, %570 : vector<8x32xf32>
    %cst_338 = arith.constant 5.000000e-01 : f32
    %573 = vector.broadcast %cst_338 : f32 to vector<8x32xf32>
    %574 = arith.addf %572, %573 : vector<8x32xf32>
    %575 = vector.extract_strided_slice %569 {offsets = [0, 32], sizes = [8, 32], strides = [1, 1]} : vector<8x128xf32> to vector<8x32xf32>
    %cst_339 = arith.constant 5.000000e-01 : f32
    %576 = vector.broadcast %cst_339 : f32 to vector<8x32xf32>
    %577 = arith.mulf %576, %575 : vector<8x32xf32>
    %cst_340 = arith.constant 5.000000e-01 : f32
    %578 = vector.broadcast %cst_340 : f32 to vector<8x32xf32>
    %579 = arith.addf %577, %578 : vector<8x32xf32>
    %580 = vector.extract_strided_slice %569 {offsets = [0, 64], sizes = [8, 32], strides = [1, 1]} : vector<8x128xf32> to vector<8x32xf32>
    %581 = vector.extract_strided_slice %569 {offsets = [0, 96], sizes = [8, 32], strides = [1, 1]} : vector<8x128xf32> to vector<8x32xf32>
    %cst_341 = arith.constant 5.000000e-01 : f32
    %582 = vector.broadcast %cst_341 : f32 to vector<8x32xf32>
    %583 = arith.mulf %582, %581 : vector<8x32xf32>
    %cst_342 = arith.constant 5.000000e-01 : f32
    %584 = vector.broadcast %cst_342 : f32 to vector<8x32xf32>
    %585 = arith.addf %583, %584 : vector<8x32xf32>
    %586 = arith.mulf %579, %563 : vector<8x32xf32>
    %587 = arith.mulf %574, %580 : vector<8x32xf32>
    %588 = arith.addf %586, %587 : vector<8x32xf32>
    %589 = math.tanh %588 : vector<8x32xf32>
    %590 = arith.mulf %585, %589 : vector<8x32xf32>
    %c24_343 = arith.constant 24 : index
    %c0_344 = arith.constant 0 : index
    %591 = vector.load %arg8[%c24_343, %c0_344] : memref<64x128xf32, #tpu.memory_space<vmem>>, vector<8x128xf32>
    %cst_345 = arith.constant dense<0.000000e+00> : vector<8x128xf32>
    %592 = tpu.matmul %590, %513, %cst_345 {dimension_numbers = #tpu.dot_dimension_numbers<[1], [0], [0], [1], [0, 0, 1, 1], [], []>} : vector<8x32xf32>, vector<32x128xf32>, vector<8x128xf32> -> vector<8x128xf32>
    %593 = arith.addf %591, %592 : vector<8x128xf32>
    %594 = math.tanh %593 : vector<8x128xf32>
    %595 = vector.extract_strided_slice %594 {offsets = [0, 0], sizes = [8, 32], strides = [1, 1]} : vector<8x128xf32> to vector<8x32xf32>
    %cst_346 = arith.constant 5.000000e-01 : f32
    %596 = vector.broadcast %cst_346 : f32 to vector<8x32xf32>
    %597 = arith.mulf %596, %595 : vector<8x32xf32>
    %cst_347 = arith.constant 5.000000e-01 : f32
    %598 = vector.broadcast %cst_347 : f32 to vector<8x32xf32>
    %599 = arith.addf %597, %598 : vector<8x32xf32>
    %600 = vector.extract_strided_slice %594 {offsets = [0, 32], sizes = [8, 32], strides = [1, 1]} : vector<8x128xf32> to vector<8x32xf32>
    %cst_348 = arith.constant 5.000000e-01 : f32
    %601 = vector.broadcast %cst_348 : f32 to vector<8x32xf32>
    %602 = arith.mulf %601, %600 : vector<8x32xf32>
    %cst_349 = arith.constant 5.000000e-01 : f32
    %603 = vector.broadcast %cst_349 : f32 to vector<8x32xf32>
    %604 = arith.addf %602, %603 : vector<8x32xf32>
    %605 = vector.extract_strided_slice %594 {offsets = [0, 64], sizes = [8, 32], strides = [1, 1]} : vector<8x128xf32> to vector<8x32xf32>
    %606 = vector.extract_strided_slice %594 {offsets = [0, 96], sizes = [8, 32], strides = [1, 1]} : vector<8x128xf32> to vector<8x32xf32>
    %cst_350 = arith.constant 5.000000e-01 : f32
    %607 = vector.broadcast %cst_350 : f32 to vector<8x32xf32>
    %608 = arith.mulf %607, %606 : vector<8x32xf32>
    %cst_351 = arith.constant 5.000000e-01 : f32
    %609 = vector.broadcast %cst_351 : f32 to vector<8x32xf32>
    %610 = arith.addf %608, %609 : vector<8x32xf32>
    %611 = arith.mulf %604, %588 : vector<8x32xf32>
    %612 = arith.mulf %599, %605 : vector<8x32xf32>
    %613 = arith.addf %611, %612 : vector<8x32xf32>
    %614 = math.tanh %613 : vector<8x32xf32>
    %615 = arith.mulf %610, %614 : vector<8x32xf32>
    %c32_352 = arith.constant 32 : index
    %c0_353 = arith.constant 0 : index
    %616 = vector.load %arg8[%c32_352, %c0_353] : memref<64x128xf32, #tpu.memory_space<vmem>>, vector<8x128xf32>
    %cst_354 = arith.constant dense<0.000000e+00> : vector<8x128xf32>
    %617 = tpu.matmul %615, %513, %cst_354 {dimension_numbers = #tpu.dot_dimension_numbers<[1], [0], [0], [1], [0, 0, 1, 1], [], []>} : vector<8x32xf32>, vector<32x128xf32>, vector<8x128xf32> -> vector<8x128xf32>
    %618 = arith.addf %616, %617 : vector<8x128xf32>
    %619 = math.tanh %618 : vector<8x128xf32>
    %620 = vector.extract_strided_slice %619 {offsets = [0, 0], sizes = [8, 32], strides = [1, 1]} : vector<8x128xf32> to vector<8x32xf32>
    %cst_355 = arith.constant 5.000000e-01 : f32
    %621 = vector.broadcast %cst_355 : f32 to vector<8x32xf32>
    %622 = arith.mulf %621, %620 : vector<8x32xf32>
    %cst_356 = arith.constant 5.000000e-01 : f32
    %623 = vector.broadcast %cst_356 : f32 to vector<8x32xf32>
    %624 = arith.addf %622, %623 : vector<8x32xf32>
    %625 = vector.extract_strided_slice %619 {offsets = [0, 32], sizes = [8, 32], strides = [1, 1]} : vector<8x128xf32> to vector<8x32xf32>
    %cst_357 = arith.constant 5.000000e-01 : f32
    %626 = vector.broadcast %cst_357 : f32 to vector<8x32xf32>
    %627 = arith.mulf %626, %625 : vector<8x32xf32>
    %cst_358 = arith.constant 5.000000e-01 : f32
    %628 = vector.broadcast %cst_358 : f32 to vector<8x32xf32>
    %629 = arith.addf %627, %628 : vector<8x32xf32>
    %630 = vector.extract_strided_slice %619 {offsets = [0, 64], sizes = [8, 32], strides = [1, 1]} : vector<8x128xf32> to vector<8x32xf32>
    %631 = vector.extract_strided_slice %619 {offsets = [0, 96], sizes = [8, 32], strides = [1, 1]} : vector<8x128xf32> to vector<8x32xf32>
    %cst_359 = arith.constant 5.000000e-01 : f32
    %632 = vector.broadcast %cst_359 : f32 to vector<8x32xf32>
    %633 = arith.mulf %632, %631 : vector<8x32xf32>
    %cst_360 = arith.constant 5.000000e-01 : f32
    %634 = vector.broadcast %cst_360 : f32 to vector<8x32xf32>
    %635 = arith.addf %633, %634 : vector<8x32xf32>
    %636 = arith.mulf %629, %613 : vector<8x32xf32>
    %637 = arith.mulf %624, %630 : vector<8x32xf32>
    %638 = arith.addf %636, %637 : vector<8x32xf32>
    %639 = math.tanh %638 : vector<8x32xf32>
    %640 = arith.mulf %635, %639 : vector<8x32xf32>
    %c40_361 = arith.constant 40 : index
    %c0_362 = arith.constant 0 : index
    %641 = vector.load %arg8[%c40_361, %c0_362] : memref<64x128xf32, #tpu.memory_space<vmem>>, vector<8x128xf32>
    %cst_363 = arith.constant dense<0.000000e+00> : vector<8x128xf32>
    %642 = tpu.matmul %640, %513, %cst_363 {dimension_numbers = #tpu.dot_dimension_numbers<[1], [0], [0], [1], [0, 0, 1, 1], [], []>} : vector<8x32xf32>, vector<32x128xf32>, vector<8x128xf32> -> vector<8x128xf32>
    %643 = arith.addf %641, %642 : vector<8x128xf32>
    %644 = math.tanh %643 : vector<8x128xf32>
    %645 = vector.extract_strided_slice %644 {offsets = [0, 0], sizes = [8, 32], strides = [1, 1]} : vector<8x128xf32> to vector<8x32xf32>
    %cst_364 = arith.constant 5.000000e-01 : f32
    %646 = vector.broadcast %cst_364 : f32 to vector<8x32xf32>
    %647 = arith.mulf %646, %645 : vector<8x32xf32>
    %cst_365 = arith.constant 5.000000e-01 : f32
    %648 = vector.broadcast %cst_365 : f32 to vector<8x32xf32>
    %649 = arith.addf %647, %648 : vector<8x32xf32>
    %650 = vector.extract_strided_slice %644 {offsets = [0, 32], sizes = [8, 32], strides = [1, 1]} : vector<8x128xf32> to vector<8x32xf32>
    %cst_366 = arith.constant 5.000000e-01 : f32
    %651 = vector.broadcast %cst_366 : f32 to vector<8x32xf32>
    %652 = arith.mulf %651, %650 : vector<8x32xf32>
    %cst_367 = arith.constant 5.000000e-01 : f32
    %653 = vector.broadcast %cst_367 : f32 to vector<8x32xf32>
    %654 = arith.addf %652, %653 : vector<8x32xf32>
    %655 = vector.extract_strided_slice %644 {offsets = [0, 64], sizes = [8, 32], strides = [1, 1]} : vector<8x128xf32> to vector<8x32xf32>
    %656 = vector.extract_strided_slice %644 {offsets = [0, 96], sizes = [8, 32], strides = [1, 1]} : vector<8x128xf32> to vector<8x32xf32>
    %cst_368 = arith.constant 5.000000e-01 : f32
    %657 = vector.broadcast %cst_368 : f32 to vector<8x32xf32>
    %658 = arith.mulf %657, %656 : vector<8x32xf32>
    %cst_369 = arith.constant 5.000000e-01 : f32
    %659 = vector.broadcast %cst_369 : f32 to vector<8x32xf32>
    %660 = arith.addf %658, %659 : vector<8x32xf32>
    %661 = arith.mulf %654, %638 : vector<8x32xf32>
    %662 = arith.mulf %649, %655 : vector<8x32xf32>
    %663 = arith.addf %661, %662 : vector<8x32xf32>
    %664 = math.tanh %663 : vector<8x32xf32>
    %665 = arith.mulf %660, %664 : vector<8x32xf32>
    %c48_370 = arith.constant 48 : index
    %c0_371 = arith.constant 0 : index
    %666 = vector.load %arg8[%c48_370, %c0_371] : memref<64x128xf32, #tpu.memory_space<vmem>>, vector<8x128xf32>
    %cst_372 = arith.constant dense<0.000000e+00> : vector<8x128xf32>
    %667 = tpu.matmul %665, %513, %cst_372 {dimension_numbers = #tpu.dot_dimension_numbers<[1], [0], [0], [1], [0, 0, 1, 1], [], []>} : vector<8x32xf32>, vector<32x128xf32>, vector<8x128xf32> -> vector<8x128xf32>
    %668 = arith.addf %666, %667 : vector<8x128xf32>
    %669 = math.tanh %668 : vector<8x128xf32>
    %670 = vector.extract_strided_slice %669 {offsets = [0, 0], sizes = [8, 32], strides = [1, 1]} : vector<8x128xf32> to vector<8x32xf32>
    %cst_373 = arith.constant 5.000000e-01 : f32
    %671 = vector.broadcast %cst_373 : f32 to vector<8x32xf32>
    %672 = arith.mulf %671, %670 : vector<8x32xf32>
    %cst_374 = arith.constant 5.000000e-01 : f32
    %673 = vector.broadcast %cst_374 : f32 to vector<8x32xf32>
    %674 = arith.addf %672, %673 : vector<8x32xf32>
    %675 = vector.extract_strided_slice %669 {offsets = [0, 32], sizes = [8, 32], strides = [1, 1]} : vector<8x128xf32> to vector<8x32xf32>
    %cst_375 = arith.constant 5.000000e-01 : f32
    %676 = vector.broadcast %cst_375 : f32 to vector<8x32xf32>
    %677 = arith.mulf %676, %675 : vector<8x32xf32>
    %cst_376 = arith.constant 5.000000e-01 : f32
    %678 = vector.broadcast %cst_376 : f32 to vector<8x32xf32>
    %679 = arith.addf %677, %678 : vector<8x32xf32>
    %680 = vector.extract_strided_slice %669 {offsets = [0, 64], sizes = [8, 32], strides = [1, 1]} : vector<8x128xf32> to vector<8x32xf32>
    %681 = vector.extract_strided_slice %669 {offsets = [0, 96], sizes = [8, 32], strides = [1, 1]} : vector<8x128xf32> to vector<8x32xf32>
    %cst_377 = arith.constant 5.000000e-01 : f32
    %682 = vector.broadcast %cst_377 : f32 to vector<8x32xf32>
    %683 = arith.mulf %682, %681 : vector<8x32xf32>
    %cst_378 = arith.constant 5.000000e-01 : f32
    %684 = vector.broadcast %cst_378 : f32 to vector<8x32xf32>
    %685 = arith.addf %683, %684 : vector<8x32xf32>
    %686 = arith.mulf %679, %663 : vector<8x32xf32>
    %687 = arith.mulf %674, %680 : vector<8x32xf32>
    %688 = arith.addf %686, %687 : vector<8x32xf32>
    %689 = math.tanh %688 : vector<8x32xf32>
    %690 = arith.mulf %685, %689 : vector<8x32xf32>
    %c56_379 = arith.constant 56 : index
    %c0_380 = arith.constant 0 : index
    %691 = vector.load %arg8[%c56_379, %c0_380] : memref<64x128xf32, #tpu.memory_space<vmem>>, vector<8x128xf32>
    %cst_381 = arith.constant dense<0.000000e+00> : vector<8x128xf32>
    %692 = tpu.matmul %690, %513, %cst_381 {dimension_numbers = #tpu.dot_dimension_numbers<[1], [0], [0], [1], [0, 0, 1, 1], [], []>} : vector<8x32xf32>, vector<32x128xf32>, vector<8x128xf32> -> vector<8x128xf32>
    %693 = arith.addf %691, %692 : vector<8x128xf32>
    %694 = math.tanh %693 : vector<8x128xf32>
    %695 = vector.extract_strided_slice %694 {offsets = [0, 0], sizes = [8, 32], strides = [1, 1]} : vector<8x128xf32> to vector<8x32xf32>
    %cst_382 = arith.constant 5.000000e-01 : f32
    %696 = vector.broadcast %cst_382 : f32 to vector<8x32xf32>
    %697 = arith.mulf %696, %695 : vector<8x32xf32>
    %cst_383 = arith.constant 5.000000e-01 : f32
    %698 = vector.broadcast %cst_383 : f32 to vector<8x32xf32>
    %699 = arith.addf %697, %698 : vector<8x32xf32>
    %700 = vector.extract_strided_slice %694 {offsets = [0, 32], sizes = [8, 32], strides = [1, 1]} : vector<8x128xf32> to vector<8x32xf32>
    %cst_384 = arith.constant 5.000000e-01 : f32
    %701 = vector.broadcast %cst_384 : f32 to vector<8x32xf32>
    %702 = arith.mulf %701, %700 : vector<8x32xf32>
    %cst_385 = arith.constant 5.000000e-01 : f32
    %703 = vector.broadcast %cst_385 : f32 to vector<8x32xf32>
    %704 = arith.addf %702, %703 : vector<8x32xf32>
    %705 = vector.extract_strided_slice %694 {offsets = [0, 64], sizes = [8, 32], strides = [1, 1]} : vector<8x128xf32> to vector<8x32xf32>
    %706 = vector.extract_strided_slice %694 {offsets = [0, 96], sizes = [8, 32], strides = [1, 1]} : vector<8x128xf32> to vector<8x32xf32>
    %cst_386 = arith.constant 5.000000e-01 : f32
    %707 = vector.broadcast %cst_386 : f32 to vector<8x32xf32>
    %708 = arith.mulf %707, %706 : vector<8x32xf32>
    %cst_387 = arith.constant 5.000000e-01 : f32
    %709 = vector.broadcast %cst_387 : f32 to vector<8x32xf32>
    %710 = arith.addf %708, %709 : vector<8x32xf32>
    %711 = arith.mulf %704, %688 : vector<8x32xf32>
    %712 = arith.mulf %699, %705 : vector<8x32xf32>
    %713 = arith.addf %711, %712 : vector<8x32xf32>
    %714 = math.tanh %713 : vector<8x32xf32>
    %715 = arith.mulf %710, %714 : vector<8x32xf32>
    %c0_388 = arith.constant 0 : index
    %c0_389 = arith.constant 0 : index
    %716 = vector.load %arg5[%c0_388, %c0_389] : memref<32x5xf32, #tpu.memory_space<vmem>>, vector<32x5xf32>
    %cst_390 = arith.constant dense<0.000000e+00> : vector<8x5xf32>
    %717 = tpu.matmul %715, %716, %cst_390 {dimension_numbers = #tpu.dot_dimension_numbers<[1], [0], [0], [1], [0, 0, 1, 1], [], []>} : vector<8x32xf32>, vector<32x5xf32>, vector<8x5xf32> -> vector<8x5xf32>
    %c0_391 = arith.constant 0 : index
    %c0_392 = arith.constant 0 : index
    %718 = vector.load %arg6[%c0_391, %c0_392] : memref<1x5xf32, #tpu.memory_space<vmem>>, vector<1x5xf32>
    %719 = vector.broadcast %718 : vector<1x5xf32> to vector<8x5xf32>
    %720 = arith.addf %717, %719 : vector<8x5xf32>
    %cst_393 = arith.constant dense<0xFF800000> : vector<8xf32>
    %721 = vector.multi_reduction <maximumf>, %720, %cst_393 [1] : vector<8x5xf32> to vector<8xf32>
    %722 = vector.shape_cast %721 : vector<8xf32> to vector<8x1xf32>
    %723 = vector.broadcast %722 : vector<8x1xf32> to vector<8x5xf32>
    %724 = arith.subf %720, %723 : vector<8x5xf32>
    %725 = math.exp %724 : vector<8x5xf32>
    %cst_394 = arith.constant dense<0.000000e+00> : vector<8xf32>
    %726 = vector.multi_reduction <add>, %725, %cst_394 [1] : vector<8x5xf32> to vector<8xf32>
    %727 = vector.shape_cast %726 : vector<8xf32> to vector<8x1xf32>
    %728 = math.log %727 : vector<8x1xf32>
    %729 = arith.addf %728, %722 : vector<8x1xf32>
    %730 = vector.broadcast %729 : vector<8x1xf32> to vector<8x5xf32>
    %731 = arith.subf %720, %730 : vector<8x5xf32>
    %c0_395 = arith.constant 0 : index
    %c0_396 = arith.constant 0 : index
    %732 = vector.load %arg7[%c0_395, %c0_396] : memref<8x5xf32, #tpu.memory_space<vmem>>, vector<8x5xf32>
    tpu.vector_store %arg7[%c0_395, %c0_396], %731 {strides = array<i32>} : memref<8x5xf32, #tpu.memory_space<vmem>>, vector<8x5xf32>,
    return
  }
  func.func @transform_0(%arg0: i32, %arg1: memref<16x8xi32, #tpu.memory_space<smem>>) -> (i32, i32) {
    %c0_i32 = arith.constant 0 : i32
    %c0_i32_0 = arith.constant 0 : i32
    %c0_i32_1 = arith.constant 0 : i32
    return %c0_i32, %c0_i32_0 : i32, i32
  }
  func.func @transform_1(%arg0: i32, %arg1: memref<16x8xi32, #tpu.memory_space<smem>>) -> (i32, i32) {
    %c0_i32 = arith.constant 0 : i32
    %c0_i32_0 = arith.constant 0 : i32
    %c0_i32_1 = arith.constant 0 : i32
    return %c0_i32, %c0_i32_0 : i32, i32
  }
  func.func @transform_2(%arg0: i32, %arg1: memref<16x8xi32, #tpu.memory_space<smem>>) -> (i32, i32) {
    %c0_i32 = arith.constant 0 : i32
    %c0_i32_0 = arith.constant 0 : i32
    %c0_i32_1 = arith.constant 0 : i32
    return %c0_i32, %c0_i32_0 : i32, i32
  }
  func.func @transform_3(%arg0: i32, %arg1: memref<16x8xi32, #tpu.memory_space<smem>>) -> (i32, i32) {
    %c0_i32 = arith.constant 0 : i32
    %c0_i32_0 = arith.constant 0 : i32
    %c0_i32_1 = arith.constant 0 : i32
    return %c0_i32, %c0_i32_0 : i32, i32
  }
  func.func @transform_4(%arg0: i32, %arg1: memref<16x8xi32, #tpu.memory_space<smem>>) -> (i32, i32) {
    %c0_i32 = arith.constant 0 : i32
    %c0_i32_0 = arith.constant 0 : i32
    %c0_i32_1 = arith.constant 0 : i32
    return %c0_i32, %c0_i32_0 : i32, i32
  }
  func.func @transform_5(%arg0: i32, %arg1: memref<16x8xi32, #tpu.memory_space<smem>>) -> (i32, i32) {
    %c0_i32 = arith.constant 0 : i32
    %c0_i32_0 = arith.constant 0 : i32
    return %arg0, %c0_i32 : i32, i32
  }
}

</mosaic_0001>

<llo_original>
// kernel: tpu_custom_call.1
$region0: #{tpu_custom_call.1}
  #allocation0 [shape = 'u32[]', space=smem, size = 0x4, offset = 0x4, fixed_abs, tag = 'smem constant byte address 0x4 - core index']
  #allocation1 [shape = 'u32[144,128]{1,0:T(1,128)}', space=vmem, size = 0x12000, scoped, tag = 'internal scratch']
  #allocation2 [shape = 'f32[64,128]{1,0:T(8,128)}', space=vmem, size = 0x8000, scoped, tag = 'scratch operand']
  #allocation3 [shape = 's32[1]{0}', space=sflag, size = 0x4, scoped, tag = 'scoped memory for tpu_custom_call.1']
  #allocation4 [shape = 'u8[8192]{0}', space=smem, size = 0x2000, scoped, tag = 'prefetched SMEM operand 0']
  %s0 = inlined_call_operand.vmem [shape: s32[16,8], index: 0, kind: input, shape index: {}]
  %s1 = inlined_call_operand.vmem [shape: f32[20,128], index: 1, kind: input, shape index: {}]
  %s2 = inlined_call_operand.vmem [shape: f32[32,128], index: 2, kind: input, shape index: {}]
  %s3 = inlined_call_operand.vmem [shape: f32[1,128], index: 3, kind: input, shape index: {}]
  %s4 = inlined_call_operand.vmem [shape: f32[32,5], index: 4, kind: input, shape index: {}]
  %s5 = inlined_call_operand.vmem [shape: f32[1,5], index: 5, kind: input, shape index: {}]
  %s6 = inlined_call_operand.vmem [shape: f32[16,5], index: 6, kind: output, shape index: {}]
  %s7 = sld [smem:[#allocation0]]
  $region53: #{tpu_custom_call.1} parent=0
    _
  %s9 = ssub.s32 1, %s7
  %s10 = scalar_select 0, %s9, %s7
  %s11 = sshll.u32 %s0, 4
  %s12 = int_to_ptr.vmem [resolvable:$true] %s11
  %14 = dma.vmem_to_smem %s12, 256, [#allocation4], [#allocation3]
  %15 = dma.done [#allocation3], 256
  %16 = sfence
  loop: start=0, step=1, limit=4
  $region2: #{tpu_custom_call.1} parent=0 // loop_pre_header
    _
  $region3: #{tpu_custom_call.1} parent=0 // loop_header
    %s18 = sphi 0, %s22
    %p19 = scmp.ge.s32.totalorder %s18, 4
    %s26 = sphi 0, %s26
    %s28 = sphi 0, %s26
    %s29 = sphi 0, %s28
    %s43 = sphi 0, %s29
    %s47 = sphi 0, %s47
    %s49 = sphi 0, %s47
    %s50 = sphi 0, %s49
    %s64 = sphi 0, %s50
    %s68 = sphi 0, %s68
    %s70 = sphi 0, %s68
    %s71 = sphi 0, %s70
    %s85 = sphi 0, %s71
    %s89 = sphi 0, %s89
    %s91 = sphi 0, %s89
    %s92 = sphi 0, %s91
    %s106 = sphi 0, %s92
    %s110 = sphi 0, %s110
    %s112 = sphi 0, %s110
    %s113 = sphi 0, %s112
    %s127 = sphi 0, %s113
    %s133 = sphi 0, %s135
    %s136 = sphi 0, %s133
    %s137 = sphi 0, %s136
    %s153 = sphi 0, %s137
  $region4: #{tpu_custom_call.1} parent=0 // loop_header_branch
    %21 = sbr.rel (%p19) target = $region8
  $region5: #{tpu_custom_call.1} parent=0 // loop_body
    %s23 = ssub.s32 %s18, 1
    %s24 = ssub.s32 %s18, 2
    %s25 = sadd.s32 %s18, 1
    %s27 = sadd.s32 %s26, 1
    %p30 = scmp.eq.s32.totalorder %s18, 1
    %p31 = scmp.ne.s32.totalorder %s26, %s28
    %p32 = scmp.eq.s32.totalorder %s18, 0
    %p33 = por %p31, %p32
    %p34 = scmp.ne.s32.totalorder %s26, %s28
    %p35 = scmp.eq.s32.totalorder %s23, 1
    %p36 = por %p34, %p35
    %p37 = scmp.ne.s32.totalorder %s28, %s29
    %p38 = scmp.eq.s32.totalorder %s23, 0
    %p39 = por %p37, %p38
    %p40 = scmp.ne.s32.totalorder %s28, %s29
    %p41 = scmp.eq.s32.totalorder %s24, 1
    %p42 = por %p40, %p41
    %p44 = scmp.ne.s32.totalorder %s29, %s43
    %p45 = scmp.eq.s32.totalorder %s24, 0
    %p46 = por %p44, %p45
    %s48 = sadd.s32 %s47, 1
    %p51 = scmp.eq.s32.totalorder %s18, 1
    %p52 = scmp.ne.s32.totalorder %s47, %s49
    %p53 = scmp.eq.s32.totalorder %s18, 0
    %p54 = por %p52, %p53
    %p55 = scmp.ne.s32.totalorder %s47, %s49
    %p56 = scmp.eq.s32.totalorder %s23, 1
    %p57 = por %p55, %p56
    %p58 = scmp.ne.s32.totalorder %s49, %s50
    %p59 = scmp.eq.s32.totalorder %s23, 0
    %p60 = por %p58, %p59
    %p61 = scmp.ne.s32.totalorder %s49, %s50
    %p62 = scmp.eq.s32.totalorder %s24, 1
    %p63 = por %p61, %p62
    %p65 = scmp.ne.s32.totalorder %s50, %s64
    %p66 = scmp.eq.s32.totalorder %s24, 0
    %p67 = por %p65, %p66
    %s69 = sadd.s32 %s68, 1
    %p72 = scmp.eq.s32.totalorder %s18, 1
    %p73 = scmp.ne.s32.totalorder %s68, %s70
    %p74 = scmp.eq.s32.totalorder %s18, 0
    %p75 = por %p73, %p74
    %p76 = scmp.ne.s32.totalorder %s68, %s70
    %p77 = scmp.eq.s32.totalorder %s23, 1
    %p78 = por %p76, %p77
    %p79 = scmp.ne.s32.totalorder %s70, %s71
    %p80 = scmp.eq.s32.totalorder %s23, 0
    %p81 = por %p79, %p80
    %p82 = scmp.ne.s32.totalorder %s70, %s71
    %p83 = scmp.eq.s32.totalorder %s24, 1
    %p84 = por %p82, %p83
    %p86 = scmp.ne.s32.totalorder %s71, %s85
    %p87 = scmp.eq.s32.totalorder %s24, 0
    %p88 = por %p86, %p87
    %s90 = sadd.s32 %s89, 1
    %p93 = scmp.eq.s32.totalorder %s18, 1
    %p94 = scmp.ne.s32.totalorder %s89, %s91
    %p95 = scmp.eq.s32.totalorder %s18, 0
    %p96 = por %p94, %p95
    %p97 = scmp.ne.s32.totalorder %s89, %s91
    %p98 = scmp.eq.s32.totalorder %s23, 1
    %p99 = por %p97, %p98
    %p100 = scmp.ne.s32.totalorder %s91, %s92
    %p101 = scmp.eq.s32.totalorder %s23, 0
    %p102 = por %p100, %p101
    %p103 = scmp.ne.s32.totalorder %s91, %s92
    %p104 = scmp.eq.s32.totalorder %s24, 1
    %p105 = por %p103, %p104
    %p107 = scmp.ne.s32.totalorder %s92, %s106
    %p108 = scmp.eq.s32.totalorder %s24, 0
    %p109 = por %p107, %p108
    %s111 = sadd.s32 %s110, 1
    %p114 = scmp.eq.s32.totalorder %s18, 1
    %p115 = scmp.ne.s32.totalorder %s110, %s112
    %p116 = scmp.eq.s32.totalorder %s18, 0
    %p117 = por %p115, %p116
    %p118 = scmp.ne.s32.totalorder %s110, %s112
    %p119 = scmp.eq.s32.totalorder %s23, 1
    %p120 = por %p118, %p119
    %p121 = scmp.ne.s32.totalorder %s112, %s113
    %p122 = scmp.eq.s32.totalorder %s23, 0
    %p123 = por %p121, %p122
    %p124 = scmp.ne.s32.totalorder %s112, %s113
    %p125 = scmp.eq.s32.totalorder %s24, 1
    %p126 = por %p124, %p125
    %p128 = scmp.ne.s32.totalorder %s113, %s127
    %p129 = scmp.eq.s32.totalorder %s24, 0
    %p130 = por %p128, %p129
    %s131 = ssub.s32 %s18, %s25
    %p132 = scmp.eq.s32.totalorder %s131, 0
    %s134 = sadd.s32 %s133, 1
    %s135 = scalar_select %p132, %s133, %s134
    %p138 = pneg %p132
    %p139 = scmp.eq.s32.totalorder %s18, 1
    %p140 = por %p138, %p139
    %p141 = scmp.ne.s32.totalorder %s133, %s136
    %p142 = scmp.eq.s32.totalorder %s18, 0
    %p143 = por %p141, %p142
    %p144 = scmp.ne.s32.totalorder %s133, %s136
    %p145 = scmp.eq.s32.totalorder %s23, 1
    %p146 = por %p144, %p145
    %p147 = scmp.ne.s32.totalorder %s136, %s137
    %p148 = scmp.eq.s32.totalorder %s23, 0
    %p149 = por %p147, %p148
    %p150 = scmp.ne.s32.totalorder %s136, %s137
    %p151 = scmp.eq.s32.totalorder %s24, 1
    %p152 = por %p150, %p151
    %p154 = scmp.ne.s32.totalorder %s137, %s153
    %p155 = scmp.eq.s32.totalorder %s24, 0
    %p156 = por %p154, %p155
    %p157 = scmp.le.s32.totalorder 1, %s18
    %p158 = scmp.lt.s32.totalorder %s18, 3
    %p159 = pnand %p157, %p158
    %p160 = pneg %p159
    // Predicated region
    $region9: #{tpu_custom_call.1} parent=5 // pred_check
      _
    $region10: #{tpu_custom_call.1} parent=5 // pred_check_branch
      %162 = sbr.rel (%p159) target = $region12
    $region11: #{tpu_custom_call.1} parent=5 // pred_region
      %s163 = ssub.s32 %s18, 1
      // Predicated region
      $region13: #{tpu_custom_call.1} parent=11 // pred_check
        %p164 = pneg %p39
      $region14: #{tpu_custom_call.1} parent=11 // pred_check_branch
        %166 = sbr.rel (%p164) target = $region16
      $region15: #{tpu_custom_call.1} parent=11 // pred_region
        _
      $region16: #{tpu_custom_call.1} parent=11 // pred_fallthru
        _
      // Predicated region
      $region17: #{tpu_custom_call.1} parent=11 // pred_check
        %p167 = pneg %p60
      $region18: #{tpu_custom_call.1} parent=11 // pred_check_branch
        %169 = sbr.rel (%p167) target = $region20
      $region19: #{tpu_custom_call.1} parent=11 // pred_region
        _
      $region20: #{tpu_custom_call.1} parent=11 // pred_fallthru
        _
      // Predicated region
      $region21: #{tpu_custom_call.1} parent=11 // pred_check
        %p170 = pneg %p81
      $region22: #{tpu_custom_call.1} parent=11 // pred_check_branch
        %172 = sbr.rel (%p170) target = $region24
      $region23: #{tpu_custom_call.1} parent=11 // pred_region
        _
      $region24: #{tpu_custom_call.1} parent=11 // pred_fallthru
        _
      // Predicated region
      $region25: #{tpu_custom_call.1} parent=11 // pred_check
        %p173 = pneg %p102
      $region26: #{tpu_custom_call.1} parent=11 // pred_check_branch
        %175 = sbr.rel (%p173) target = $region28
      $region27: #{tpu_custom_call.1} parent=11 // pred_region
        _
      $region28: #{tpu_custom_call.1} parent=11 // pred_fallthru
        _
      // Predicated region
      $region29: #{tpu_custom_call.1} parent=11 // pred_check
        %p176 = pneg %p123
      $region30: #{tpu_custom_call.1} parent=11 // pred_check_branch
        %178 = sbr.rel (%p176) target = $region32
      $region31: #{tpu_custom_call.1} parent=11 // pred_region
        _
      $region32: #{tpu_custom_call.1} parent=11 // pred_fallthru
        _
    $region12: #{tpu_custom_call.1} parent=5 // pred_fallthru
      _
    %p179 = scmp.lt.s32.totalorder %s18, 2
    // Predicated region
    $region33: #{tpu_custom_call.1} parent=5 // pred_check
      %p180 = pneg %p179
    $region34: #{tpu_custom_call.1} parent=5 // pred_check_branch
      %182 = sbr.rel (%p180) target = $region36
    $region35: #{tpu_custom_call.1} parent=5 // pred_region
      _
    $region36: #{tpu_custom_call.1} parent=5 // pred_fallthru
      _
    %p183 = scmp.le.s32.totalorder 1, %s18
    %p184 = scmp.lt.s32.totalorder %s18, 3
    %p185 = pnand %p183, %p184
    %p186 = pneg %p185
    // Predicated region
    $region37: #{tpu_custom_call.1} parent=5 // pred_check
      _
    $region38: #{tpu_custom_call.1} parent=5 // pred_check_branch
      %188 = sbr.rel (%p185) target = $region40
    $region39: #{tpu_custom_call.1} parent=5 // pred_region
      %s189 = ssub.s32 %s18, 1
      %p190 = pneg %p39
      %p191 = pneg %p36
      %p192 = pneg %p60
      %p193 = pneg %p57
      %p194 = pneg %p81
      %p195 = pneg %p78
      %p196 = pneg %p102
      %p197 = pneg %p99
      %p198 = pneg %p123
      %p199 = pneg %p120
      %p200 = pneg %p149
      %p201 = pneg %p146
      %p202 = scmp.lt.s32.totalorder %s23, 1
      %s203 = scalar_select %p202, %s23, 1
      %s204 = smul.addr %s203, 8
      %s205 = scalar_lea.vmem %s6, %s204
      %p206 = scmp.lt.s32.totalorder %s23, 1
      %s207 = scalar_select %p206, %s23, 1
      %s208 = smul.addr %s207, 8
      %s209 = scalar_lea.vmem %s6, %s208
      %v210 = vld [vmem:[%s3] sm:$0x1]
      %s211 = smul.u32 %s23, 8
      %s212 = smul.u32 %s211, 128
      %s213 = sld [smem:[#allocation4 + %s212]]
      %s214 = scalar_lea.vmem %s1, %s213
      %v215 = vld [vmem:[%s214] sm:$0x1]
      %v216 = vadd.f32 %v215, %v210
      %217 = vst [vmem:[#allocation2] sm:$0x1] %v216
      %s218 = sadd.s32 %s211, 1
      %s219 = smul.u32 %s218, 128
      %s220 = sld [smem:[#allocation4 + %s219]]
      %s221 = scalar_lea.vmem %s1, %s220
      %v222 = vld [vmem:[%s221] sm:$0x1]
      %v223 = vadd.f32 %v222, %v210
      %224 = vst [vmem:[#allocation2 + $0x1] sm:$0x1] %v223
      %s225 = sadd.s32 %s211, 2
      %s226 = smul.u32 %s225, 128
      %s227 = sld [smem:[#allocation4 + %s226]]
      %s228 = scalar_lea.vmem %s1, %s227
      %v229 = vld [vmem:[%s228] sm:$0x1]
      %v230 = vadd.f32 %v229, %v210
      %231 = vst [vmem:[#allocation2 + $0x2] sm:$0x1] %v230
      %s232 = sadd.s32 %s211, 3
      %s233 = smul.u32 %s232, 128
      %s234 = sld [smem:[#allocation4 + %s233]]
      %s235 = scalar_lea.vmem %s1, %s234
      %v236 = vld [vmem:[%s235] sm:$0x1]
      %v237 = vadd.f32 %v236, %v210
      %238 = vst [vmem:[#allocation2 + $0x3] sm:$0x1] %v237
      %s239 = sadd.s32 %s211, 4
      %s240 = smul.u32 %s239, 128
      %s241 = sld [smem:[#allocation4 + %s240]]
      %s242 = scalar_lea.vmem %s1, %s241
      %v243 = vld [vmem:[%s242] sm:$0x1]
      %v244 = vadd.f32 %v243, %v210
      %245 = vst [vmem:[#allocation2 + $0x4] sm:$0x1] %v244
      %s246 = sadd.s32 %s211, 5
      %s247 = smul.u32 %s246, 128
      %s248 = sld [smem:[#allocation4 + %s247]]
      %s249 = scalar_lea.vmem %s1, %s248
      %v250 = vld [vmem:[%s249] sm:$0x1]
      %v251 = vadd.f32 %v250, %v210
      %252 = vst [vmem:[#allocation2 + $0x5] sm:$0x1] %v251
      %s253 = sadd.s32 %s211, 6
      %s254 = smul.u32 %s253, 128
      %s255 = sld [smem:[#allocation4 + %s254]]
      %s256 = scalar_lea.vmem %s1, %s255
      %v257 = vld [vmem:[%s256] sm:$0x1]
      %v258 = vadd.f32 %v257, %v210
      %259 = vst [vmem:[#allocation2 + $0x6] sm:$0x1] %v258
      %s260 = sadd.s32 %s211, 7
      %s261 = smul.u32 %s260, 128
      %s262 = sld [smem:[#allocation4 + %s261]]
      %s263 = scalar_lea.vmem %s1, %s262
      %v264 = vld [vmem:[%s263] sm:$0x1]
      %v265 = vadd.f32 %v264, %v210
      %266 = vst [vmem:[#allocation2 + $0x7] sm:$0x1] %v265
      %s267 = sadd.s32 %s212, 1
      %s268 = sld [smem:[#allocation4 + %s267]]
      %s269 = scalar_lea.vmem %s1, %s268
      %v270 = vld [vmem:[%s269] sm:$0x1]
      %v271 = vadd.f32 %v270, %v210
      %272 = vst [vmem:[#allocation2 + $0x8] sm:$0x1] %v271
      %s273 = sadd.s32 %s219, 1
      %s274 = sld [smem:[#allocation4 + %s273]]
      %s275 = scalar_lea.vmem %s1, %s274
      %v276 = vld [vmem:[%s275] sm:$0x1]
      %v277 = vadd.f32 %v276, %v210
      %278 = vst [vmem:[#allocation2 + $0x9] sm:$0x1] %v277
      %s279 = sadd.s32 %s226, 1
      %s280 = sld [smem:[#allocation4 + %s279]]
      %s281 = scalar_lea.vmem %s1, %s280
      %v282 = vld [vmem:[%s281] sm:$0x1]
      %v283 = vadd.f32 %v282, %v210
      %284 = vst [vmem:[#allocation2 + $0xa] sm:$0x1] %v283
      %s285 = sadd.s32 %s233, 1
      %s286 = sld [smem:[#allocation4 + %s285]]
      %s287 = scalar_lea.vmem %s1, %s286
      %v288 = vld [vmem:[%s287] sm:$0x1]
      %v289 = vadd.f32 %v288, %v210
      %290 = vst [vmem:[#allocation2 + $0xb] sm:$0x1] %v289
      %s291 = sadd.s32 %s240, 1
      %s292 = sld [smem:[#allocation4 + %s291]]
      %s293 = scalar_lea.vmem %s1, %s292
      %v294 = vld [vmem:[%s293] sm:$0x1]
      %v295 = vadd.f32 %v294, %v210
      %296 = vst [vmem:[#allocation2 + $0xc] sm:$0x1] %v295
      %s297 = sadd.s32 %s247, 1
      %s298 = sld [smem:[#allocation4 + %s297]]
      %s299 = scalar_lea.vmem %s1, %s298
      %v300 = vld [vmem:[%s299] sm:$0x1]
      %v301 = vadd.f32 %v300, %v210
      %302 = vst [vmem:[#allocation2 + $0xd] sm:$0x1] %v301
      %s303 = sadd.s32 %s254, 1
      %s304 = sld [smem:[#allocation4 + %s303]]
      %s305 = scalar_lea.vmem %s1, %s304
      %v306 = vld [vmem:[%s305] sm:$0x1]
      %v307 = vadd.f32 %v306, %v210
      %308 = vst [vmem:[#allocation2 + $0xe] sm:$0x1] %v307
      %s309 = sadd.s32 %s261, 1
      %s310 = sld [smem:[#allocation4 + %s309]]
      %s311 = scalar_lea.vmem %s1, %s310
      %v312 = vld [vmem:[%s311] sm:$0x1]
      %v313 = vadd.f32 %v312, %v210
      %314 = vst [vmem:[#allocation2 + $0xf] sm:$0x1] %v313
      %s315 = sadd.s32 %s212, 2
      %s316 = sld [smem:[#allocation4 + %s315]]
      %s317 = scalar_lea.vmem %s1, %s316
      %v318 = vld [vmem:[%s317] sm:$0x1]
      %v319 = vadd.f32 %v318, %v210
      %320 = vst [vmem:[#allocation2 + $0x10] sm:$0x1] %v319
      %s321 = sadd.s32 %s219, 2
      %s322 = sld [smem:[#allocation4 + %s321]]
      %s323 = scalar_lea.vmem %s1, %s322
      %v324 = vld [vmem:[%s323] sm:$0x1]
      %v325 = vadd.f32 %v324, %v210
      %326 = vst [vmem:[#allocation2 + $0x11] sm:$0x1] %v325
      %s327 = sadd.s32 %s226, 2
      %s328 = sld [smem:[#allocation4 + %s327]]
      %s329 = scalar_lea.vmem %s1, %s328
      %v330 = vld [vmem:[%s329] sm:$0x1]
      %v331 = vadd.f32 %v330, %v210
      %332 = vst [vmem:[#allocation2 + $0x12] sm:$0x1] %v331
      %s333 = sadd.s32 %s233, 2
      %s334 = sld [smem:[#allocation4 + %s333]]
      %s335 = scalar_lea.vmem %s1, %s334
      %v336 = vld [vmem:[%s335] sm:$0x1]
      %v337 = vadd.f32 %v336, %v210
      %338 = vst [vmem:[#allocation2 + $0x13] sm:$0x1] %v337
      %s339 = sadd.s32 %s240, 2
      %s340 = sld [smem:[#allocation4 + %s339]]
      %s341 = scalar_lea.vmem %s1, %s340
      %v342 = vld [vmem:[%s341] sm:$0x1]
      %v343 = vadd.f32 %v342, %v210
      %344 = vst [vmem:[#allocation2 + $0x14] sm:$0x1] %v343
      %s345 = sadd.s32 %s247, 2
      %s346 = sld [smem:[#allocation4 + %s345]]
      %s347 = scalar_lea.vmem %s1, %s346
      %v348 = vld [vmem:[%s347] sm:$0x1]
      %v349 = vadd.f32 %v348, %v210
      %350 = vst [vmem:[#allocation2 + $0x15] sm:$0x1] %v349
      %s351 = sadd.s32 %s254, 2
      %s352 = sld [smem:[#allocation4 + %s351]]
      %s353 = scalar_lea.vmem %s1, %s352
      %v354 = vld [vmem:[%s353] sm:$0x1]
      %v355 = vadd.f32 %v354, %v210
      %356 = vst [vmem:[#allocation2 + $0x16] sm:$0x1] %v355
      %s357 = sadd.s32 %s261, 2
      %s358 = sld [smem:[#allocation4 + %s357]]
      %s359 = scalar_lea.vmem %s1, %s358
      %v360 = vld [vmem:[%s359] sm:$0x1]
      %v361 = vadd.f32 %v360, %v210
      %362 = vst [vmem:[#allocation2 + $0x17] sm:$0x1] %v361
      %s363 = sadd.s32 %s212, 3
      %s364 = sld [smem:[#allocation4 + %s363]]
      %s365 = scalar_lea.vmem %s1, %s364
      %v366 = vld [vmem:[%s365] sm:$0x1]
      %v367 = vadd.f32 %v366, %v210
      %368 = vst [vmem:[#allocation2 + $0x18] sm:$0x1] %v367
      %s369 = sadd.s32 %s219, 3
      %s370 = sld [smem:[#allocation4 + %s369]]
      %s371 = scalar_lea.vmem %s1, %s370
      %v372 = vld [vmem:[%s371] sm:$0x1]
      %v373 = vadd.f32 %v372, %v210
      %374 = vst [vmem:[#allocation2 + $0x19] sm:$0x1] %v373
      %s375 = sadd.s32 %s226, 3
      %s376 = sld [smem:[#allocation4 + %s375]]
      %s377 = scalar_lea.vmem %s1, %s376
      %v378 = vld [vmem:[%s377] sm:$0x1]
      %v379 = vadd.f32 %v378, %v210
      %380 = vst [vmem:[#allocation2 + $0x1a] sm:$0x1] %v379
      %s381 = sadd.s32 %s233, 3
      %s382 = sld [smem:[#allocation4 + %s381]]
      %s383 = scalar_lea.vmem %s1, %s382
      %v384 = vld [vmem:[%s383] sm:$0x1]
      %v385 = vadd.f32 %v384, %v210
      %386 = vst [vmem:[#allocation2 + $0x1b] sm:$0x1] %v385
      %s387 = sadd.s32 %s240, 3
      %s388 = sld [smem:[#allocation4 + %s387]]
      %s389 = scalar_lea.vmem %s1, %s388
      %v390 = vld [vmem:[%s389] sm:$0x1]
      %v391 = vadd.f32 %v390, %v210
      %392 = vst [vmem:[#allocation2 + $0x1c] sm:$0x1] %v391
      %s393 = sadd.s32 %s247, 3
      %s394 = sld [smem:[#allocation4 + %s393]]
      %s395 = scalar_lea.vmem %s1, %s394
      %v396 = vld [vmem:[%s395] sm:$0x1]
      %v397 = vadd.f32 %v396, %v210
      %398 = vst [vmem:[#allocation2 + $0x1d] sm:$0x1] %v397
      %s399 = sadd.s32 %s254, 3
      %s400 = sld [smem:[#allocation4 + %s399]]
      %s401 = scalar_lea.vmem %s1, %s400
      %v402 = vld [vmem:[%s401] sm:$0x1]
      %v403 = vadd.f32 %v402, %v210
      %404 = vst [vmem:[#allocation2 + $0x1e] sm:$0x1] %v403
      %s405 = sadd.s32 %s261, 3
      %s406 = sld [smem:[#allocation4 + %s405]]
      %s407 = scalar_lea.vmem %s1, %s406
      %v408 = vld [vmem:[%s407] sm:$0x1]
      %v409 = vadd.f32 %v408, %v210
      %410 = vst [vmem:[#allocation2 + $0x1f] sm:$0x1] %v409
      %s411 = sadd.s32 %s212, 4
      %s412 = sld [smem:[#allocation4 + %s411]]
      %s413 = scalar_lea.vmem %s1, %s412
      %v414 = vld [vmem:[%s413] sm:$0x1]
      %v415 = vadd.f32 %v414, %v210
      %416 = vst [vmem:[#allocation2 + $0x20] sm:$0x1] %v415
      %s417 = sadd.s32 %s219, 4
      %s418 = sld [smem:[#allocation4 + %s417]]
      %s419 = scalar_lea.vmem %s1, %s418
      %v420 = vld [vmem:[%s419] sm:$0x1]
      %v421 = vadd.f32 %v420, %v210
      %422 = vst [vmem:[#allocation2 + $0x21] sm:$0x1] %v421
      %s423 = sadd.s32 %s226, 4
      %s424 = sld [smem:[#allocation4 + %s423]]
      %s425 = scalar_lea.vmem %s1, %s424
      %v426 = vld [vmem:[%s425] sm:$0x1]
      %v427 = vadd.f32 %v426, %v210
      %428 = vst [vmem:[#allocation2 + $0x22] sm:$0x1] %v427
      %s429 = sadd.s32 %s233, 4
      %s430 = sld [smem:[#allocation4 + %s429]]
      %s431 = scalar_lea.vmem %s1, %s430
      %v432 = vld [vmem:[%s431] sm:$0x1]
      %v433 = vadd.f32 %v432, %v210
      %434 = vst [vmem:[#allocation2 + $0x23] sm:$0x1] %v433
      %s435 = sadd.s32 %s240, 4
      %s436 = sld [smem:[#allocation4 + %s435]]
      %s437 = scalar_lea.vmem %s1, %s436
      %v438 = vld [vmem:[%s437] sm:$0x1]
      %v439 = vadd.f32 %v438, %v210
      %440 = vst [vmem:[#allocation2 + $0x24] sm:$0x1] %v439
      %s441 = sadd.s32 %s247, 4
      %s442 = sld [smem:[#allocation4 + %s441]]
      %s443 = scalar_lea.vmem %s1, %s442
      %v444 = vld [vmem:[%s443] sm:$0x1]
      %v445 = vadd.f32 %v444, %v210
      %446 = vst [vmem:[#allocation2 + $0x25] sm:$0x1] %v445
      %s447 = sadd.s32 %s254, 4
      %s448 = sld [smem:[#allocation4 + %s447]]
      %s449 = scalar_lea.vmem %s1, %s448
      %v450 = vld [vmem:[%s449] sm:$0x1]
      %v451 = vadd.f32 %v450, %v210
      %452 = vst [vmem:[#allocation2 + $0x26] sm:$0x1] %v451
      %s453 = sadd.s32 %s261, 4
      %s454 = sld [smem:[#allocation4 + %s453]]
      %s455 = scalar_lea.vmem %s1, %s454
      %v456 = vld [vmem:[%s455] sm:$0x1]
      %v457 = vadd.f32 %v456, %v210
      %458 = vst [vmem:[#allocation2 + $0x27] sm:$0x1] %v457
      %s459 = sadd.s32 %s212, 5
      %s460 = sld [smem:[#allocation4 + %s459]]
      %s461 = scalar_lea.vmem %s1, %s460
      %v462 = vld [vmem:[%s461] sm:$0x1]
      %v463 = vadd.f32 %v462, %v210
      %464 = vst [vmem:[#allocation2 + $0x28] sm:$0x1] %v463
      %s465 = sadd.s32 %s219, 5
      %s466 = sld [smem:[#allocation4 + %s465]]
      %s467 = scalar_lea.vmem %s1, %s466
      %v468 = vld [vmem:[%s467] sm:$0x1]
      %v469 = vadd.f32 %v468, %v210
      %470 = vst [vmem:[#allocation2 + $0x29] sm:$0x1] %v469
      %s471 = sadd.s32 %s226, 5
      %s472 = sld [smem:[#allocation4 + %s471]]
      %s473 = scalar_lea.vmem %s1, %s472
      %v474 = vld [vmem:[%s473] sm:$0x1]
      %v475 = vadd.f32 %v474, %v210
      %476 = vst [vmem:[#allocation2 + $0x2a] sm:$0x1] %v475
      %s477 = sadd.s32 %s233, 5
      %s478 = sld [smem:[#allocation4 + %s477]]
      %s479 = scalar_lea.vmem %s1, %s478
      %v480 = vld [vmem:[%s479] sm:$0x1]
      %v481 = vadd.f32 %v480, %v210
      %482 = vst [vmem:[#allocation2 + $0x2b] sm:$0x1] %v481
      %s483 = sadd.s32 %s240, 5
      %s484 = sld [smem:[#allocation4 + %s483]]
      %s485 = scalar_lea.vmem %s1, %s484
      %v486 = vld [vmem:[%s485] sm:$0x1]
      %v487 = vadd.f32 %v486, %v210
      %488 = vst [vmem:[#allocation2 + $0x2c] sm:$0x1] %v487
      %s489 = sadd.s32 %s247, 5
      %s490 = sld [smem:[#allocation4 + %s489]]
      %s491 = scalar_lea.vmem %s1, %s490
      %v492 = vld [vmem:[%s491] sm:$0x1]
      %v493 = vadd.f32 %v492, %v210
      %494 = vst [vmem:[#allocation2 + $0x2d] sm:$0x1] %v493
      %s495 = sadd.s32 %s254, 5
      %s496 = sld [smem:[#allocation4 + %s495]]
      %s497 = scalar_lea.vmem %s1, %s496
      %v498 = vld [vmem:[%s497] sm:$0x1]
      %v499 = vadd.f32 %v498, %v210
      %500 = vst [vmem:[#allocation2 + $0x2e] sm:$0x1] %v499
      %s501 = sadd.s32 %s261, 5
      %s502 = sld [smem:[#allocation4 + %s501]]
      %s503 = scalar_lea.vmem %s1, %s502
      %v504 = vld [vmem:[%s503] sm:$0x1]
      %v505 = vadd.f32 %v504, %v210
      %506 = vst [vmem:[#allocation2 + $0x2f] sm:$0x1] %v505
      %s507 = sadd.s32 %s212, 6
      %s508 = sld [smem:[#allocation4 + %s507]]
      %s509 = scalar_lea.vmem %s1, %s508
      %v510 = vld [vmem:[%s509] sm:$0x1]
      %v511 = vadd.f32 %v510, %v210
      %512 = vst [vmem:[#allocation2 + $0x30] sm:$0x1] %v511
      %s513 = sadd.s32 %s219, 6
      %s514 = sld [smem:[#allocation4 + %s513]]
      %s515 = scalar_lea.vmem %s1, %s514
      %v516 = vld [vmem:[%s515] sm:$0x1]
      %v517 = vadd.f32 %v516, %v210
      %518 = vst [vmem:[#allocation2 + $0x31] sm:$0x1] %v517
      %s519 = sadd.s32 %s226, 6
      %s520 = sld [smem:[#allocation4 + %s519]]
      %s521 = scalar_lea.vmem %s1, %s520
      %v522 = vld [vmem:[%s521] sm:$0x1]
      %v523 = vadd.f32 %v522, %v210
      %524 = vst [vmem:[#allocation2 + $0x32] sm:$0x1] %v523
      %s525 = sadd.s32 %s233, 6
      %s526 = sld [smem:[#allocation4 + %s525]]
      %s527 = scalar_lea.vmem %s1, %s526
      %v528 = vld [vmem:[%s527] sm:$0x1]
      %v529 = vadd.f32 %v528, %v210
      %530 = vst [vmem:[#allocation2 + $0x33] sm:$0x1] %v529
      %s531 = sadd.s32 %s240, 6
      %s532 = sld [smem:[#allocation4 + %s531]]
      %s533 = scalar_lea.vmem %s1, %s532
      %v534 = vld [vmem:[%s533] sm:$0x1]
      %v535 = vadd.f32 %v534, %v210
      %536 = vst [vmem:[#allocation2 + $0x34] sm:$0x1] %v535
      %s537 = sadd.s32 %s247, 6
      %s538 = sld [smem:[#allocation4 + %s537]]
      %s539 = scalar_lea.vmem %s1, %s538
      %v540 = vld [vmem:[%s539] sm:$0x1]
      %v541 = vadd.f32 %v540, %v210
      %542 = vst [vmem:[#allocation2 + $0x35] sm:$0x1] %v541
      %s543 = sadd.s32 %s254, 6
      %s544 = sld [smem:[#allocation4 + %s543]]
      %s545 = scalar_lea.vmem %s1, %s544
      %v546 = vld [vmem:[%s545] sm:$0x1]
      %v547 = vadd.f32 %v546, %v210
      %548 = vst [vmem:[#allocation2 + $0x36] sm:$0x1] %v547
      %s549 = sadd.s32 %s261, 6
      %s550 = sld [smem:[#allocation4 + %s549]]
      %s551 = scalar_lea.vmem %s1, %s550
      %v552 = vld [vmem:[%s551] sm:$0x1]
      %v553 = vadd.f32 %v552, %v210
      %554 = vst [vmem:[#allocation2 + $0x37] sm:$0x1] %v553
      %s555 = sadd.s32 %s212, 7
      %s556 = sld [smem:[#allocation4 + %s555]]
      %s557 = scalar_lea.vmem %s1, %s556
      %v558 = vld [vmem:[%s557] sm:$0x1]
      %v559 = vadd.f32 %v558, %v210
      %560 = vst [vmem:[#allocation2 + $0x38] sm:$0x1] %v559
      %s561 = sadd.s32 %s219, 7
      %s562 = sld [smem:[#allocation4 + %s561]]
      %s563 = scalar_lea.vmem %s1, %s562
      %v564 = vld [vmem:[%s563] sm:$0x1]
      %v565 = vadd.f32 %v564, %v210
      %566 = vst [vmem:[#allocation2 + $0x39] sm:$0x1] %v565
      %s567 = sadd.s32 %s226, 7
      %s568 = sld [smem:[#allocation4 + %s567]]
      %s569 = scalar_lea.vmem %s1, %s568
      %v570 = vld [vmem:[%s569] sm:$0x1]
      %v571 = vadd.f32 %v570, %v210
      %572 = vst [vmem:[#allocation2 + $0x3a] sm:$0x1] %v571
      %s573 = sadd.s32 %s233, 7
      %s574 = sld [smem:[#allocation4 + %s573]]
      %s575 = scalar_lea.vmem %s1, %s574
      %v576 = vld [vmem:[%s575] sm:$0x1]
      %v577 = vadd.f32 %v576, %v210
      %578 = vst [vmem:[#allocation2 + $0x3b] sm:$0x1] %v577
      %s579 = sadd.s32 %s240, 7
      %s580 = sld [smem:[#allocation4 + %s579]]
      %s581 = scalar_lea.vmem %s1, %s580
      %v582 = vld [vmem:[%s581] sm:$0x1]
      %v583 = vadd.f32 %v582, %v210
      %584 = vst [vmem:[#allocation2 + $0x3c] sm:$0x1] %v583
      %s585 = sadd.s32 %s247, 7
      %s586 = sld [smem:[#allocation4 + %s585]]
      %s587 = scalar_lea.vmem %s1, %s586
      %v588 = vld [vmem:[%s587] sm:$0x1]
      %v589 = vadd.f32 %v588, %v210
      %590 = vst [vmem:[#allocation2 + $0x3d] sm:$0x1] %v589
      %s591 = sadd.s32 %s254, 7
      %s592 = sld [smem:[#allocation4 + %s591]]
      %s593 = scalar_lea.vmem %s1, %s592
      %v594 = vld [vmem:[%s593] sm:$0x1]
      %v595 = vadd.f32 %v594, %v210
      %596 = vst [vmem:[#allocation2 + $0x3e] sm:$0x1] %v595
      %s597 = sadd.s32 %s261, 7
      %s598 = sld [smem:[#allocation4 + %s597]]
      %s599 = scalar_lea.vmem %s1, %s598
      %v600 = vld [vmem:[%s599] sm:$0x1]
      %v601 = vadd.f32 %v600, %v210
      %602 = vst [vmem:[#allocation2 + $0x3f] sm:$0x1] %v601
      %v603 = vld [vmem:[%s2] sm:$0xff]
      %v604 = vld [vmem:[%s2 + $0x8] sm:$0xff]
      %v605 = vld [vmem:[%s2 + $0x10] sm:$0xff]
      %v606 = vld [vmem:[%s2 + $0x18] sm:$0xff]
      %v607 = vld [vmem:[#allocation2] sm:$0xff]
      %vm608 = vcmask 261120
      %v610 = vsel %vm608, 0.0, 0
      %612 = vmatprep.subr.mxu0 0.0
      %613 = vmatpush1.msra.mxu0 0.0
      %614 = vmatprep.subr.mxu0 0.0
      %615 = vmatpush1.msra.mxu0 0.0
      %616 = vmatprep.subr.mxu0 0.0
      %617 = vmatpush1.msra.mxu0 0.0
      %618 = vmatprep.subr.mxu0 0.0
      %619 = vmatpush1.msra.mxu0 0.0
      %620 = vmatprep.subr.mxu0 0.0
      %621 = vmatpush1.msra.mxu0 0.0
      %622 = vmatprep.subr.mxu0 0.0
      %623 = vmatpush1.msra.mxu0 0.0
      %624 = vmatprep.subr.mxu0 0.0
      %625 = vmatpush1.msra.mxu0 0.0
      %626 = vmatprep.subr.mxu0 0.0
      %627 = vmatpush1.msra.mxu0 0.0
      %628 = vmatprep.subr.mxu0 0.0
      %629 = vmatpush1.msra.mxu0 0.0
      %630 = vmatprep.subr.mxu0 0.0
      %631 = vmatpush1.msra.mxu0 0.0
      %632 = vmatprep.subr.mxu0 0.0
      %633 = vmatpush1.msra.mxu0 0.0
      %634 = vmatprep.subr.mxu0 0.0
      %635 = vmatpush1.msra.mxu0 0.0
      %636 = vmatprep.subr.mxu0 0.0
      %637 = vmatpush1.msra.mxu0 %v606
      %638 = vmatprep.subr.mxu0 0.0
      %639 = vmatpush1.msra.mxu0 %v605
      %640 = vmatprep.subr.mxu0 0.0
      %641 = vmatpush1.msra.mxu0 %v604
      %642 = vmatprep.subr.mxu0 0.0
      %643 = vmatpush1.msra.mxu0 %v603
      %644 = vmatprep.subr.mxu0 0.0
      %645 = vmatpush2.msra.mxu0 0.0
      %646 = vmatprep.subr.mxu0 0.0
      %647 = vmatpush2.msra.mxu0 0.0
      %648 = vmatprep.subr.mxu0 0.0
      %649 = vmatpush2.msra.mxu0 0.0
      %650 = vmatprep.subr.mxu0 0.0
      %651 = vmatpush2.msra.mxu0 0.0
      %652 = vmatprep.subr.mxu0 0.0
      %653 = vmatpush2.msra.mxu0 0.0
      %654 = vmatprep.subr.mxu0 0.0
      %655 = vmatpush2.msra.mxu0 0.0
      %656 = vmatprep.subr.mxu0 0.0
      %657 = vmatpush2.msra.mxu0 0.0
      %658 = vmatprep.subr.mxu0 0.0
      %659 = vmatpush2.msra.mxu0 0.0
      %660 = vmatprep.subr.mxu0 0.0
      %661 = vmatpush2.msra.mxu0 0.0
      %662 = vmatprep.subr.mxu0 0.0
      %663 = vmatpush2.msra.mxu0 0.0
      %664 = vmatprep.subr.mxu0 0.0
      %665 = vmatpush2.msra.mxu0 0.0
      %666 = vmatprep.subr.mxu0 0.0
      %667 = vmatpush2.msra.mxu0 0.0
      %668 = vmatprep.subr.mxu0 0.0
      %669 = vmatpush2.msra.mxu0 0.0
      %670 = vmatprep.subr.mxu0 0.0
      %671 = vmatpush2.msra.mxu0 0.0
      %672 = vmatprep.subr.mxu0 0.0
      %673 = vmatpush2.msra.mxu0 0.0
      %674 = vmatprep.subr.mxu0 0.0
      %675 = vmatpush2.msra.mxu0 0.0
      %676 = vmatprep.mubr.f32.mxu0 0.0
      %677 = vmatmul.mubr.f32.gmra.mxu0 %v610
      %v678 = vpop.f32.mrf.mxu0
      %v679 = vadd.f32 0.0, %v678
      %v680 = vpop.f32.mrf.mxu0
      %681 = vdwg.mxu0
      %v682 = vadd.f32 %v607, %v679
      %v683 = vtanh.pop %v682
      %v684 = vmul.f32 %v683, 0.5
      %v685 = vadd.f32 %v684, 0.5
      %v686 = vmul.f32 %v685, 0.0
      %688 = vrot.lane.b32.xlu0 %v683, 64
      %v689 = vpop.permute.xlu0 %688
      %v691 = vmul.f32 %v685, %v689
      %693 = vrot.lane.b32.xlu0 %v691, 32
      %v694 = vpop.permute.xlu0 %693
      %v696 = vadd.f32 %v686, %v694
      %v697 = vtanh.pop %v696
      %699 = vrot.lane.b32.xlu0 %v697, 64
      %v700 = vpop.permute.xlu0 %699
      %v702 = vmul.f32 %v685, %v700
      %v703 = vld [vmem:[#allocation2 + $0x8] sm:$0xff]
      %705 = vrot.lane.b32.xlu0 %v702, 32
      %v706 = vpop.permute.xlu0 %705
      %v707 = vsel %vm608, %v706, 0
      %709 = vmatprep.subr.mxu0 0.0
      %710 = vmatpush1.msra.mxu0 0.0
      %711 = vmatprep.subr.mxu0 0.0
      %712 = vmatpush1.msra.mxu0 0.0
      %713 = vmatprep.subr.mxu0 0.0
      %714 = vmatpush1.msra.mxu0 0.0
      %715 = vmatprep.subr.mxu0 0.0
      %716 = vmatpush1.msra.mxu0 0.0
      %717 = vmatprep.subr.mxu0 0.0
      %718 = vmatpush1.msra.mxu0 0.0
      %719 = vmatprep.subr.mxu0 0.0
      %720 = vmatpush1.msra.mxu0 0.0
      %721 = vmatprep.subr.mxu0 0.0
      %722 = vmatpush1.msra.mxu0 0.0
      %723 = vmatprep.subr.mxu0 0.0
      %724 = vmatpush1.msra.mxu0 0.0
      %725 = vmatprep.subr.mxu0 0.0
      %726 = vmatpush1.msra.mxu0 0.0
      %727 = vmatprep.subr.mxu0 0.0
      %728 = vmatpush1.msra.mxu0 0.0
      %729 = vmatprep.subr.mxu0 0.0
      %730 = vmatpush1.msra.mxu0 0.0
      %731 = vmatprep.subr.mxu0 0.0
      %732 = vmatpush1.msra.mxu0 0.0
      %733 = vmatprep.subr.mxu0 0.0
      %734 = vmatpush1.msra.mxu0 %v606
      %735 = vmatprep.subr.mxu0 0.0
      %736 = vmatpush1.msra.mxu0 %v605
      %737 = vmatprep.subr.mxu0 0.0
      %738 = vmatpush1.msra.mxu0 %v604
      %739 = vmatprep.subr.mxu0 0.0
      %740 = vmatpush1.msra.mxu0 %v603
      %741 = vmatprep.subr.mxu0 0.0
      %742 = vmatpush2.msra.mxu0 0.0
      %743 = vmatprep.subr.mxu0 0.0
      %744 = vmatpush2.msra.mxu0 0.0
      %745 = vmatprep.subr.mxu0 0.0
      %746 = vmatpush2.msra.mxu0 0.0
      %747 = vmatprep.subr.mxu0 0.0
      %748 = vmatpush2.msra.mxu0 0.0
      %749 = vmatprep.subr.mxu0 0.0
      %750 = vmatpush2.msra.mxu0 0.0
      %751 = vmatprep.subr.mxu0 0.0
      %752 = vmatpush2.msra.mxu0 0.0
      %753 = vmatprep.subr.mxu0 0.0
      %754 = vmatpush2.msra.mxu0 0.0
      %755 = vmatprep.subr.mxu0 0.0
      %756 = vmatpush2.msra.mxu0 0.0
      %757 = vmatprep.subr.mxu0 0.0
      %758 = vmatpush2.msra.mxu0 0.0
      %759 = vmatprep.subr.mxu0 0.0
      %760 = vmatpush2.msra.mxu0 0.0
      %761 = vmatprep.subr.mxu0 0.0
      %762 = vmatpush2.msra.mxu0 0.0
      %763 = vmatprep.subr.mxu0 0.0
      %764 = vmatpush2.msra.mxu0 0.0
      %765 = vmatprep.subr.mxu0 0.0
      %766 = vmatpush2.msra.mxu0 0.0
      %767 = vmatprep.subr.mxu0 0.0
      %768 = vmatpush2.msra.mxu0 0.0
      %769 = vmatprep.subr.mxu0 0.0
      %770 = vmatpush2.msra.mxu0 0.0
      %771 = vmatprep.subr.mxu0 0.0
      %772 = vmatpush2.msra.mxu0 0.0
      %773 = vmatprep.mubr.f32.mxu0 0.0
      %774 = vmatmul.mubr.f32.gmra.mxu0 %v707
      %v775 = vpop.f32.mrf.mxu0
      %v776 = vadd.f32 0.0, %v775
      %v777 = vpop.f32.mrf.mxu0
      %778 = vdwg.mxu0
      %v779 = vadd.f32 %v703, %v776
      %v780 = vtanh.pop %v779
      %v781 = vmul.f32 %v780, 0.5
      %v782 = vadd.f32 %v781, 0.5
      %v783 = vmul.f32 %v782, %v696
      %785 = vrot.lane.b32.xlu0 %v780, 64
      %v786 = vpop.permute.xlu0 %785
      %v788 = vmul.f32 %v782, %v786
      %790 = vrot.lane.b32.xlu0 %v788, 32
      %v791 = vpop.permute.xlu0 %790
      %v793 = vadd.f32 %v783, %v791
      %v794 = vtanh.pop %v793
      %796 = vrot.lane.b32.xlu0 %v794, 64
      %v797 = vpop.permute.xlu0 %796
      %v799 = vmul.f32 %v782, %v797
      %v800 = vld [vmem:[#allocation2 + $0x10] sm:$0xff]
      %802 = vrot.lane.b32.xlu0 %v799, 32
      %v803 = vpop.permute.xlu0 %802
      %v804 = vsel %vm608, %v803, 0
      %806 = vmatprep.subr.mxu0 0.0
      %807 = vmatpush1.msra.mxu0 0.0
      %808 = vmatprep.subr.mxu0 0.0
      %809 = vmatpush1.msra.mxu0 0.0
      %810 = vmatprep.subr.mxu0 0.0
      %811 = vmatpush1.msra.mxu0 0.0
      %812 = vmatprep.subr.mxu0 0.0
      %813 = vmatpush1.msra.mxu0 0.0
      %814 = vmatprep.subr.mxu0 0.0
      %815 = vmatpush1.msra.mxu0 0.0
      %816 = vmatprep.subr.mxu0 0.0
      %817 = vmatpush1.msra.mxu0 0.0
      %818 = vmatprep.subr.mxu0 0.0
      %819 = vmatpush1.msra.mxu0 0.0
      %820 = vmatprep.subr.mxu0 0.0
      %821 = vmatpush1.msra.mxu0 0.0
      %822 = vmatprep.subr.mxu0 0.0
      %823 = vmatpush1.msra.mxu0 0.0
      %824 = vmatprep.subr.mxu0 0.0
      %825 = vmatpush1.msra.mxu0 0.0
      %826 = vmatprep.subr.mxu0 0.0
      %827 = vmatpush1.msra.mxu0 0.0
      %828 = vmatprep.subr.mxu0 0.0
      %829 = vmatpush1.msra.mxu0 0.0
      %830 = vmatprep.subr.mxu0 0.0
      %831 = vmatpush1.msra.mxu0 %v606
      %832 = vmatprep.subr.mxu0 0.0
      %833 = vmatpush1.msra.mxu0 %v605
      %834 = vmatprep.subr.mxu0 0.0
      %835 = vmatpush1.msra.mxu0 %v604
      %836 = vmatprep.subr.mxu0 0.0
      %837 = vmatpush1.msra.mxu0 %v603
      %838 = vmatprep.subr.mxu0 0.0
      %839 = vmatpush2.msra.mxu0 0.0
      %840 = vmatprep.subr.mxu0 0.0
      %841 = vmatpush2.msra.mxu0 0.0
      %842 = vmatprep.subr.mxu0 0.0
      %843 = vmatpush2.msra.mxu0 0.0
      %844 = vmatprep.subr.mxu0 0.0
      %845 = vmatpush2.msra.mxu0 0.0
      %846 = vmatprep.subr.mxu0 0.0
      %847 = vmatpush2.msra.mxu0 0.0
      %848 = vmatprep.subr.mxu0 0.0
      %849 = vmatpush2.msra.mxu0 0.0
      %850 = vmatprep.subr.mxu0 0.0
      %851 = vmatpush2.msra.mxu0 0.0
      %852 = vmatprep.subr.mxu0 0.0
      %853 = vmatpush2.msra.mxu0 0.0
      %854 = vmatprep.subr.mxu0 0.0
      %855 = vmatpush2.msra.mxu0 0.0
      %856 = vmatprep.subr.mxu0 0.0
      %857 = vmatpush2.msra.mxu0 0.0
      %858 = vmatprep.subr.mxu0 0.0
      %859 = vmatpush2.msra.mxu0 0.0
      %860 = vmatprep.subr.mxu0 0.0
      %861 = vmatpush2.msra.mxu0 0.0
      %862 = vmatprep.subr.mxu0 0.0
      %863 = vmatpush2.msra.mxu0 0.0
      %864 = vmatprep.subr.mxu0 0.0
      %865 = vmatpush2.msra.mxu0 0.0
      %866 = vmatprep.subr.mxu0 0.0
      %867 = vmatpush2.msra.mxu0 0.0
      %868 = vmatprep.subr.mxu0 0.0
      %869 = vmatpush2.msra.mxu0 0.0
      %870 = vmatprep.mubr.f32.mxu0 0.0
      %871 = vmatmul.mubr.f32.gmra.mxu0 %v804
      %v872 = vpop.f32.mrf.mxu0
      %v873 = vadd.f32 0.0, %v872
      %v874 = vpop.f32.mrf.mxu0
      %875 = vdwg.mxu0
      %v876 = vadd.f32 %v800, %v873
      %v877 = vtanh.pop %v876
      %v878 = vmul.f32 %v877, 0.5
      %v879 = vadd.f32 %v878, 0.5
      %v880 = vmul.f32 %v879, %v793
      %882 = vrot.lane.b32.xlu0 %v877, 64
      %v883 = vpop.permute.xlu0 %882
      %v885 = vmul.f32 %v879, %v883
      %887 = vrot.lane.b32.xlu0 %v885, 32
      %v888 = vpop.permute.xlu0 %887
      %v890 = vadd.f32 %v880, %v888
      %v891 = vtanh.pop %v890
      %893 = vrot.lane.b32.xlu0 %v891, 64
      %v894 = vpop.permute.xlu0 %893
      %v896 = vmul.f32 %v879, %v894
      %v897 = vld [vmem:[#allocation2 + $0x18] sm:$0xff]
      %899 = vrot.lane.b32.xlu0 %v896, 32
      %v900 = vpop.permute.xlu0 %899
      %v901 = vsel %vm608, %v900, 0
      %903 = vmatprep.subr.mxu0 0.0
      %904 = vmatpush1.msra.mxu0 0.0
      %905 = vmatprep.subr.mxu0 0.0
      %906 = vmatpush1.msra.mxu0 0.0
      %907 = vmatprep.subr.mxu0 0.0
      %908 = vmatpush1.msra.mxu0 0.0
      %909 = vmatprep.subr.mxu0 0.0
      %910 = vmatpush1.msra.mxu0 0.0
      %911 = vmatprep.subr.mxu0 0.0
      %912 = vmatpush1.msra.mxu0 0.0
      %913 = vmatprep.subr.mxu0 0.0
      %914 = vmatpush1.msra.mxu0 0.0
      %915 = vmatprep.subr.mxu0 0.0
      %916 = vmatpush1.msra.mxu0 0.0
      %917 = vmatprep.subr.mxu0 0.0
      %918 = vmatpush1.msra.mxu0 0.0
      %919 = vmatprep.subr.mxu0 0.0
      %920 = vmatpush1.msra.mxu0 0.0
      %921 = vmatprep.subr.mxu0 0.0
      %922 = vmatpush1.msra.mxu0 0.0
      %923 = vmatprep.subr.mxu0 0.0
      %924 = vmatpush1.msra.mxu0 0.0
      %925 = vmatprep.subr.mxu0 0.0
      %926 = vmatpush1.msra.mxu0 0.0
      %927 = vmatprep.subr.mxu0 0.0
      %928 = vmatpush1.msra.mxu0 %v606
      %929 = vmatprep.subr.mxu0 0.0
      %930 = vmatpush1.msra.mxu0 %v605
      %931 = vmatprep.subr.mxu0 0.0
      %932 = vmatpush1.msra.mxu0 %v604
      %933 = vmatprep.subr.mxu0 0.0
      %934 = vmatpush1.msra.mxu0 %v603
      %935 = vmatprep.subr.mxu0 0.0
      %936 = vmatpush2.msra.mxu0 0.0
      %937 = vmatprep.subr.mxu0 0.0
      %938 = vmatpush2.msra.mxu0 0.0
      %939 = vmatprep.subr.mxu0 0.0
      %940 = vmatpush2.msra.mxu0 0.0
      %941 = vmatprep.subr.mxu0 0.0
      %942 = vmatpush2.msra.mxu0 0.0
      %943 = vmatprep.subr.mxu0 0.0
      %944 = vmatpush2.msra.mxu0 0.0
      %945 = vmatprep.subr.mxu0 0.0
      %946 = vmatpush2.msra.mxu0 0.0
      %947 = vmatprep.subr.mxu0 0.0
      %948 = vmatpush2.msra.mxu0 0.0
      %949 = vmatprep.subr.mxu0 0.0
      %950 = vmatpush2.msra.mxu0 0.0
      %951 = vmatprep.subr.mxu0 0.0
      %952 = vmatpush2.msra.mxu0 0.0
      %953 = vmatprep.subr.mxu0 0.0
      %954 = vmatpush2.msra.mxu0 0.0
      %955 = vmatprep.subr.mxu0 0.0
      %956 = vmatpush2.msra.mxu0 0.0
      %957 = vmatprep.subr.mxu0 0.0
      %958 = vmatpush2.msra.mxu0 0.0
      %959 = vmatprep.subr.mxu0 0.0
      %960 = vmatpush2.msra.mxu0 0.0
      %961 = vmatprep.subr.mxu0 0.0
      %962 = vmatpush2.msra.mxu0 0.0
      %963 = vmatprep.subr.mxu0 0.0
      %964 = vmatpush2.msra.mxu0 0.0
      %965 = vmatprep.subr.mxu0 0.0
      %966 = vmatpush2.msra.mxu0 0.0
      %967 = vmatprep.mubr.f32.mxu0 0.0
      %968 = vmatmul.mubr.f32.gmra.mxu0 %v901
      %v969 = vpop.f32.mrf.mxu0
      %v970 = vadd.f32 0.0, %v969
      %v971 = vpop.f32.mrf.mxu0
      %972 = vdwg.mxu0
      %v973 = vadd.f32 %v897, %v970
      %v974 = vtanh.pop %v973
      %v975 = vmul.f32 %v974, 0.5
      %v976 = vadd.f32 %v975, 0.5
      %v977 = vmul.f32 %v976, %v890
      %979 = vrot.lane.b32.xlu0 %v974, 64
      %v980 = vpop.permute.xlu0 %979
      %v982 = vmul.f32 %v976, %v980
      %984 = vrot.lane.b32.xlu0 %v982, 32
      %v985 = vpop.permute.xlu0 %984
      %v987 = vadd.f32 %v977, %v985
      %v988 = vtanh.pop %v987
      %990 = vrot.lane.b32.xlu0 %v988, 64
      %v991 = vpop.permute.xlu0 %990
      %v993 = vmul.f32 %v976, %v991
      %v994 = vld [vmem:[#allocation2 + $0x20] sm:$0xff]
      %996 = vrot.lane.b32.xlu0 %v993, 32
      %v997 = vpop.permute.xlu0 %996
      %v998 = vsel %vm608, %v997, 0
      %1000 = vmatprep.subr.mxu0 0.0
      %1001 = vmatpush1.msra.mxu0 0.0
      %1002 = vmatprep.subr.mxu0 0.0
      %1003 = vmatpush1.msra.mxu0 0.0
      %1004 = vmatprep.subr.mxu0 0.0
      %1005 = vmatpush1.msra.mxu0 0.0
      %1006 = vmatprep.subr.mxu0 0.0
      %1007 = vmatpush1.msra.mxu0 0.0
      %1008 = vmatprep.subr.mxu0 0.0
      %1009 = vmatpush1.msra.mxu0 0.0
      %1010 = vmatprep.subr.mxu0 0.0
      %1011 = vmatpush1.msra.mxu0 0.0
      %1012 = vmatprep.subr.mxu0 0.0
      %1013 = vmatpush1.msra.mxu0 0.0
      %1014 = vmatprep.subr.mxu0 0.0
      %1015 = vmatpush1.msra.mxu0 0.0
      %1016 = vmatprep.subr.mxu0 0.0
      %1017 = vmatpush1.msra.mxu0 0.0
      %1018 = vmatprep.subr.mxu0 0.0
      %1019 = vmatpush1.msra.mxu0 0.0
      %1020 = vmatprep.subr.mxu0 0.0
      %1021 = vmatpush1.msra.mxu0 0.0
      %1022 = vmatprep.subr.mxu0 0.0
      %1023 = vmatpush1.msra.mxu0 0.0
      %1024 = vmatprep.subr.mxu0 0.0
      %1025 = vmatpush1.msra.mxu0 %v606
      %1026 = vmatprep.subr.mxu0 0.0
      %1027 = vmatpush1.msra.mxu0 %v605
      %1028 = vmatprep.subr.mxu0 0.0
      %1029 = vmatpush1.msra.mxu0 %v604
      %1030 = vmatprep.subr.mxu0 0.0
      %1031 = vmatpush1.msra.mxu0 %v603
      %1032 = vmatprep.subr.mxu0 0.0
      %1033 = vmatpush2.msra.mxu0 0.0
      %1034 = vmatprep.subr.mxu0 0.0
      %1035 = vmatpush2.msra.mxu0 0.0
      %1036 = vmatprep.subr.mxu0 0.0
      %1037 = vmatpush2.msra.mxu0 0.0
      %1038 = vmatprep.subr.mxu0 0.0
      %1039 = vmatpush2.msra.mxu0 0.0
      %1040 = vmatprep.subr.mxu0 0.0
      %1041 = vmatpush2.msra.mxu0 0.0
      %1042 = vmatprep.subr.mxu0 0.0
      %1043 = vmatpush2.msra.mxu0 0.0
      %1044 = vmatprep.subr.mxu0 0.0
      %1045 = vmatpush2.msra.mxu0 0.0
      %1046 = vmatprep.subr.mxu0 0.0
      %1047 = vmatpush2.msra.mxu0 0.0
      %1048 = vmatprep.subr.mxu0 0.0
      %1049 = vmatpush2.msra.mxu0 0.0
      %1050 = vmatprep.subr.mxu0 0.0
      %1051 = vmatpush2.msra.mxu0 0.0
      %1052 = vmatprep.subr.mxu0 0.0
      %1053 = vmatpush2.msra.mxu0 0.0
      %1054 = vmatprep.subr.mxu0 0.0
      %1055 = vmatpush2.msra.mxu0 0.0
      %1056 = vmatprep.subr.mxu0 0.0
      %1057 = vmatpush2.msra.mxu0 0.0
      %1058 = vmatprep.subr.mxu0 0.0
      %1059 = vmatpush2.msra.mxu0 0.0
      %1060 = vmatprep.subr.mxu0 0.0
      %1061 = vmatpush2.msra.mxu0 0.0
      %1062 = vmatprep.subr.mxu0 0.0
      %1063 = vmatpush2.msra.mxu0 0.0
      %1064 = vmatprep.mubr.f32.mxu0 0.0
      %1065 = vmatmul.mubr.f32.gmra.mxu0 %v998
      %v1066 = vpop.f32.mrf.mxu0
      %v1067 = vadd.f32 0.0, %v1066
      %v1068 = vpop.f32.mrf.mxu0
      %1069 = vdwg.mxu0
      %v1070 = vadd.f32 %v994, %v1067
      %v1071 = vtanh.pop %v1070
      %v1072 = vmul.f32 %v1071, 0.5
      %v1073 = vadd.f32 %v1072, 0.5
      %v1074 = vmul.f32 %v1073, %v987
      %1076 = vrot.lane.b32.xlu0 %v1071, 64
      %v1077 = vpop.permute.xlu0 %1076
      %v1079 = vmul.f32 %v1073, %v1077
      %1081 = vrot.lane.b32.xlu0 %v1079, 32
      %v1082 = vpop.permute.xlu0 %1081
      %v1084 = vadd.f32 %v1074, %v1082
      %v1085 = vtanh.pop %v1084
      %1087 = vrot.lane.b32.xlu0 %v1085, 64
      %v1088 = vpop.permute.xlu0 %1087
      %v1090 = vmul.f32 %v1073, %v1088
      %v1091 = vld [vmem:[#allocation2 + $0x28] sm:$0xff]
      %1093 = vrot.lane.b32.xlu0 %v1090, 32
      %v1094 = vpop.permute.xlu0 %1093
      %v1095 = vsel %vm608, %v1094, 0
      %1097 = vmatprep.subr.mxu0 0.0
      %1098 = vmatpush1.msra.mxu0 0.0
      %1099 = vmatprep.subr.mxu0 0.0
      %1100 = vmatpush1.msra.mxu0 0.0
      %1101 = vmatprep.subr.mxu0 0.0
      %1102 = vmatpush1.msra.mxu0 0.0
      %1103 = vmatprep.subr.mxu0 0.0
      %1104 = vmatpush1.msra.mxu0 0.0
      %1105 = vmatprep.subr.mxu0 0.0
      %1106 = vmatpush1.msra.mxu0 0.0
      %1107 = vmatprep.subr.mxu0 0.0
      %1108 = vmatpush1.msra.mxu0 0.0
      %1109 = vmatprep.subr.mxu0 0.0
      %1110 = vmatpush1.msra.mxu0 0.0
      %1111 = vmatprep.subr.mxu0 0.0
      %1112 = vmatpush1.msra.mxu0 0.0
      %1113 = vmatprep.subr.mxu0 0.0
      %1114 = vmatpush1.msra.mxu0 0.0
      %1115 = vmatprep.subr.mxu0 0.0
      %1116 = vmatpush1.msra.mxu0 0.0
      %1117 = vmatprep.subr.mxu0 0.0
      %1118 = vmatpush1.msra.mxu0 0.0
      %1119 = vmatprep.subr.mxu0 0.0
      %1120 = vmatpush1.msra.mxu0 0.0
      %1121 = vmatprep.subr.mxu0 0.0
      %1122 = vmatpush1.msra.mxu0 %v606
      %1123 = vmatprep.subr.mxu0 0.0
      %1124 = vmatpush1.msra.mxu0 %v605
      %1125 = vmatprep.subr.mxu0 0.0
      %1126 = vmatpush1.msra.mxu0 %v604
      %1127 = vmatprep.subr.mxu0 0.0
      %1128 = vmatpush1.msra.mxu0 %v603
      %1129 = vmatprep.subr.mxu0 0.0
      %1130 = vmatpush2.msra.mxu0 0.0
      %1131 = vmatprep.subr.mxu0 0.0
      %1132 = vmatpush2.msra.mxu0 0.0
      %1133 = vmatprep.subr.mxu0 0.0
      %1134 = vmatpush2.msra.mxu0 0.0
      %1135 = vmatprep.subr.mxu0 0.0
      %1136 = vmatpush2.msra.mxu0 0.0
      %1137 = vmatprep.subr.mxu0 0.0
      %1138 = vmatpush2.msra.mxu0 0.0
      %1139 = vmatprep.subr.mxu0 0.0
      %1140 = vmatpush2.msra.mxu0 0.0
      %1141 = vmatprep.subr.mxu0 0.0
      %1142 = vmatpush2.msra.mxu0 0.0
      %1143 = vmatprep.subr.mxu0 0.0
      %1144 = vmatpush2.msra.mxu0 0.0
      %1145 = vmatprep.subr.mxu0 0.0
      %1146 = vmatpush2.msra.mxu0 0.0
      %1147 = vmatprep.subr.mxu0 0.0
      %1148 = vmatpush2.msra.mxu0 0.0
      %1149 = vmatprep.subr.mxu0 0.0
      %1150 = vmatpush2.msra.mxu0 0.0
      %1151 = vmatprep.subr.mxu0 0.0
      %1152 = vmatpush2.msra.mxu0 0.0
      %1153 = vmatprep.subr.mxu0 0.0
      %1154 = vmatpush2.msra.mxu0 0.0
      %1155 = vmatprep.subr.mxu0 0.0
      %1156 = vmatpush2.msra.mxu0 0.0
      %1157 = vmatprep.subr.mxu0 0.0
      %1158 = vmatpush2.msra.mxu0 0.0
      %1159 = vmatprep.subr.mxu0 0.0
      %1160 = vmatpush2.msra.mxu0 0.0
      %1161 = vmatprep.mubr.f32.mxu0 0.0
      %1162 = vmatmul.mubr.f32.gmra.mxu0 %v1095
      %v1163 = vpop.f32.mrf.mxu0
      %v1164 = vadd.f32 0.0, %v1163
      %v1165 = vpop.f32.mrf.mxu0
      %1166 = vdwg.mxu0
      %v1167 = vadd.f32 %v1091, %v1164
      %v1168 = vtanh.pop %v1167
      %v1169 = vmul.f32 %v1168, 0.5
      %v1170 = vadd.f32 %v1169, 0.5
      %v1171 = vmul.f32 %v1170, %v1084
      %1173 = vrot.lane.b32.xlu0 %v1168, 64
      %v1174 = vpop.permute.xlu0 %1173
      %v1176 = vmul.f32 %v1170, %v1174
      %1178 = vrot.lane.b32.xlu0 %v1176, 32
      %v1179 = vpop.permute.xlu0 %1178
      %v1181 = vadd.f32 %v1171, %v1179
      %v1182 = vtanh.pop %v1181
      %1184 = vrot.lane.b32.xlu0 %v1182, 64
      %v1185 = vpop.permute.xlu0 %1184
      %v1187 = vmul.f32 %v1170, %v1185
      %v1188 = vld [vmem:[#allocation2 + $0x30] sm:$0xff]
      %1190 = vrot.lane.b32.xlu0 %v1187, 32
      %v1191 = vpop.permute.xlu0 %1190
      %v1192 = vsel %vm608, %v1191, 0
      %1194 = vmatprep.subr.mxu0 0.0
      %1195 = vmatpush1.msra.mxu0 0.0
      %1196 = vmatprep.subr.mxu0 0.0
      %1197 = vmatpush1.msra.mxu0 0.0
      %1198 = vmatprep.subr.mxu0 0.0
      %1199 = vmatpush1.msra.mxu0 0.0
      %1200 = vmatprep.subr.mxu0 0.0
      %1201 = vmatpush1.msra.mxu0 0.0
      %1202 = vmatprep.subr.mxu0 0.0
      %1203 = vmatpush1.msra.mxu0 0.0
      %1204 = vmatprep.subr.mxu0 0.0
      %1205 = vmatpush1.msra.mxu0 0.0
      %1206 = vmatprep.subr.mxu0 0.0
      %1207 = vmatpush1.msra.mxu0 0.0
      %1208 = vmatprep.subr.mxu0 0.0
      %1209 = vmatpush1.msra.mxu0 0.0
      %1210 = vmatprep.subr.mxu0 0.0
      %1211 = vmatpush1.msra.mxu0 0.0
      %1212 = vmatprep.subr.mxu0 0.0
      %1213 = vmatpush1.msra.mxu0 0.0
      %1214 = vmatprep.subr.mxu0 0.0
      %1215 = vmatpush1.msra.mxu0 0.0
      %1216 = vmatprep.subr.mxu0 0.0
      %1217 = vmatpush1.msra.mxu0 0.0
      %1218 = vmatprep.subr.mxu0 0.0
      %1219 = vmatpush1.msra.mxu0 %v606
      %1220 = vmatprep.subr.mxu0 0.0
      %1221 = vmatpush1.msra.mxu0 %v605
      %1222 = vmatprep.subr.mxu0 0.0
      %1223 = vmatpush1.msra.mxu0 %v604
      %1224 = vmatprep.subr.mxu0 0.0
      %1225 = vmatpush1.msra.mxu0 %v603
      %1226 = vmatprep.subr.mxu0 0.0
      %1227 = vmatpush2.msra.mxu0 0.0
      %1228 = vmatprep.subr.mxu0 0.0
      %1229 = vmatpush2.msra.mxu0 0.0
      %1230 = vmatprep.subr.mxu0 0.0
      %1231 = vmatpush2.msra.mxu0 0.0
      %1232 = vmatprep.subr.mxu0 0.0
      %1233 = vmatpush2.msra.mxu0 0.0
      %1234 = vmatprep.subr.mxu0 0.0
      %1235 = vmatpush2.msra.mxu0 0.0
      %1236 = vmatprep.subr.mxu0 0.0
      %1237 = vmatpush2.msra.mxu0 0.0
      %1238 = vmatprep.subr.mxu0 0.0
      %1239 = vmatpush2.msra.mxu0 0.0
      %1240 = vmatprep.subr.mxu0 0.0
      %1241 = vmatpush2.msra.mxu0 0.0
      %1242 = vmatprep.subr.mxu0 0.0
      %1243 = vmatpush2.msra.mxu0 0.0
      %1244 = vmatprep.subr.mxu0 0.0
      %1245 = vmatpush2.msra.mxu0 0.0
      %1246 = vmatprep.subr.mxu0 0.0
      %1247 = vmatpush2.msra.mxu0 0.0
      %1248 = vmatprep.subr.mxu0 0.0
      %1249 = vmatpush2.msra.mxu0 0.0
      %1250 = vmatprep.subr.mxu0 0.0
      %1251 = vmatpush2.msra.mxu0 0.0
      %1252 = vmatprep.subr.mxu0 0.0
      %1253 = vmatpush2.msra.mxu0 0.0
      %1254 = vmatprep.subr.mxu0 0.0
      %1255 = vmatpush2.msra.mxu0 0.0
      %1256 = vmatprep.subr.mxu0 0.0
      %1257 = vmatpush2.msra.mxu0 0.0
      %1258 = vmatprep.mubr.f32.mxu0 0.0
      %1259 = vmatmul.mubr.f32.gmra.mxu0 %v1192
      %v1260 = vpop.f32.mrf.mxu0
      %v1261 = vadd.f32 0.0, %v1260
      %v1262 = vpop.f32.mrf.mxu0
      %1263 = vdwg.mxu0
      %v1264 = vadd.f32 %v1188, %v1261
      %v1265 = vtanh.pop %v1264
      %v1266 = vmul.f32 %v1265, 0.5
      %v1267 = vadd.f32 %v1266, 0.5
      %v1268 = vmul.f32 %v1267, %v1181
      %1270 = vrot.lane.b32.xlu0 %v1265, 64
      %v1271 = vpop.permute.xlu0 %1270
      %v1273 = vmul.f32 %v1267, %v1271
      %1275 = vrot.lane.b32.xlu0 %v1273, 32
      %v1276 = vpop.permute.xlu0 %1275
      %v1278 = vadd.f32 %v1268, %v1276
      %v1279 = vtanh.pop %v1278
      %1281 = vrot.lane.b32.xlu0 %v1279, 64
      %v1282 = vpop.permute.xlu0 %1281
      %v1284 = vmul.f32 %v1267, %v1282
      %v1285 = vld [vmem:[#allocation2 + $0x38] sm:$0xff]
      %1287 = vrot.lane.b32.xlu0 %v1284, 32
      %v1288 = vpop.permute.xlu0 %1287
      %v1289 = vsel %vm608, %v1288, 0
      %1291 = vmatprep.subr.mxu0 0.0
      %1292 = vmatpush1.msra.mxu0 0.0
      %1293 = vmatprep.subr.mxu0 0.0
      %1294 = vmatpush1.msra.mxu0 0.0
      %1295 = vmatprep.subr.mxu0 0.0
      %1296 = vmatpush1.msra.mxu0 0.0
      %1297 = vmatprep.subr.mxu0 0.0
      %1298 = vmatpush1.msra.mxu0 0.0
      %1299 = vmatprep.subr.mxu0 0.0
      %1300 = vmatpush1.msra.mxu0 0.0
      %1301 = vmatprep.subr.mxu0 0.0
      %1302 = vmatpush1.msra.mxu0 0.0
      %1303 = vmatprep.subr.mxu0 0.0
      %1304 = vmatpush1.msra.mxu0 0.0
      %1305 = vmatprep.subr.mxu0 0.0
      %1306 = vmatpush1.msra.mxu0 0.0
      %1307 = vmatprep.subr.mxu0 0.0
      %1308 = vmatpush1.msra.mxu0 0.0
      %1309 = vmatprep.subr.mxu0 0.0
      %1310 = vmatpush1.msra.mxu0 0.0
      %1311 = vmatprep.subr.mxu0 0.0
      %1312 = vmatpush1.msra.mxu0 0.0
      %1313 = vmatprep.subr.mxu0 0.0
      %1314 = vmatpush1.msra.mxu0 0.0
      %1315 = vmatprep.subr.mxu0 0.0
      %1316 = vmatpush1.msra.mxu0 %v606
      %1317 = vmatprep.subr.mxu0 0.0
      %1318 = vmatpush1.msra.mxu0 %v605
      %1319 = vmatprep.subr.mxu0 0.0
      %1320 = vmatpush1.msra.mxu0 %v604
      %1321 = vmatprep.subr.mxu0 0.0
      %1322 = vmatpush1.msra.mxu0 %v603
      %1323 = vmatprep.subr.mxu0 0.0
      %1324 = vmatpush2.msra.mxu0 0.0
      %1325 = vmatprep.subr.mxu0 0.0
      %1326 = vmatpush2.msra.mxu0 0.0
      %1327 = vmatprep.subr.mxu0 0.0
      %1328 = vmatpush2.msra.mxu0 0.0
      %1329 = vmatprep.subr.mxu0 0.0
      %1330 = vmatpush2.msra.mxu0 0.0
      %1331 = vmatprep.subr.mxu0 0.0
      %1332 = vmatpush2.msra.mxu0 0.0
      %1333 = vmatprep.subr.mxu0 0.0
      %1334 = vmatpush2.msra.mxu0 0.0
      %1335 = vmatprep.subr.mxu0 0.0
      %1336 = vmatpush2.msra.mxu0 0.0
      %1337 = vmatprep.subr.mxu0 0.0
      %1338 = vmatpush2.msra.mxu0 0.0
      %1339 = vmatprep.subr.mxu0 0.0
      %1340 = vmatpush2.msra.mxu0 0.0
      %1341 = vmatprep.subr.mxu0 0.0
      %1342 = vmatpush2.msra.mxu0 0.0
      %1343 = vmatprep.subr.mxu0 0.0
      %1344 = vmatpush2.msra.mxu0 0.0
      %1345 = vmatprep.subr.mxu0 0.0
      %1346 = vmatpush2.msra.mxu0 0.0
      %1347 = vmatprep.subr.mxu0 0.0
      %1348 = vmatpush2.msra.mxu0 0.0
      %1349 = vmatprep.subr.mxu0 0.0
      %1350 = vmatpush2.msra.mxu0 0.0
      %1351 = vmatprep.subr.mxu0 0.0
      %1352 = vmatpush2.msra.mxu0 0.0
      %1353 = vmatprep.subr.mxu0 0.0
      %1354 = vmatpush2.msra.mxu0 0.0
      %1355 = vmatprep.mubr.f32.mxu0 0.0
      %1356 = vmatmul.mubr.f32.gmra.mxu0 %v1289
      %v1357 = vpop.f32.mrf.mxu0
      %v1358 = vadd.f32 0.0, %v1357
      %v1359 = vpop.f32.mrf.mxu0
      %1360 = vdwg.mxu0
      %v1361 = vadd.f32 %v1285, %v1358
      %v1362 = vtanh.pop %v1361
      %v1363 = vmul.f32 %v1362, 0.5
      %v1364 = vadd.f32 %v1363, 0.5
      %v1365 = vmul.f32 %v1364, %v1278
      %1367 = vrot.lane.b32.xlu0 %v1362, 64
      %v1368 = vpop.permute.xlu0 %1367
      %v1370 = vmul.f32 %v1364, %v1368
      %1372 = vrot.lane.b32.xlu0 %v1370, 32
      %v1373 = vpop.permute.xlu0 %1372
      %v1375 = vadd.f32 %v1365, %v1373
      %v1376 = vtanh.pop %v1375
      %1378 = vrot.lane.b32.xlu0 %v1376, 64
      %v1379 = vpop.permute.xlu0 %1378
      %v1381 = vmul.f32 %v1364, %v1379
      %v1382 = vld [vmem:[%s4] sm:$0xff]
      %v1383 = vld [vmem:[%s4 + $0x8] sm:$0xff]
      %v1384 = vld [vmem:[%s4 + $0x10] sm:$0xff]
      %v1385 = vld [vmem:[%s4 + $0x18] sm:$0xff]
      %v1386 = vld [vmem:[%s5] sm:$0x1]
      %v1388 = vlaneseq
      %v1389 = vshrl.u32 %v1388, 7
      %v1390 = vsub.s32 0, %v1389
      %v1391 = vrot.slane %v1386, %v1390
      %1394 = vrot.lane.b32.xlu0 %v1381, 32
      %v1395 = vpop.permute.xlu0 %1394
      %v1396 = vsel %vm608, %v1395, 0
      %1398 = vmatprep.subr.mxu0 0.0
      %1399 = vmatpush1.msra.mxu0 0.0
      %1400 = vmatprep.subr.mxu0 0.0
      %1401 = vmatpush1.msra.mxu0 0.0
      %1402 = vmatprep.subr.mxu0 0.0
      %1403 = vmatpush1.msra.mxu0 0.0
      %1404 = vmatprep.subr.mxu0 0.0
      %1405 = vmatpush1.msra.mxu0 0.0
      %1406 = vmatprep.subr.mxu0 0.0
      %1407 = vmatpush1.msra.mxu0 0.0
      %1408 = vmatprep.subr.mxu0 0.0
      %1409 = vmatpush1.msra.mxu0 0.0
      %1410 = vmatprep.subr.mxu0 0.0
      %1411 = vmatpush1.msra.mxu0 0.0
      %1412 = vmatprep.subr.mxu0 0.0
      %1413 = vmatpush1.msra.mxu0 0.0
      %1414 = vmatprep.subr.mxu0 0.0
      %1415 = vmatpush1.msra.mxu0 0.0
      %1416 = vmatprep.subr.mxu0 0.0
      %1417 = vmatpush1.msra.mxu0 0.0
      %1418 = vmatprep.subr.mxu0 0.0
      %1419 = vmatpush1.msra.mxu0 0.0
      %1420 = vmatprep.subr.mxu0 0.0
      %1421 = vmatpush1.msra.mxu0 0.0
      %1422 = vmatprep.subr.mxu0 0.0
      %1423 = vmatpush1.msra.mxu0 %v1385
      %1424 = vmatprep.subr.mxu0 0.0
      %1425 = vmatpush1.msra.mxu0 %v1384
      %1426 = vmatprep.subr.mxu0 0.0
      %1427 = vmatpush1.msra.mxu0 %v1383
      %1428 = vmatprep.subr.mxu0 0.0
      %1429 = vmatpush1.msra.mxu0 %v1382
      %1430 = vmatprep.subr.mxu0 0.0
      %1431 = vmatpush2.msra.mxu0 0.0
      %1432 = vmatprep.subr.mxu0 0.0
      %1433 = vmatpush2.msra.mxu0 0.0
      %1434 = vmatprep.subr.mxu0 0.0
      %1435 = vmatpush2.msra.mxu0 0.0
      %1436 = vmatprep.subr.mxu0 0.0
      %1437 = vmatpush2.msra.mxu0 0.0
      %1438 = vmatprep.subr.mxu0 0.0
      %1439 = vmatpush2.msra.mxu0 0.0
      %1440 = vmatprep.subr.mxu0 0.0
      %1441 = vmatpush2.msra.mxu0 0.0
      %1442 = vmatprep.subr.mxu0 0.0
      %1443 = vmatpush2.msra.mxu0 0.0
      %1444 = vmatprep.subr.mxu0 0.0
      %1445 = vmatpush2.msra.mxu0 0.0
      %1446 = vmatprep.subr.mxu0 0.0
      %1447 = vmatpush2.msra.mxu0 0.0
      %1448 = vmatprep.subr.mxu0 0.0
      %1449 = vmatpush2.msra.mxu0 0.0
      %1450 = vmatprep.subr.mxu0 0.0
      %1451 = vmatpush2.msra.mxu0 0.0
      %1452 = vmatprep.subr.mxu0 0.0
      %1453 = vmatpush2.msra.mxu0 0.0
      %1454 = vmatprep.subr.mxu0 0.0
      %1455 = vmatpush2.msra.mxu0 0.0
      %1456 = vmatprep.subr.mxu0 0.0
      %1457 = vmatpush2.msra.mxu0 0.0
      %1458 = vmatprep.subr.mxu0 0.0
      %1459 = vmatpush2.msra.mxu0 0.0
      %1460 = vmatprep.subr.mxu0 0.0
      %1461 = vmatpush2.msra.mxu0 0.0
      %1462 = vmatprep.mubr.f32.mxu0 0.0
      %1463 = vmatmul.mubr.f32.gmra.mxu0 %v1396
      %v1464 = vpop.f32.mrf.mxu0
      %v1465 = vadd.f32 %v1391, %v1464
      %v1466 = vpop.f32.mrf.mxu0
      %1467 = vdwg.mxu0
      %vm1468 = vcmask 39936
      %v1469 = vsel %vm1468, %v1465, -inf
      %1470 = vmax.xlane.f32.xlu0 %v1469
      %v1471 = vpop.xlane.xlu0 %1470
      %v1472 = vsub.f32 %v1465, %v1471
      %v1473 = vmul.f32 %v1472, 1.442695
      %v1474 = vpow.pop %v1473
      %v1475 = vsel %vm1468, %v1474, 0.0
      %1476 = vadd.xlane.f32.xlu0 %v1475
      %v1477 = vpop.xlane.xlu0 %1476
      %v1478 = vlog2.pop %v1477
      %v1479 = vmul.f32 %v1478, 0.6931472
      %v1480 = vadd.f32 %v1479, %v1471
      %v1481 = vsub.f32 %v1465, %v1480
      %1482 = vst.msk [vmem:[%s209] sm:$0xff] %vm1468, %v1481
      %p1483 = scmp.lt.s32.totalorder %s23, 1
      %s1484 = scalar_select %p1483, %s23, 1
      %s1485 = smul.addr %s1484, 8
      %s1486 = scalar_lea.vmem %s6, %s1485
      // Predicated region
      $region41: #{tpu_custom_call.1} parent=39 // pred_check
        %p1487 = pneg %p146
      $region42: #{tpu_custom_call.1} parent=39 // pred_check_branch
        %1489 = sbr.rel (%p1487) target = $region44
      $region43: #{tpu_custom_call.1} parent=39 // pred_region
        _
      $region44: #{tpu_custom_call.1} parent=39 // pred_fallthru
        _
    $region40: #{tpu_custom_call.1} parent=5 // pred_fallthru
      _
    %p1490 = scmp.le.s32.totalorder 2, %s18
    // Predicated region
    $region45: #{tpu_custom_call.1} parent=5 // pred_check
      %p1491 = pneg %p1490
    $region46: #{tpu_custom_call.1} parent=5 // pred_check_branch
      %1493 = sbr.rel (%p1491) target = $region48
    $region47: #{tpu_custom_call.1} parent=5 // pred_region
      %s1494 = ssub.s32 %s18, 2
      // Predicated region
      $region49: #{tpu_custom_call.1} parent=47 // pred_check
        %p1495 = pneg %p152
      $region50: #{tpu_custom_call.1} parent=47 // pred_check_branch
        %1497 = sbr.rel (%p1495) target = $region52
      $region51: #{tpu_custom_call.1} parent=47 // pred_region
        %p1498 = scmp.lt.s32.totalorder %s24, 1
        %s1499 = scalar_select %p1498, %s24, 1
        %s1500 = smul.addr %s1499, 8
        %s1501 = scalar_lea.vmem %s6, %s1500
      $region52: #{tpu_custom_call.1} parent=47 // pred_fallthru
        _
    $region48: #{tpu_custom_call.1} parent=5 // pred_fallthru
      _
  $region6: #{tpu_custom_call.1} parent=0 // loop_footer
    %s22 = sadd.s32 1, %s18
  $region7: #{tpu_custom_call.1} parent=0 // loop_footer_branch
    %17 = sbr.rel target = $region3
  $region8: #{tpu_custom_call.1} parent=0 // loop_exit
    _

</llo_original>
